<compile_context>
chip_gen: v7x
topology: tpu7x:2x2x1
jax: 0.10.0
libtpu: 0.0.40
codegen_flags: <defaults>
</compile_context>

<pallas_src>
import jax
import jax.numpy as jnp
from jax import lax
from jax.experimental import pallas as pl
from jax.experimental.pallas import tpu as pltpu

PATCH = 16
WIDTH = 768          # ViT-B-16 transformer width (patch-token dim)
PROJ_DIM = 512       # CLIP visual projection dim
N_CONCEPTS = 312
N_CLASSES = 200
C_PAD = 384          # 312 padded up to a multiple of 128 (lane-dense stores)
L_PAD = 256          # 200 padded up to a multiple of 128
LN_EPS = 1e-5        # torch.nn.LayerNorm default eps
NORM_EPS = 1e-12     # torch F.normalize default eps


# ----------------------------- fused CBM kernel ---------------------------------

def _layernorm_f32(x, gamma, beta):
    mu = jnp.mean(x, axis=-1, keepdims=True)
    xc = x - mu
    var = jnp.mean(xc * xc, axis=-1, keepdims=True)
    return xc * lax.rsqrt(var + LN_EPS) * gamma + beta


def _cbm_kernel(mp_ref, we_ref, wproj_ref, cfT_ref,
                ln1_g_ref, ln1_b_ref, w1_ref, b1_ref,
                ln2_g_ref, ln2_b_ref, w2_ref, b2_ref, mask_ref,
                concepts_ref, logits_ref):
    # 1) stand-in encoder: pooled patch tokens == mean(patches) @ W_embed
    #    (mean commutes with the linear patch embedding)
    pooled = jnp.dot(mp_ref[...], we_ref[...],
                     preferred_element_type=jnp.float32)          # (tn, WIDTH) f32

    # 2) stand-in CLIP visual projection (no bias)
    vp = jnp.dot(pooled.astype(jnp.bfloat16), wproj_ref[...],
                 preferred_element_type=jnp.float32)              # (tn, PROJ_DIM) f32

    # 3) concept_activations = F.normalize(vp) @ F.normalize(concept_feats).T
    #    (concept features already normalized, transposed, zero-padded to C_PAD)
    sq = jnp.sum(vp * vp, axis=-1, keepdims=True)
    vp_n = vp * lax.rsqrt(jnp.maximum(sq, NORM_EPS * NORM_EPS))
    act = jnp.dot(vp_n.astype(jnp.bfloat16), cfT_ref[...],
                  preferred_element_type=jnp.float32)             # (tn, C_PAD) f32

    # 4) concept_projections = Linear(LayerNorm(mean(visual_patches, dim=1)))
    h = _layernorm_f32(pooled, ln1_g_ref[...], ln1_b_ref[...])
    cp = (jnp.dot(h.astype(jnp.bfloat16), w1_ref[...],
                  preferred_element_type=jnp.float32)
          + b1_ref[...])                                          # (tn, C_PAD) f32

    concepts = act + cp                     # lanes >= N_CONCEPTS are exactly zero
    concepts_ref[...] = concepts

    # 5) classifier = Linear(LayerNorm_312(concepts)); LayerNorm over exactly 312
    #    lanes using a prepared lane mask (padded lanes of concepts are zero, so
    #    the un-masked sum is already the 312-lane sum).
    mask = mask_ref[...]                                          # (1, C_PAD) f32
    mu = jnp.sum(concepts, axis=-1, keepdims=True) * (1.0 / N_CONCEPTS)
    xc = concepts - mu
    var = jnp.sum(xc * xc * mask, axis=-1, keepdims=True) * (1.0 / N_CONCEPTS)
    g = xc * lax.rsqrt(var + LN_EPS) * ln2_g_ref[...] + ln2_b_ref[...]
    logits_ref[...] = (jnp.dot(g.astype(jnp.bfloat16), w2_ref[...],
                               preferred_element_type=jnp.float32)
                       + b2_ref[...])                             # (tn, L_PAD) f32


def _pick_tn(n):
    """Row-tile size: >= 2 grid steps when possible (v7x: both TensorCores),
    capped at 512 rows to keep per-step overhead amortized on v5e/v6e."""
    if n <= 8:
        return n                      # block == full dim (8,128 rule satisfied)
    half = -(-n // 2)                 # cdiv(n, 2)
    tn = ((half + 7) // 8) * 8        # round up to sublane multiple
    return max(8, min(512, tn))


def cbm_head_pallas(mean_patches, kp):
    n, k = mean_patches.shape
    tn = _pick_tn(n)

    def full(shape):
        nd = len(shape)
        return pl.BlockSpec(shape, lambda *_i, _nd=nd: (0,) * _nd)

    def rows(d):
        return pl.BlockSpec((tn, d), lambda i: (i, 0))

    args = (mean_patches, kp["patch_embed_w"], kp["visual_proj_w"], kp["cf_nT"],
            kp["ln1_g"], kp["ln1_b"], kp["w1"], kp["b1"],
            kp["ln2_g"], kp["ln2_b"], kp["w2"], kp["b2"], kp["mask"])
    in_specs = [rows(k),
                full((k, WIDTH)),
                full((WIDTH, PROJ_DIM)), full((PROJ_DIM, C_PAD)),
                full((1, WIDTH)), full((1, WIDTH)),
                full((WIDTH, C_PAD)), full((1, C_PAD)),
                full((1, C_PAD)), full((1, C_PAD)),
                full((C_PAD, L_PAD)), full((1, L_PAD)),
                full((1, C_PAD))]

    return pl.pallas_call(
        _cbm_kernel,
        out_shape=(jax.ShapeDtypeStruct((n, C_PAD), jnp.float32),
                   jax.ShapeDtypeStruct((n, L_PAD), jnp.float32)),
        grid_spec=pltpu.PrefetchScalarGridSpec(
            num_scalar_prefetch=0,
            grid=(pl.cdiv(n, tn),),
            in_specs=in_specs,
            out_specs=(rows(C_PAD), rows(L_PAD)),
        ),
        compiler_params=pltpu.CompilerParams(
            dimension_semantics=("parallel",)),
    )(*args)


# ----------------------------------- glue ---------------------------------------

def patchify(images):
    """(N, C, H, W) -> (N, num_patches, C*PATCH*PATCH), conv-style flattening."""
    n, c, h, w = images.shape
    gh, gw = h // PATCH, w // PATCH
    x = images.reshape(n, c, gh, PATCH, gw, PATCH)
    x = jnp.transpose(x, (0, 2, 4, 1, 3, 5))      # (n, gh, gw, c, ph, pw)
    return x.reshape(n, gh * gw, c * PATCH * PATCH)


def init_params(key):
    ks = jax.random.split(key, 5)

    def w(k, shape, scale=0.02):
        return scale * jax.random.normal(k, shape, jnp.float32)

    return {
        # stand-in frozen CLIP encoder weights
        "patch_embed_w": w(ks[0], (3 * PATCH * PATCH, WIDTH)),
        "visual_proj_w": w(ks[1], (WIDTH, PROJ_DIM)),
        # stand-in for np.load('model/my_cub_concept_features.npy')
        "concept_features": jax.random.normal(ks[2], (N_CONCEPTS, PROJ_DIM),
                                              jnp.float32),
        # concept_projection = LayerNorm(768) + Linear(768, 312)
        "ln1_g": jnp.ones((WIDTH,), jnp.float32),
        "ln1_b": jnp.zeros((WIDTH,), jnp.float32),
        "w1": w(ks[3], (WIDTH, N_CONCEPTS)),
        "b1": jnp.zeros((N_CONCEPTS,), jnp.float32),
        # classifier = LayerNorm(312) + Linear(312, 200)
        "ln2_g": jnp.ones((N_CONCEPTS,), jnp.float32),
        "ln2_b": jnp.zeros((N_CONCEPTS,), jnp.float32),
        "w2": w(ks[4], (N_CONCEPTS, N_CLASSES)),
        "b2": jnp.zeros((N_CLASSES,), jnp.float32),
    }


def prepare_params(params):
    """One-time (frozen) preprocessing: normalize+transpose concept features,
    lane-pad the 312/200 heads, cast all MXU weight operands to bf16, build the
    312-lane mask.  LayerNorm params / biases stay f32."""
    f32, bf16 = jnp.float32, jnp.bfloat16

    cf = params["concept_features"].astype(f32)
    nrm = jnp.sqrt(jnp.sum(cf * cf, axis=-1, keepdims=True))
    cf_n = cf / jnp.maximum(nrm, NORM_EPS)                       # F.normalize
    cf_nT = jnp.zeros((PROJ_DIM, C_PAD), f32).at[:, :N_CONCEPTS].set(cf_n.T)

    w1 = jnp.zeros((WIDTH, C_PAD), f32).at[:, :N_CONCEPTS].set(params["w1"])
    b1 = jnp.zeros((1, C_PAD), f32).at[0, :N_CONCEPTS].set(params["b1"])
    ln2_g = jnp.zeros((1, C_PAD), f32).at[0, :N_CONCEPTS].set(params["ln2_g"])
    ln2_b = jnp.zeros((1, C_PAD), f32).at[0, :N_CONCEPTS].set(params["ln2_b"])
    w2 = jnp.zeros((C_PAD, L_PAD), f32).at[:N_CONCEPTS, :N_CLASSES].set(params["w2"])
    b2 = jnp.zeros((1, L_PAD), f32).at[0, :N_CLASSES].set(params["b2"])

    mask = (jnp.arange(C_PAD) < N_CONCEPTS).astype(f32).reshape(1, C_PAD)

    return {
        "patch_embed_w": params["patch_embed_w"].astype(bf16),
        "visual_proj_w": params["visual_proj_w"].astype(bf16),
        "cf_nT": cf_nT.astype(bf16),
        "ln1_g": params["ln1_g"].reshape(1, -1).astype(f32),
        "ln1_b": params["ln1_b"].reshape(1, -1).astype(f32),
        "w1": w1.astype(bf16), "b1": b1,
        "ln2_g": ln2_g, "ln2_b": ln2_b,
        "w2": w2.astype(bf16), "b2": b2,
        "mask": mask,
    }


@jax.jit
def css_cbm_forward(image_pairs, kparams):
    bs, imgs, c, h, w = image_pairs.shape
    n = bs * imgs
    images = image_pairs.reshape(n, c, h, w)

    # TODO(synk): frozen pretrained ViT-B-16 transformer blocks of encode_image are
    # omitted (no checkpoint load); stand-in = patch-embedding + mean-pool + projection.
    patches = patchify(images)                                   # (n, P, K) f32
    # mean over patches commutes with the linear patch-embed matmul -> pre-pool
    # here and fold the embed matmul into the fused head kernel.
    mean_patches = jnp.mean(patches, axis=1).astype(jnp.bfloat16)   # (n, K) bf16

    concepts_p, logits_p = cbm_head_pallas(mean_patches, kparams)
    return concepts_p[:, :N_CONCEPTS], logits_p[:, :N_CLASSES]


# ------------------------- pure-JAX f32 reference path --------------------------

def reference_forward(image_pairs, params):
    bs, imgs, c, h, w = image_pairs.shape
    n = bs * imgs
    images = image_pairs.reshape(n, c, h, w)
    patches = patchify(images)                                   # (n, P, K)
    tok = patches @ params["patch_embed_w"]                      # (n, P, WIDTH)
    pooled = jnp.mean(tok, axis=1)                               # (n, WIDTH)
    vp = pooled @ params["visual_proj_w"]                        # (n, PROJ_DIM)

    def l2n(x):
        nrm = jnp.sqrt(jnp.sum(x * x, axis=-1, keepdims=True))
        return x / jnp.maximum(nrm, NORM_EPS)

    def ln(x, g, b):
        mu = jnp.mean(x, axis=-1, keepdims=True)
        xc = x - mu
        var = jnp.mean(xc * xc, axis=-1, keepdims=True)
        return xc / jnp.sqrt(var + LN_EPS) * g + b

    act = l2n(vp) @ l2n(params["concept_features"]).T
    cp = ln(pooled, params["ln1_g"], params["ln1_b"]) @ params["w1"] + params["b1"]
    concepts = act + cp
    logits = (ln(concepts, params["ln2_g"], params["ln2_b"]) @ params["w2"]
              + params["b2"])
    return concepts, logits


if __name__ == "__main__":
    key = jax.random.PRNGKey(0)
    k_img, k_par = jax.random.split(key)

    # image_pairs: (bs, imgs, channels, h, w) — small spatial size (2 patches/side)
    image_pairs = jax.random.normal(k_img, (2, 2, 3, 32, 32), jnp.float32)
    params = init_params(k_par)
    kparams = prepare_params(params)

    concepts, logits = css_cbm_forward(image_pairs, kparams)
    jax.block_until_ready((concepts, logits))

    assert concepts.shape == (4, N_CONCEPTS), concepts.shape
    assert logits.shape == (4, N_CLASSES), logits.shape
    assert jnp.all(jnp.isfinite(concepts)) and jnp.all(jnp.isfinite(logits))

    # tolerance check against the f32 reference (bf16 MXU operands, f32 acc)
    ref_c, ref_l = reference_forward(image_pairs, params)
    c_err = float(jnp.max(jnp.abs(concepts - ref_c)))
    l_err = float(jnp.max(jnp.abs(logits - ref_l)))
    assert c_err < 5e-2 and l_err < 5e-2, (c_err, l_err)

    print("KERNEL_OK")
</pallas_src>

<mosaic_0001>
module attributes {stable_mosaic.version = 11 : i64} {
  func.func @_cbm_kernel(%arg0: i32, %arg1: memref<4x768xbf16, #tpu.memory_space<vmem>>, %arg2: memref<768x768xbf16, #tpu.memory_space<vmem>>, %arg3: memref<768x512xbf16, #tpu.memory_space<vmem>>, %arg4: memref<512x384xbf16, #tpu.memory_space<vmem>>, %arg5: memref<1x768xf32, #tpu.memory_space<vmem>>, %arg6: memref<1x768xf32, #tpu.memory_space<vmem>>, %arg7: memref<768x384xbf16, #tpu.memory_space<vmem>>, %arg8: memref<1x384xf32, #tpu.memory_space<vmem>>, %arg9: memref<1x384xf32, #tpu.memory_space<vmem>>, %arg10: memref<1x384xf32, #tpu.memory_space<vmem>>, %arg11: memref<384x256xbf16, #tpu.memory_space<vmem>>, %arg12: memref<1x256xf32, #tpu.memory_space<vmem>>, %arg13: memref<1x384xf32, #tpu.memory_space<vmem>>, %arg14: memref<4x384xf32, #tpu.memory_space<vmem>>, %arg15: memref<4x256xf32, #tpu.memory_space<vmem>>) attributes {dimension_semantics = [#tpu.dimension_semantics<parallel>], iteration_bounds = array<i64: 1>, scalar_prefetch = 0 : i64, scratch_operands = 0 : i64, tpu.core_type = #tpu.core_type<tc>, window_params = [{transform_indices = @transform_0, window_bounds = array<i64: 4, 768>}, {pipeline_mode = #tpu.pipeline_mode<synchronous>, transform_indices = @transform_1, window_bounds = array<i64: 768, 768>}, {pipeline_mode = #tpu.pipeline_mode<synchronous>, transform_indices = @transform_2, window_bounds = array<i64: 768, 512>}, {pipeline_mode = #tpu.pipeline_mode<synchronous>, transform_indices = @transform_3, window_bounds = array<i64: 512, 384>}, {pipeline_mode = #tpu.pipeline_mode<synchronous>, transform_indices = @transform_4, window_bounds = array<i64: 1, 768>}, {pipeline_mode = #tpu.pipeline_mode<synchronous>, transform_indices = @transform_5, window_bounds = array<i64: 1, 768>}, {pipeline_mode = #tpu.pipeline_mode<synchronous>, transform_indices = @transform_6, window_bounds = array<i64: 768, 384>}, {pipeline_mode = #tpu.pipeline_mode<synchronous>, transform_indices = @transform_7, window_bounds = array<i64: 1, 384>}, {pipeline_mode = #tpu.pipeline_mode<synchronous>, transform_indices = @transform_8, window_bounds = array<i64: 1, 384>}, {pipeline_mode = #tpu.pipeline_mode<synchronous>, transform_indices = @transform_9, window_bounds = array<i64: 1, 384>}, {pipeline_mode = #tpu.pipeline_mode<synchronous>, transform_indices = @transform_10, window_bounds = array<i64: 384, 256>}, {pipeline_mode = #tpu.pipeline_mode<synchronous>, transform_indices = @transform_11, window_bounds = array<i64: 1, 256>}, {pipeline_mode = #tpu.pipeline_mode<synchronous>, transform_indices = @transform_12, window_bounds = array<i64: 1, 384>}, {transform_indices = @transform_13, window_bounds = array<i64: 4, 384>}, {transform_indices = @transform_14, window_bounds = array<i64: 4, 256>}]} {
    %c0 = arith.constant 0 : index
    %c0_0 = arith.constant 0 : index
    %0 = vector.load %arg1[%c0, %c0_0] : memref<4x768xbf16, #tpu.memory_space<vmem>>, vector<4x768xbf16>
    %c0_1 = arith.constant 0 : index
    %c0_2 = arith.constant 0 : index
    %1 = vector.load %arg2[%c0_1, %c0_2] : memref<768x768xbf16, #tpu.memory_space<vmem>>, vector<768x768xbf16>
    %cst = arith.constant dense<0.000000e+00> : vector<4x768xf32>
    %2 = tpu.matmul %0, %1, %cst {dimension_numbers = #tpu.dot_dimension_numbers<[1], [0], [0], [1], [0, 0, 1, 1], [], []>} : vector<4x768xbf16>, vector<768x768xbf16>, vector<4x768xf32> -> vector<4x768xf32>
    %3 = arith.truncf %2 : vector<4x768xf32> to vector<4x768xbf16>
    %c0_3 = arith.constant 0 : index
    %c0_4 = arith.constant 0 : index
    %4 = vector.load %arg3[%c0_3, %c0_4] : memref<768x512xbf16, #tpu.memory_space<vmem>>, vector<768x512xbf16>
    %cst_5 = arith.constant dense<0.000000e+00> : vector<4x512xf32>
    %5 = tpu.matmul %3, %4, %cst_5 {dimension_numbers = #tpu.dot_dimension_numbers<[1], [0], [0], [1], [0, 0, 1, 1], [], []>} : vector<4x768xbf16>, vector<768x512xbf16>, vector<4x512xf32> -> vector<4x512xf32>
    %6 = arith.mulf %5, %5 : vector<4x512xf32>
    %cst_6 = arith.constant dense<0.000000e+00> : vector<4xf32>
    %7 = vector.multi_reduction <add>, %6, %cst_6 [1] : vector<4x512xf32> to vector<4xf32>
    %8 = vector.shape_cast %7 : vector<4xf32> to vector<4x1xf32>
    %cst_7 = arith.constant 1.000000e-24 : f32
    %9 = vector.broadcast %cst_7 : f32 to vector<4x1xf32>
    %10 = arith.maximumf %8, %9 : vector<4x1xf32>
    %11 = math.rsqrt %10 : vector<4x1xf32>
    %12 = vector.broadcast %11 : vector<4x1xf32> to vector<4x512xf32>
    %13 = arith.mulf %5, %12 : vector<4x512xf32>
    %14 = arith.truncf %13 : vector<4x512xf32> to vector<4x512xbf16>
    %c0_8 = arith.constant 0 : index
    %c0_9 = arith.constant 0 : index
    %15 = vector.load %arg4[%c0_8, %c0_9] : memref<512x384xbf16, #tpu.memory_space<vmem>>, vector<512x384xbf16>
    %cst_10 = arith.constant dense<0.000000e+00> : vector<4x384xf32>
    %16 = tpu.matmul %14, %15, %cst_10 {dimension_numbers = #tpu.dot_dimension_numbers<[1], [0], [0], [1], [0, 0, 1, 1], [], []>} : vector<4x512xbf16>, vector<512x384xbf16>, vector<4x384xf32> -> vector<4x384xf32>
    %c0_11 = arith.constant 0 : index
    %c0_12 = arith.constant 0 : index
    %17 = vector.load %arg5[%c0_11, %c0_12] : memref<1x768xf32, #tpu.memory_space<vmem>>, vector<1x768xf32>
    %c0_13 = arith.constant 0 : index
    %c0_14 = arith.constant 0 : index
    %18 = vector.load %arg6[%c0_13, %c0_14] : memref<1x768xf32, #tpu.memory_space<vmem>>, vector<1x768xf32>
    %cst_15 = arith.constant dense<0.000000e+00> : vector<4xf32>
    %19 = vector.multi_reduction <add>, %2, %cst_15 [1] : vector<4x768xf32> to vector<4xf32>
    %20 = vector.shape_cast %19 : vector<4xf32> to vector<4x1xf32>
    %cst_16 = arith.constant 7.680000e+02 : f32
    %21 = vector.broadcast %cst_16 : f32 to vector<4x1xf32>
    %22 = arith.divf %20, %21 : vector<4x1xf32>
    %23 = vector.broadcast %22 : vector<4x1xf32> to vector<4x768xf32>
    %24 = arith.subf %2, %23 : vector<4x768xf32>
    %25 = arith.mulf %24, %24 : vector<4x768xf32>
    %cst_17 = arith.constant dense<0.000000e+00> : vector<4xf32>
    %26 = vector.multi_reduction <add>, %25, %cst_17 [1] : vector<4x768xf32> to vector<4xf32>
    %27 = vector.shape_cast %26 : vector<4xf32> to vector<4x1xf32>
    %cst_18 = arith.constant 7.680000e+02 : f32
    %28 = vector.broadcast %cst_18 : f32 to vector<4x1xf32>
    %29 = arith.divf %27, %28 : vector<4x1xf32>
    %cst_19 = arith.constant 9.99999974E-6 : f32
    %30 = vector.broadcast %cst_19 : f32 to vector<4x1xf32>
    %31 = arith.addf %29, %30 : vector<4x1xf32>
    %32 = math.rsqrt %31 : vector<4x1xf32>
    %33 = vector.broadcast %32 : vector<4x1xf32> to vector<4x768xf32>
    %34 = arith.mulf %24, %33 : vector<4x768xf32>
    %35 = vector.broadcast %17 : vector<1x768xf32> to vector<4x768xf32>
    %36 = arith.mulf %34, %35 : vector<4x768xf32>
    %37 = vector.broadcast %18 : vector<1x768xf32> to vector<4x768xf32>
    %38 = arith.addf %36, %37 : vector<4x768xf32>
    %39 = arith.truncf %38 : vector<4x768xf32> to vector<4x768xbf16>
    %c0_20 = arith.constant 0 : index
    %c0_21 = arith.constant 0 : index
    %40 = vector.load %arg7[%c0_20, %c0_21] : memref<768x384xbf16, #tpu.memory_space<vmem>>, vector<768x384xbf16>
    %cst_22 = arith.constant dense<0.000000e+00> : vector<4x384xf32>
    %41 = tpu.matmul %39, %40, %cst_22 {dimension_numbers = #tpu.dot_dimension_numbers<[1], [0], [0], [1], [0, 0, 1, 1], [], []>} : vector<4x768xbf16>, vector<768x384xbf16>, vector<4x384xf32> -> vector<4x384xf32>
    %c0_23 = arith.constant 0 : index
    %c0_24 = arith.constant 0 : index
    %42 = vector.load %arg8[%c0_23, %c0_24] : memref<1x384xf32, #tpu.memory_space<vmem>>, vector<1x384xf32>
    %43 = vector.broadcast %42 : vector<1x384xf32> to vector<4x384xf32>
    %44 = arith.addf %41, %43 : vector<4x384xf32>
    %45 = arith.addf %16, %44 : vector<4x384xf32>
    %c0_25 = arith.constant 0 : index
    %c0_26 = arith.constant 0 : index
    %46 = vector.load %arg14[%c0_25, %c0_26] : memref<4x384xf32, #tpu.memory_space<vmem>>, vector<4x384xf32>
    tpu.vector_store %arg14[%c0_25, %c0_26], %45 {strides = array<i32>} : memref<4x384xf32, #tpu.memory_space<vmem>>, vector<4x384xf32>,
    %c0_27 = arith.constant 0 : index
    %c0_28 = arith.constant 0 : index
    %47 = vector.load %arg13[%c0_27, %c0_28] : memref<1x384xf32, #tpu.memory_space<vmem>>, vector<1x384xf32>
    %cst_29 = arith.constant dense<0.000000e+00> : vector<4xf32>
    %48 = vector.multi_reduction <add>, %45, %cst_29 [1] : vector<4x384xf32> to vector<4xf32>
    %49 = vector.shape_cast %48 : vector<4xf32> to vector<4x1xf32>
    %cst_30 = arith.constant 0.00320512825 : f32
    %50 = vector.broadcast %cst_30 : f32 to vector<4x1xf32>
    %51 = arith.mulf %49, %50 : vector<4x1xf32>
    %52 = vector.broadcast %51 : vector<4x1xf32> to vector<4x384xf32>
    %53 = arith.subf %45, %52 : vector<4x384xf32>
    %54 = arith.mulf %53, %53 : vector<4x384xf32>
    %55 = vector.broadcast %47 : vector<1x384xf32> to vector<4x384xf32>
    %56 = arith.mulf %54, %55 : vector<4x384xf32>
    %cst_31 = arith.constant dense<0.000000e+00> : vector<4xf32>
    %57 = vector.multi_reduction <add>, %56, %cst_31 [1] : vector<4x384xf32> to vector<4xf32>
    %58 = vector.shape_cast %57 : vector<4xf32> to vector<4x1xf32>
    %cst_32 = arith.constant 0.00320512825 : f32
    %59 = vector.broadcast %cst_32 : f32 to vector<4x1xf32>
    %60 = arith.mulf %58, %59 : vector<4x1xf32>
    %cst_33 = arith.constant 9.99999974E-6 : f32
    %61 = vector.broadcast %cst_33 : f32 to vector<4x1xf32>
    %62 = arith.addf %60, %61 : vector<4x1xf32>
    %63 = math.rsqrt %62 : vector<4x1xf32>
    %64 = vector.broadcast %63 : vector<4x1xf32> to vector<4x384xf32>
    %65 = arith.mulf %53, %64 : vector<4x384xf32>
    %c0_34 = arith.constant 0 : index
    %c0_35 = arith.constant 0 : index
    %66 = vector.load %arg9[%c0_34, %c0_35] : memref<1x384xf32, #tpu.memory_space<vmem>>, vector<1x384xf32>
    %67 = vector.broadcast %66 : vector<1x384xf32> to vector<4x384xf32>
    %68 = arith.mulf %65, %67 : vector<4x384xf32>
    %c0_36 = arith.constant 0 : index
    %c0_37 = arith.constant 0 : index
    %69 = vector.load %arg10[%c0_36, %c0_37] : memref<1x384xf32, #tpu.memory_space<vmem>>, vector<1x384xf32>
    %70 = vector.broadcast %69 : vector<1x384xf32> to vector<4x384xf32>
    %71 = arith.addf %68, %70 : vector<4x384xf32>
    %72 = arith.truncf %71 : vector<4x384xf32> to vector<4x384xbf16>
    %c0_38 = arith.constant 0 : index
    %c0_39 = arith.constant 0 : index
    %73 = vector.load %arg11[%c0_38, %c0_39] : memref<384x256xbf16, #tpu.memory_space<vmem>>, vector<384x256xbf16>
    %cst_40 = arith.constant dense<0.000000e+00> : vector<4x256xf32>
    %74 = tpu.matmul %72, %73, %cst_40 {dimension_numbers = #tpu.dot_dimension_numbers<[1], [0], [0], [1], [0, 0, 1, 1], [], []>} : vector<4x384xbf16>, vector<384x256xbf16>, vector<4x256xf32> -> vector<4x256xf32>
    %c0_41 = arith.constant 0 : index
    %c0_42 = arith.constant 0 : index
    %75 = vector.load %arg12[%c0_41, %c0_42] : memref<1x256xf32, #tpu.memory_space<vmem>>, vector<1x256xf32>
    %76 = vector.broadcast %75 : vector<1x256xf32> to vector<4x256xf32>
    %77 = arith.addf %74, %76 : vector<4x256xf32>
    %c0_43 = arith.constant 0 : index
    %c0_44 = arith.constant 0 : index
    %78 = vector.load %arg15[%c0_43, %c0_44] : memref<4x256xf32, #tpu.memory_space<vmem>>, vector<4x256xf32>
    tpu.vector_store %arg15[%c0_43, %c0_44], %77 {strides = array<i32>} : memref<4x256xf32, #tpu.memory_space<vmem>>, vector<4x256xf32>,
    return
  }
  func.func @transform_0(%arg0: i32) -> (i32, i32) {
    %c0_i32 = arith.constant 0 : i32
    %c0_i32_0 = arith.constant 0 : i32
    return %arg0, %c0_i32 : i32, i32
  }
  func.func @transform_1(%arg0: i32) -> (i32, i32) {
    %c0_i32 = arith.constant 0 : i32
    %c0_i32_0 = arith.constant 0 : i32
    %c0_i32_1 = arith.constant 0 : i32
    return %c0_i32, %c0_i32_0 : i32, i32
  }
  func.func @transform_2(%arg0: i32) -> (i32, i32) {
    %c0_i32 = arith.constant 0 : i32
    %c0_i32_0 = arith.constant 0 : i32
    %c0_i32_1 = arith.constant 0 : i32
    return %c0_i32, %c0_i32_0 : i32, i32
  }
  func.func @transform_3(%arg0: i32) -> (i32, i32) {
    %c0_i32 = arith.constant 0 : i32
    %c0_i32_0 = arith.constant 0 : i32
    %c0_i32_1 = arith.constant 0 : i32
    return %c0_i32, %c0_i32_0 : i32, i32
  }
  func.func @transform_4(%arg0: i32) -> (i32, i32) {
    %c0_i32 = arith.constant 0 : i32
    %c0_i32_0 = arith.constant 0 : i32
    %c0_i32_1 = arith.constant 0 : i32
    return %c0_i32, %c0_i32_0 : i32, i32
  }
  func.func @transform_5(%arg0: i32) -> (i32, i32) {
    %c0_i32 = arith.constant 0 : i32
    %c0_i32_0 = arith.constant 0 : i32
    %c0_i32_1 = arith.constant 0 : i32
    return %c0_i32, %c0_i32_0 : i32, i32
  }
  func.func @transform_6(%arg0: i32) -> (i32, i32) {
    %c0_i32 = arith.constant 0 : i32
    %c0_i32_0 = arith.constant 0 : i32
    %c0_i32_1 = arith.constant 0 : i32
    return %c0_i32, %c0_i32_0 : i32, i32
  }
  func.func @transform_7(%arg0: i32) -> (i32, i32) {
    %c0_i32 = arith.constant 0 : i32
    %c0_i32_0 = arith.constant 0 : i32
    %c0_i32_1 = arith.constant 0 : i32
    return %c0_i32, %c0_i32_0 : i32, i32
  }
  func.func @transform_8(%arg0: i32) -> (i32, i32) {
    %c0_i32 = arith.constant 0 : i32
    %c0_i32_0 = arith.constant 0 : i32
    %c0_i32_1 = arith.constant 0 : i32
    return %c0_i32, %c0_i32_0 : i32, i32
  }
  func.func @transform_9(%arg0: i32) -> (i32, i32) {
    %c0_i32 = arith.constant 0 : i32
    %c0_i32_0 = arith.constant 0 : i32
    %c0_i32_1 = arith.constant 0 : i32
    return %c0_i32, %c0_i32_0 : i32, i32
  }
  func.func @transform_10(%arg0: i32) -> (i32, i32) {
    %c0_i32 = arith.constant 0 : i32
    %c0_i32_0 = arith.constant 0 : i32
    %c0_i32_1 = arith.constant 0 : i32
    return %c0_i32, %c0_i32_0 : i32, i32
  }
  func.func @transform_11(%arg0: i32) -> (i32, i32) {
    %c0_i32 = arith.constant 0 : i32
    %c0_i32_0 = arith.constant 0 : i32
    %c0_i32_1 = arith.constant 0 : i32
    return %c0_i32, %c0_i32_0 : i32, i32
  }
  func.func @transform_12(%arg0: i32) -> (i32, i32) {
    %c0_i32 = arith.constant 0 : i32
    %c0_i32_0 = arith.constant 0 : i32
    %c0_i32_1 = arith.constant 0 : i32
    return %c0_i32, %c0_i32_0 : i32, i32
  }
  func.func @transform_13(%arg0: i32) -> (i32, i32) {
    %c0_i32 = arith.constant 0 : i32
    %c0_i32_0 = arith.constant 0 : i32
    return %arg0, %c0_i32 : i32, i32
  }
  func.func @transform_14(%arg0: i32) -> (i32, i32) {
    %c0_i32 = arith.constant 0 : i32
    %c0_i32_0 = arith.constant 0 : i32
    return %arg0, %c0_i32 : i32, i32
  }
}

</mosaic_0001>

<llo_original>
// kernel: css_cbm_forward.1
$region0: #{css_cbm_forward.1}
  #allocation0 [shape = 'u32[]', space=smem, size = 0x4, offset = 0x4, fixed_abs, tag = 'smem constant byte address 0x4 - core index']
  #allocation1 [shape = 'u32[144,128]{1,0:T(1,128)}', space=vmem, size = 0x12000, scoped, tag = 'internal scratch']
  %s0 = inlined_call_operand.vmem [shape: bf16[4,768], index: 0, kind: input, shape index: {}]
  %s1 = inlined_call_operand.vmem [shape: bf16[768,768], index: 1, kind: input, shape index: {}]
  %s2 = inlined_call_operand.hbm [shape: bf16[768,512], index: 2, kind: input, shape index: {}]
  %s3 = inlined_call_operand.hbm [shape: bf16[512,384], index: 3, kind: input, shape index: {}]
  %s4 = inlined_call_operand.vmem [shape: f32[1,768], index: 4, kind: input, shape index: {}]
  %s5 = inlined_call_operand.vmem [shape: f32[1,768], index: 5, kind: input, shape index: {}]
  %s6 = inlined_call_operand.hbm [shape: bf16[768,384], index: 6, kind: input, shape index: {}]
  %s7 = inlined_call_operand.vmem [shape: f32[1,384], index: 7, kind: input, shape index: {}]
  %s8 = inlined_call_operand.vmem [shape: f32[1,384], index: 8, kind: input, shape index: {}]
  %s9 = inlined_call_operand.vmem [shape: f32[1,384], index: 9, kind: input, shape index: {}]
  %s10 = inlined_call_operand.hbm [shape: bf16[384,256], index: 10, kind: input, shape index: {}]
  %s11 = inlined_call_operand.vmem [shape: f32[1,256], index: 11, kind: input, shape index: {}]
  %s12 = inlined_call_operand.vmem [shape: f32[1,384], index: 12, kind: input, shape index: {}]
  %s13 = inlined_call_operand.hbm [shape: f32[4,384], index: 13, kind: output, shape index: {0}]
  %s14 = inlined_call_operand.hbm [shape: f32[4,256], index: 14, kind: output, shape index: {1}]
  %15 = xla_tuple %s13, %s14
  %s16 = sld [smem:[#allocation0]]
  $region86: #{css_cbm_forward.1} parent=0
    _
  %s18 = ssub.s32 1, %s16
  %s19 = scalar_select 0, %s18, %s16
  $region1: #{css_cbm_forward.1} parent=0
    #allocation2 [shape = 'u8[786432]{0}', space=vmem, size = 0xc0000, scoped, tag = 'input window, operand 2, single buffered']
    #allocation3 [shape = 's32[1]{0}', space=sflag, size = 0x4, scoped, tag = 'scoped memory for css_cbm_forward.1']
    #allocation4 [shape = 's32[1]{0}', space=sflag, size = 0x4, scoped, tag = 'scoped memory for css_cbm_forward.1']
    #allocation5 [shape = 'u8[393216]{0}', space=vmem, size = 0x60000, scoped, tag = 'input window, operand 3, single buffered']
    #allocation6 [shape = 's32[1]{0}', space=sflag, size = 0x4, scoped, tag = 'scoped memory for css_cbm_forward.1']
    #allocation7 [shape = 'u8[589824]{0}', space=vmem, size = 0x90000, scoped, tag = 'input window, operand 6, single buffered']
    #allocation8 [shape = 'u8[196608]{0}', space=vmem, size = 0x30000, scoped, tag = 'input window, operand 10, single buffered']
    #allocation9 [shape = 's32[1]{0}', space=sflag, size = 0x4, scoped, tag = 'scoped memory for css_cbm_forward.1']
    #allocation10 [shape = 'u8[6144]{0}', space=vmem, size = 0x1800, scoped, tag = 'output window, operand 0, single buffered']
    #allocation11 [shape = 'u8[4096]{0}', space=vmem, size = 0x1000, scoped, tag = 'output window, operand 1, single buffered']
    #allocation12 [shape = 's32[1]{0}', space=sflag, size = 0x4, scoped, tag = 'scoped memory for css_cbm_forward.1']
    %20 = vsyncpa [#allocation3], 0
    %21 = vsyncpa [#allocation6], 0
    %22 = vsyncpa [#allocation9], 0
    %23 = vsyncpa [#allocation4], 0
    %24 = vsyncpa [#allocation12], 0
    // Predicated region
    $region2: #{css_cbm_forward.1} parent=1 // pred_check
      _
    $region3: #{css_cbm_forward.1} parent=1 // pred_check_branch
      %26 = sbr.rel (0) target = $region5
    $region4: #{css_cbm_forward.1} parent=1 // pred_region
      _
    $region5: #{css_cbm_forward.1} parent=1 // pred_fallthru
      _
    // Predicated region
    $region6: #{css_cbm_forward.1} parent=1 // pred_check
      _
    $region7: #{css_cbm_forward.1} parent=1 // pred_check_branch
      %28 = sbr.rel (0) target = $region9
    $region8: #{css_cbm_forward.1} parent=1 // pred_region
      _
    $region9: #{css_cbm_forward.1} parent=1 // pred_fallthru
      _
    // Predicated region
    $region10: #{css_cbm_forward.1} parent=1 // pred_check
      _
    $region11: #{css_cbm_forward.1} parent=1 // pred_check_branch
      %30 = sbr.rel (0) target = $region13
    $region12: #{css_cbm_forward.1} parent=1 // pred_region
      %s32 = ssub.s32 24576, 24576
      %33 = vsyncadd [#allocation3], %s32
      %s34 = sshll.u32 [#allocation2], 4
      %s35 = int_to_ptr.vmem [resolvable:$true] %s34
      %40 = dma.hbm_to_vmem [thread:$0]  %s2, 24576, %s35, [#allocation3], 256, 256, 16
    $region13: #{css_cbm_forward.1} parent=1 // pred_fallthru
      _
    // Predicated region
    $region14: #{css_cbm_forward.1} parent=1 // pred_check
      _
    $region15: #{css_cbm_forward.1} parent=1 // pred_check_branch
      %42 = sbr.rel (0) target = $region17
    $region16: #{css_cbm_forward.1} parent=1 // pred_region
      %s44 = ssub.s32 12288, 12288
      %45 = vsyncadd [#allocation6], %s44
      %s46 = sshll.u32 [#allocation5], 4
      %s47 = int_to_ptr.vmem [resolvable:$true] %s46
      %52 = dma.hbm_to_vmem [thread:$0]  %s3, 12288, %s47, [#allocation6], 192, 192, 12
    $region17: #{css_cbm_forward.1} parent=1 // pred_fallthru
      _
    // Predicated region
    $region18: #{css_cbm_forward.1} parent=1 // pred_check
      _
    $region19: #{css_cbm_forward.1} parent=1 // pred_check_branch
      %54 = sbr.rel (0) target = $region21
    $region20: #{css_cbm_forward.1} parent=1 // pred_region
      _
    $region21: #{css_cbm_forward.1} parent=1 // pred_fallthru
      _
    // Predicated region
    $region22: #{css_cbm_forward.1} parent=1 // pred_check
      _
    $region23: #{css_cbm_forward.1} parent=1 // pred_check_branch
      %56 = sbr.rel (0) target = $region25
    $region24: #{css_cbm_forward.1} parent=1 // pred_region
      _
    $region25: #{css_cbm_forward.1} parent=1 // pred_fallthru
      _
    // Predicated region
    $region26: #{css_cbm_forward.1} parent=1 // pred_check
      _
    $region27: #{css_cbm_forward.1} parent=1 // pred_check_branch
      %58 = sbr.rel (0) target = $region29
    $region28: #{css_cbm_forward.1} parent=1 // pred_region
      %s60 = ssub.s32 18432, 18432
      %61 = vsyncadd [#allocation6], %s60
      %s62 = sshll.u32 [#allocation7], 4
      %s63 = int_to_ptr.vmem [resolvable:$true] %s62
      %68 = dma.hbm_to_vmem [thread:$0]  %s6, 18432, %s63, [#allocation6], 192, 192, 12
    $region29: #{css_cbm_forward.1} parent=1 // pred_fallthru
      _
    // Predicated region
    $region30: #{css_cbm_forward.1} parent=1 // pred_check
      _
    $region31: #{css_cbm_forward.1} parent=1 // pred_check_branch
      %70 = sbr.rel (0) target = $region33
    $region32: #{css_cbm_forward.1} parent=1 // pred_region
      _
    $region33: #{css_cbm_forward.1} parent=1 // pred_fallthru
      _
    // Predicated region
    $region34: #{css_cbm_forward.1} parent=1 // pred_check
      _
    $region35: #{css_cbm_forward.1} parent=1 // pred_check_branch
      %72 = sbr.rel (0) target = $region37
    $region36: #{css_cbm_forward.1} parent=1 // pred_region
      _
    $region37: #{css_cbm_forward.1} parent=1 // pred_fallthru
      _
    // Predicated region
    $region38: #{css_cbm_forward.1} parent=1 // pred_check
      _
    $region39: #{css_cbm_forward.1} parent=1 // pred_check_branch
      %74 = sbr.rel (0) target = $region41
    $region40: #{css_cbm_forward.1} parent=1 // pred_region
      _
    $region41: #{css_cbm_forward.1} parent=1 // pred_fallthru
      _
    // Predicated region
    $region42: #{css_cbm_forward.1} parent=1 // pred_check
      _
    $region43: #{css_cbm_forward.1} parent=1 // pred_check_branch
      %76 = sbr.rel (0) target = $region45
    $region44: #{css_cbm_forward.1} parent=1 // pred_region
      %s78 = ssub.s32 6144, 6144
      %79 = vsyncadd [#allocation9], %s78
      %s80 = sshll.u32 [#allocation8], 4
      %s81 = int_to_ptr.vmem [resolvable:$true] %s80
      %86 = dma.hbm_to_vmem [thread:$0]  %s10, 6144, %s81, [#allocation9], 128, 128, 8
    $region45: #{css_cbm_forward.1} parent=1 // pred_fallthru
      _
    // Predicated region
    $region46: #{css_cbm_forward.1} parent=1 // pred_check
      _
    $region47: #{css_cbm_forward.1} parent=1 // pred_check_branch
      %88 = sbr.rel (0) target = $region49
    $region48: #{css_cbm_forward.1} parent=1 // pred_region
      _
    $region49: #{css_cbm_forward.1} parent=1 // pred_fallthru
      _
    // Predicated region
    $region50: #{css_cbm_forward.1} parent=1 // pred_check
      _
    $region51: #{css_cbm_forward.1} parent=1 // pred_check_branch
      %90 = sbr.rel (0) target = $region53
    $region52: #{css_cbm_forward.1} parent=1 // pred_region
      _
    $region53: #{css_cbm_forward.1} parent=1 // pred_fallthru
      _
    // Predicated region
    $region54: #{css_cbm_forward.1} parent=1 // pred_check
      _
    $region55: #{css_cbm_forward.1} parent=1 // pred_check_branch
      %92 = sbr.rel (0) target = $region57
    $region56: #{css_cbm_forward.1} parent=1 // pred_region
      %93 = dma.done [#allocation3], 24576
    $region57: #{css_cbm_forward.1} parent=1 // pred_fallthru
      _
    // Predicated region
    $region58: #{css_cbm_forward.1} parent=1 // pred_check
      _
    $region59: #{css_cbm_forward.1} parent=1 // pred_check_branch
      %95 = sbr.rel (0) target = $region61
    $region60: #{css_cbm_forward.1} parent=1 // pred_region
      %96 = dma.done [#allocation6], 12288
    $region61: #{css_cbm_forward.1} parent=1 // pred_fallthru
      _
    // Predicated region
    $region62: #{css_cbm_forward.1} parent=1 // pred_check
      _
    $region63: #{css_cbm_forward.1} parent=1 // pred_check_branch
      %98 = sbr.rel (0) target = $region65
    $region64: #{css_cbm_forward.1} parent=1 // pred_region
      %99 = dma.done [#allocation6], 18432
    $region65: #{css_cbm_forward.1} parent=1 // pred_fallthru
      _
    // Predicated region
    $region66: #{css_cbm_forward.1} parent=1 // pred_check
      _
    $region67: #{css_cbm_forward.1} parent=1 // pred_check_branch
      %101 = sbr.rel (0) target = $region69
    $region68: #{css_cbm_forward.1} parent=1 // pred_region
      %102 = dma.done [#allocation9], 6144
    $region69: #{css_cbm_forward.1} parent=1 // pred_fallthru
      _
    %v104 = vld [vmem:[%s0] sm:$0xff]
    %v105 = vld [vmem:[%s0 + $0x8] sm:$0xf]
    %v106 = vld [vmem:[%s1] sm:$0xff]
    %v107 = vld [vmem:[%s1 + $0x8] sm:$0xff]
    %v108 = vld [vmem:[%s1 + $0x10] sm:$0xff]
    %v109 = vld [vmem:[%s1 + $0x18] sm:$0xff]
    %v110 = vld [vmem:[%s1 + $0x20] sm:$0xff]
    %v111 = vld [vmem:[%s1 + $0x28] sm:$0xff]
    %v112 = vld [vmem:[%s1 + $0x30] sm:$0xff]
    %v113 = vld [vmem:[%s1 + $0x38] sm:$0xff]
    %v114 = vld [vmem:[%s1 + $0x40] sm:$0xff]
    %v115 = vld [vmem:[%s1 + $0x48] sm:$0xff]
    %v116 = vld [vmem:[%s1 + $0x50] sm:$0xff]
    %v117 = vld [vmem:[%s1 + $0x58] sm:$0xff]
    %v118 = vld [vmem:[%s1 + $0x60] sm:$0xff]
    %v119 = vld [vmem:[%s1 + $0x68] sm:$0xff]
    %v120 = vld [vmem:[%s1 + $0x70] sm:$0xff]
    %v121 = vld [vmem:[%s1 + $0x78] sm:$0xff]
    %v122 = vld [vmem:[%s1 + $0x80] sm:$0xff]
    %v123 = vld [vmem:[%s1 + $0x88] sm:$0xff]
    %v124 = vld [vmem:[%s1 + $0x90] sm:$0xff]
    %v125 = vld [vmem:[%s1 + $0x98] sm:$0xff]
    %v126 = vld [vmem:[%s1 + $0xa0] sm:$0xff]
    %v127 = vld [vmem:[%s1 + $0xa8] sm:$0xff]
    %v128 = vld [vmem:[%s1 + $0xb0] sm:$0xff]
    %v129 = vld [vmem:[%s1 + $0xb8] sm:$0xff]
    %v130 = vld [vmem:[%s1 + $0xc0] sm:$0xff]
    %v131 = vld [vmem:[%s1 + $0xc8] sm:$0xff]
    %v132 = vld [vmem:[%s1 + $0xd0] sm:$0xff]
    %v133 = vld [vmem:[%s1 + $0xd8] sm:$0xff]
    %v134 = vld [vmem:[%s1 + $0xe0] sm:$0xff]
    %v135 = vld [vmem:[%s1 + $0xe8] sm:$0xff]
    %v136 = vld [vmem:[%s1 + $0xf0] sm:$0xff]
    %v137 = vld [vmem:[%s1 + $0xf8] sm:$0xff]
    %v138 = vld [vmem:[%s1 + $0x100] sm:$0xff]
    %v139 = vld [vmem:[%s1 + $0x108] sm:$0xff]
    %v140 = vld [vmem:[%s1 + $0x110] sm:$0xff]
    %v141 = vld [vmem:[%s1 + $0x118] sm:$0xff]
    %v142 = vld [vmem:[%s1 + $0x120] sm:$0xff]
    %v143 = vld [vmem:[%s1 + $0x128] sm:$0xff]
    %v144 = vld [vmem:[%s1 + $0x130] sm:$0xff]
    %v145 = vld [vmem:[%s1 + $0x138] sm:$0xff]
    %v146 = vld [vmem:[%s1 + $0x140] sm:$0xff]
    %v147 = vld [vmem:[%s1 + $0x148] sm:$0xff]
    %v148 = vld [vmem:[%s1 + $0x150] sm:$0xff]
    %v149 = vld [vmem:[%s1 + $0x158] sm:$0xff]
    %v150 = vld [vmem:[%s1 + $0x160] sm:$0xff]
    %v151 = vld [vmem:[%s1 + $0x168] sm:$0xff]
    %v152 = vld [vmem:[%s1 + $0x170] sm:$0xff]
    %v153 = vld [vmem:[%s1 + $0x178] sm:$0xff]
    %v154 = vld [vmem:[%s1 + $0x180] sm:$0xff]
    %v155 = vld [vmem:[%s1 + $0x188] sm:$0xff]
    %v156 = vld [vmem:[%s1 + $0x190] sm:$0xff]
    %v157 = vld [vmem:[%s1 + $0x198] sm:$0xff]
    %v158 = vld [vmem:[%s1 + $0x1a0] sm:$0xff]
    %v159 = vld [vmem:[%s1 + $0x1a8] sm:$0xff]
    %v160 = vld [vmem:[%s1 + $0x1b0] sm:$0xff]
    %v161 = vld [vmem:[%s1 + $0x1b8] sm:$0xff]
    %v162 = vld [vmem:[%s1 + $0x1c0] sm:$0xff]
    %v163 = vld [vmem:[%s1 + $0x1c8] sm:$0xff]
    %v164 = vld [vmem:[%s1 + $0x1d0] sm:$0xff]
    %v165 = vld [vmem:[%s1 + $0x1d8] sm:$0xff]
    %v166 = vld [vmem:[%s1 + $0x1e0] sm:$0xff]
    %v167 = vld [vmem:[%s1 + $0x1e8] sm:$0xff]
    %v168 = vld [vmem:[%s1 + $0x1f0] sm:$0xff]
    %v169 = vld [vmem:[%s1 + $0x1f8] sm:$0xff]
    %v170 = vld [vmem:[%s1 + $0x200] sm:$0xff]
    %v171 = vld [vmem:[%s1 + $0x208] sm:$0xff]
    %v172 = vld [vmem:[%s1 + $0x210] sm:$0xff]
    %v173 = vld [vmem:[%s1 + $0x218] sm:$0xff]
    %v174 = vld [vmem:[%s1 + $0x220] sm:$0xff]
    %v175 = vld [vmem:[%s1 + $0x228] sm:$0xff]
    %v176 = vld [vmem:[%s1 + $0x230] sm:$0xff]
    %v177 = vld [vmem:[%s1 + $0x238] sm:$0xff]
    %v178 = vld [vmem:[%s1 + $0x240] sm:$0xff]
    %v179 = vld [vmem:[%s1 + $0x248] sm:$0xff]
    %v180 = vld [vmem:[%s1 + $0x250] sm:$0xff]
    %v181 = vld [vmem:[%s1 + $0x258] sm:$0xff]
    %v182 = vld [vmem:[%s1 + $0x260] sm:$0xff]
    %v183 = vld [vmem:[%s1 + $0x268] sm:$0xff]
    %v184 = vld [vmem:[%s1 + $0x270] sm:$0xff]
    %v185 = vld [vmem:[%s1 + $0x278] sm:$0xff]
    %v186 = vld [vmem:[%s1 + $0x280] sm:$0xff]
    %v187 = vld [vmem:[%s1 + $0x288] sm:$0xff]
    %v188 = vld [vmem:[%s1 + $0x290] sm:$0xff]
    %v189 = vld [vmem:[%s1 + $0x298] sm:$0xff]
    %v190 = vld [vmem:[%s1 + $0x2a0] sm:$0xff]
    %v191 = vld [vmem:[%s1 + $0x2a8] sm:$0xff]
    %v192 = vld [vmem:[%s1 + $0x2b0] sm:$0xff]
    %v193 = vld [vmem:[%s1 + $0x2b8] sm:$0xff]
    %v194 = vld [vmem:[%s1 + $0x2c0] sm:$0xff]
    %v195 = vld [vmem:[%s1 + $0x2c8] sm:$0xff]
    %v196 = vld [vmem:[%s1 + $0x2d0] sm:$0xff]
    %v197 = vld [vmem:[%s1 + $0x2d8] sm:$0xff]
    %v198 = vld [vmem:[%s1 + $0x2e0] sm:$0xff]
    %v199 = vld [vmem:[%s1 + $0x2e8] sm:$0xff]
    %v200 = vld [vmem:[%s1 + $0x2f0] sm:$0xff]
    %v201 = vld [vmem:[%s1 + $0x2f8] sm:$0xff]
    %v202 = vld [vmem:[%s1 + $0x300] sm:$0xff]
    %v203 = vld [vmem:[%s1 + $0x308] sm:$0xff]
    %v204 = vld [vmem:[%s1 + $0x310] sm:$0xff]
    %v205 = vld [vmem:[%s1 + $0x318] sm:$0xff]
    %v206 = vld [vmem:[%s1 + $0x320] sm:$0xff]
    %v207 = vld [vmem:[%s1 + $0x328] sm:$0xff]
    %v208 = vld [vmem:[%s1 + $0x330] sm:$0xff]
    %v209 = vld [vmem:[%s1 + $0x338] sm:$0xff]
    %v210 = vld [vmem:[%s1 + $0x340] sm:$0xff]
    %v211 = vld [vmem:[%s1 + $0x348] sm:$0xff]
    %v212 = vld [vmem:[%s1 + $0x350] sm:$0xff]
    %v213 = vld [vmem:[%s1 + $0x358] sm:$0xff]
    %v214 = vld [vmem:[%s1 + $0x360] sm:$0xff]
    %v215 = vld [vmem:[%s1 + $0x368] sm:$0xff]
    %v216 = vld [vmem:[%s1 + $0x370] sm:$0xff]
    %v217 = vld [vmem:[%s1 + $0x378] sm:$0xff]
    %v218 = vld [vmem:[%s1 + $0x380] sm:$0xff]
    %v219 = vld [vmem:[%s1 + $0x388] sm:$0xff]
    %v220 = vld [vmem:[%s1 + $0x390] sm:$0xff]
    %v221 = vld [vmem:[%s1 + $0x398] sm:$0xff]
    %v222 = vld [vmem:[%s1 + $0x3a0] sm:$0xff]
    %v223 = vld [vmem:[%s1 + $0x3a8] sm:$0xff]
    %v224 = vld [vmem:[%s1 + $0x3b0] sm:$0xff]
    %v225 = vld [vmem:[%s1 + $0x3b8] sm:$0xff]
    %v226 = vld [vmem:[%s1 + $0x3c0] sm:$0xff]
    %v227 = vld [vmem:[%s1 + $0x3c8] sm:$0xff]
    %v228 = vld [vmem:[%s1 + $0x3d0] sm:$0xff]
    %v229 = vld [vmem:[%s1 + $0x3d8] sm:$0xff]
    %v230 = vld [vmem:[%s1 + $0x3e0] sm:$0xff]
    %v231 = vld [vmem:[%s1 + $0x3e8] sm:$0xff]
    %v232 = vld [vmem:[%s1 + $0x3f0] sm:$0xff]
    %v233 = vld [vmem:[%s1 + $0x3f8] sm:$0xff]
    %v234 = vld [vmem:[%s1 + $0x400] sm:$0xff]
    %v235 = vld [vmem:[%s1 + $0x408] sm:$0xff]
    %v236 = vld [vmem:[%s1 + $0x410] sm:$0xff]
    %v237 = vld [vmem:[%s1 + $0x418] sm:$0xff]
    %v238 = vld [vmem:[%s1 + $0x420] sm:$0xff]
    %v239 = vld [vmem:[%s1 + $0x428] sm:$0xff]
    %v240 = vld [vmem:[%s1 + $0x430] sm:$0xff]
    %v241 = vld [vmem:[%s1 + $0x438] sm:$0xff]
    %v242 = vld [vmem:[%s1 + $0x440] sm:$0xff]
    %v243 = vld [vmem:[%s1 + $0x448] sm:$0xff]
    %v244 = vld [vmem:[%s1 + $0x450] sm:$0xff]
    %v245 = vld [vmem:[%s1 + $0x458] sm:$0xff]
    %v246 = vld [vmem:[%s1 + $0x460] sm:$0xff]
    %v247 = vld [vmem:[%s1 + $0x468] sm:$0xff]
    %v248 = vld [vmem:[%s1 + $0x470] sm:$0xff]
    %v249 = vld [vmem:[%s1 + $0x478] sm:$0xff]
    %v250 = vld [vmem:[%s1 + $0x480] sm:$0xff]
    %v251 = vld [vmem:[%s1 + $0x488] sm:$0xff]
    %v252 = vld [vmem:[%s1 + $0x490] sm:$0xff]
    %v253 = vld [vmem:[%s1 + $0x498] sm:$0xff]
    %v254 = vld [vmem:[%s1 + $0x4a0] sm:$0xff]
    %v255 = vld [vmem:[%s1 + $0x4a8] sm:$0xff]
    %v256 = vld [vmem:[%s1 + $0x4b0] sm:$0xff]
    %v257 = vld [vmem:[%s1 + $0x4b8] sm:$0xff]
    %v258 = vld [vmem:[%s1 + $0x4c0] sm:$0xff]
    %v259 = vld [vmem:[%s1 + $0x4c8] sm:$0xff]
    %v260 = vld [vmem:[%s1 + $0x4d0] sm:$0xff]
    %v261 = vld [vmem:[%s1 + $0x4d8] sm:$0xff]
    %v262 = vld [vmem:[%s1 + $0x4e0] sm:$0xff]
    %v263 = vld [vmem:[%s1 + $0x4e8] sm:$0xff]
    %v264 = vld [vmem:[%s1 + $0x4f0] sm:$0xff]
    %v265 = vld [vmem:[%s1 + $0x4f8] sm:$0xff]
    %v266 = vld [vmem:[%s1 + $0x500] sm:$0xff]
    %v267 = vld [vmem:[%s1 + $0x508] sm:$0xff]
    %v268 = vld [vmem:[%s1 + $0x510] sm:$0xff]
    %v269 = vld [vmem:[%s1 + $0x518] sm:$0xff]
    %v270 = vld [vmem:[%s1 + $0x520] sm:$0xff]
    %v271 = vld [vmem:[%s1 + $0x528] sm:$0xff]
    %v272 = vld [vmem:[%s1 + $0x530] sm:$0xff]
    %v273 = vld [vmem:[%s1 + $0x538] sm:$0xff]
    %v274 = vld [vmem:[%s1 + $0x540] sm:$0xff]
    %v275 = vld [vmem:[%s1 + $0x548] sm:$0xff]
    %v276 = vld [vmem:[%s1 + $0x550] sm:$0xff]
    %v277 = vld [vmem:[%s1 + $0x558] sm:$0xff]
    %v278 = vld [vmem:[%s1 + $0x560] sm:$0xff]
    %v279 = vld [vmem:[%s1 + $0x568] sm:$0xff]
    %v280 = vld [vmem:[%s1 + $0x570] sm:$0xff]
    %v281 = vld [vmem:[%s1 + $0x578] sm:$0xff]
    %v282 = vld [vmem:[%s1 + $0x580] sm:$0xff]
    %v283 = vld [vmem:[%s1 + $0x588] sm:$0xff]
    %v284 = vld [vmem:[%s1 + $0x590] sm:$0xff]
    %v285 = vld [vmem:[%s1 + $0x598] sm:$0xff]
    %v286 = vld [vmem:[%s1 + $0x5a0] sm:$0xff]
    %v287 = vld [vmem:[%s1 + $0x5a8] sm:$0xff]
    %v288 = vld [vmem:[%s1 + $0x5b0] sm:$0xff]
    %v289 = vld [vmem:[%s1 + $0x5b8] sm:$0xff]
    %v290 = vld [vmem:[%s1 + $0x5c0] sm:$0xff]
    %v291 = vld [vmem:[%s1 + $0x5c8] sm:$0xff]
    %v292 = vld [vmem:[%s1 + $0x5d0] sm:$0xff]
    %v293 = vld [vmem:[%s1 + $0x5d8] sm:$0xff]
    %v294 = vld [vmem:[%s1 + $0x5e0] sm:$0xff]
    %v295 = vld [vmem:[%s1 + $0x5e8] sm:$0xff]
    %v296 = vld [vmem:[%s1 + $0x5f0] sm:$0xff]
    %v297 = vld [vmem:[%s1 + $0x5f8] sm:$0xff]
    %v298 = vld [vmem:[%s1 + $0x600] sm:$0xff]
    %v299 = vld [vmem:[%s1 + $0x608] sm:$0xff]
    %v300 = vld [vmem:[%s1 + $0x610] sm:$0xff]
    %v301 = vld [vmem:[%s1 + $0x618] sm:$0xff]
    %v302 = vld [vmem:[%s1 + $0x620] sm:$0xff]
    %v303 = vld [vmem:[%s1 + $0x628] sm:$0xff]
    %v304 = vld [vmem:[%s1 + $0x630] sm:$0xff]
    %v305 = vld [vmem:[%s1 + $0x638] sm:$0xff]
    %v306 = vld [vmem:[%s1 + $0x640] sm:$0xff]
    %v307 = vld [vmem:[%s1 + $0x648] sm:$0xff]
    %v308 = vld [vmem:[%s1 + $0x650] sm:$0xff]
    %v309 = vld [vmem:[%s1 + $0x658] sm:$0xff]
    %v310 = vld [vmem:[%s1 + $0x660] sm:$0xff]
    %v311 = vld [vmem:[%s1 + $0x668] sm:$0xff]
    %v312 = vld [vmem:[%s1 + $0x670] sm:$0xff]
    %v313 = vld [vmem:[%s1 + $0x678] sm:$0xff]
    %v314 = vld [vmem:[%s1 + $0x680] sm:$0xff]
    %v315 = vld [vmem:[%s1 + $0x688] sm:$0xff]
    %v316 = vld [vmem:[%s1 + $0x690] sm:$0xff]
    %v317 = vld [vmem:[%s1 + $0x698] sm:$0xff]
    %v318 = vld [vmem:[%s1 + $0x6a0] sm:$0xff]
    %v319 = vld [vmem:[%s1 + $0x6a8] sm:$0xff]
    %v320 = vld [vmem:[%s1 + $0x6b0] sm:$0xff]
    %v321 = vld [vmem:[%s1 + $0x6b8] sm:$0xff]
    %v322 = vld [vmem:[%s1 + $0x6c0] sm:$0xff]
    %v323 = vld [vmem:[%s1 + $0x6c8] sm:$0xff]
    %v324 = vld [vmem:[%s1 + $0x6d0] sm:$0xff]
    %v325 = vld [vmem:[%s1 + $0x6d8] sm:$0xff]
    %v326 = vld [vmem:[%s1 + $0x6e0] sm:$0xff]
    %v327 = vld [vmem:[%s1 + $0x6e8] sm:$0xff]
    %v328 = vld [vmem:[%s1 + $0x6f0] sm:$0xff]
    %v329 = vld [vmem:[%s1 + $0x6f8] sm:$0xff]
    %v330 = vld [vmem:[%s1 + $0x700] sm:$0xff]
    %v331 = vld [vmem:[%s1 + $0x708] sm:$0xff]
    %v332 = vld [vmem:[%s1 + $0x710] sm:$0xff]
    %v333 = vld [vmem:[%s1 + $0x718] sm:$0xff]
    %v334 = vld [vmem:[%s1 + $0x720] sm:$0xff]
    %v335 = vld [vmem:[%s1 + $0x728] sm:$0xff]
    %v336 = vld [vmem:[%s1 + $0x730] sm:$0xff]
    %v337 = vld [vmem:[%s1 + $0x738] sm:$0xff]
    %v338 = vld [vmem:[%s1 + $0x740] sm:$0xff]
    %v339 = vld [vmem:[%s1 + $0x748] sm:$0xff]
    %v340 = vld [vmem:[%s1 + $0x750] sm:$0xff]
    %v341 = vld [vmem:[%s1 + $0x758] sm:$0xff]
    %v342 = vld [vmem:[%s1 + $0x760] sm:$0xff]
    %v343 = vld [vmem:[%s1 + $0x768] sm:$0xff]
    %v344 = vld [vmem:[%s1 + $0x770] sm:$0xff]
    %v345 = vld [vmem:[%s1 + $0x778] sm:$0xff]
    %v346 = vld [vmem:[%s1 + $0x780] sm:$0xff]
    %v347 = vld [vmem:[%s1 + $0x788] sm:$0xff]
    %v348 = vld [vmem:[%s1 + $0x790] sm:$0xff]
    %v349 = vld [vmem:[%s1 + $0x798] sm:$0xff]
    %v350 = vld [vmem:[%s1 + $0x7a0] sm:$0xff]
    %v351 = vld [vmem:[%s1 + $0x7a8] sm:$0xff]
    %v352 = vld [vmem:[%s1 + $0x7b0] sm:$0xff]
    %v353 = vld [vmem:[%s1 + $0x7b8] sm:$0xff]
    %v354 = vld [vmem:[%s1 + $0x7c0] sm:$0xff]
    %v355 = vld [vmem:[%s1 + $0x7c8] sm:$0xff]
    %v356 = vld [vmem:[%s1 + $0x7d0] sm:$0xff]
    %v357 = vld [vmem:[%s1 + $0x7d8] sm:$0xff]
    %v358 = vld [vmem:[%s1 + $0x7e0] sm:$0xff]
    %v359 = vld [vmem:[%s1 + $0x7e8] sm:$0xff]
    %v360 = vld [vmem:[%s1 + $0x7f0] sm:$0xff]
    %v361 = vld [vmem:[%s1 + $0x7f8] sm:$0xff]
    %v362 = vld [vmem:[%s1 + $0x800] sm:$0xff]
    %v363 = vld [vmem:[%s1 + $0x808] sm:$0xff]
    %v364 = vld [vmem:[%s1 + $0x810] sm:$0xff]
    %v365 = vld [vmem:[%s1 + $0x818] sm:$0xff]
    %v366 = vld [vmem:[%s1 + $0x820] sm:$0xff]
    %v367 = vld [vmem:[%s1 + $0x828] sm:$0xff]
    %v368 = vld [vmem:[%s1 + $0x830] sm:$0xff]
    %v369 = vld [vmem:[%s1 + $0x838] sm:$0xff]
    %v370 = vld [vmem:[%s1 + $0x840] sm:$0xff]
    %v371 = vld [vmem:[%s1 + $0x848] sm:$0xff]
    %v372 = vld [vmem:[%s1 + $0x850] sm:$0xff]
    %v373 = vld [vmem:[%s1 + $0x858] sm:$0xff]
    %v374 = vld [vmem:[%s1 + $0x860] sm:$0xff]
    %v375 = vld [vmem:[%s1 + $0x868] sm:$0xff]
    %v376 = vld [vmem:[%s1 + $0x870] sm:$0xff]
    %v377 = vld [vmem:[%s1 + $0x878] sm:$0xff]
    %v378 = vld [vmem:[%s1 + $0x880] sm:$0xff]
    %v379 = vld [vmem:[%s1 + $0x888] sm:$0xff]
    %v380 = vld [vmem:[%s1 + $0x890] sm:$0xff]
    %v381 = vld [vmem:[%s1 + $0x898] sm:$0xff]
    %v382 = vld [vmem:[%s1 + $0x8a0] sm:$0xff]
    %v383 = vld [vmem:[%s1 + $0x8a8] sm:$0xff]
    %v384 = vld [vmem:[%s1 + $0x8b0] sm:$0xff]
    %v385 = vld [vmem:[%s1 + $0x8b8] sm:$0xff]
    %v386 = vld [vmem:[%s1 + $0x8c0] sm:$0xff]
    %v387 = vld [vmem:[%s1 + $0x8c8] sm:$0xff]
    %v388 = vld [vmem:[%s1 + $0x8d0] sm:$0xff]
    %v389 = vld [vmem:[%s1 + $0x8d8] sm:$0xff]
    %v390 = vld [vmem:[%s1 + $0x8e0] sm:$0xff]
    %v391 = vld [vmem:[%s1 + $0x8e8] sm:$0xff]
    %v392 = vld [vmem:[%s1 + $0x8f0] sm:$0xff]
    %v393 = vld [vmem:[%s1 + $0x8f8] sm:$0xff]
    %v396 = vcombine.high %v104, %v104
    %v398 = vunpack.c.l.s4 1983009808
    %v399 = vunpack.c.0.s8 %v398
    %v400 = vlaneseq
    %v401 = vshrl.u32 %v400, 7
    %v402 = vsub.s32 %v399, %v401
    %v403 = vrot.slane %v104, %v402
    %v405 = vunpack.c.l.s4 1983009808
    %v406 = vunpack.c.0.s8 %v405
    %v407 = vlaneseq
    %v408 = vshrl.u32 %v407, 7
    %v409 = vsub.s32 %v406, %v408
    %v410 = vrot.slane %v396, %v409
    %v411 = vcombine.high %v403, %v403
    %v412 = vcombine.high %v410, %v410
    %v414 = vunpack.c.l.s4 1983009808
    %v415 = vunpack.c.0.s8 %v414
    %v416 = vlaneseq
    %v417 = vshrl.u32 %v416, 7
    %v418 = vsub.s32 %v415, %v417
    %v419 = vrot.slane %v105, %v418
    %v420 = vcombine.high %v419, %v419
    %v715 = vunpack.c.l.b16 %v106
    %v716 = vunpack.c.h.b16 %v106
    %v717 = vunpack.c.l.b16 %v107
    %v718 = vunpack.c.h.b16 %v107
    %v719 = vunpack.c.l.b16 %v108
    %v720 = vunpack.c.h.b16 %v108
    %v721 = vunpack.c.l.b16 %v109
    %v722 = vunpack.c.h.b16 %v109
    %v723 = vunpack.c.l.b16 %v110
    %v724 = vunpack.c.h.b16 %v110
    %v725 = vunpack.c.l.b16 %v111
    %v726 = vunpack.c.h.b16 %v111
    %v727 = vunpack.c.l.b16 %v112
    %v728 = vunpack.c.h.b16 %v112
    %v729 = vunpack.c.l.b16 %v113
    %v730 = vunpack.c.h.b16 %v113
    %v731 = vunpack.c.l.b16 %v114
    %v732 = vunpack.c.h.b16 %v114
    %v733 = vunpack.c.l.b16 %v115
    %v734 = vunpack.c.h.b16 %v115
    %v735 = vunpack.c.l.b16 %v116
    %v736 = vunpack.c.h.b16 %v116
    %v737 = vunpack.c.l.b16 %v117
    %v738 = vunpack.c.h.b16 %v117
    %v739 = vunpack.c.l.b16 %v118
    %v740 = vunpack.c.h.b16 %v118
    %v741 = vunpack.c.l.b16 %v119
    %v742 = vunpack.c.h.b16 %v119
    %v743 = vunpack.c.l.b16 %v120
    %v744 = vunpack.c.h.b16 %v120
    %v745 = vunpack.c.l.b16 %v121
    %v746 = vunpack.c.h.b16 %v121
    %v747 = vunpack.c.l.b16 %v122
    %v748 = vunpack.c.h.b16 %v122
    %v749 = vunpack.c.l.b16 %v123
    %v750 = vunpack.c.h.b16 %v123
    %v751 = vunpack.c.l.b16 %v124
    %v752 = vunpack.c.h.b16 %v124
    %v753 = vunpack.c.l.b16 %v125
    %v754 = vunpack.c.h.b16 %v125
    %v755 = vunpack.c.l.b16 %v126
    %v756 = vunpack.c.h.b16 %v126
    %v757 = vunpack.c.l.b16 %v127
    %v758 = vunpack.c.h.b16 %v127
    %v759 = vunpack.c.l.b16 %v128
    %v760 = vunpack.c.h.b16 %v128
    %v761 = vunpack.c.l.b16 %v129
    %v762 = vunpack.c.h.b16 %v129
    %v763 = vunpack.c.l.b16 %v130
    %v764 = vunpack.c.h.b16 %v130
    %v765 = vunpack.c.l.b16 %v131
    %v766 = vunpack.c.h.b16 %v131
    %v767 = vunpack.c.l.b16 %v132
    %v768 = vunpack.c.h.b16 %v132
    %v769 = vunpack.c.l.b16 %v133
    %v770 = vunpack.c.h.b16 %v133
    %v771 = vunpack.c.l.b16 %v134
    %v772 = vunpack.c.h.b16 %v134
    %v773 = vunpack.c.l.b16 %v135
    %v774 = vunpack.c.h.b16 %v135
    %v775 = vunpack.c.l.b16 %v136
    %v776 = vunpack.c.h.b16 %v136
    %v777 = vunpack.c.l.b16 %v137
    %v778 = vunpack.c.h.b16 %v137
    %v779 = vunpack.c.l.b16 %v138
    %v780 = vunpack.c.h.b16 %v138
    %v781 = vunpack.c.l.b16 %v139
    %v782 = vunpack.c.h.b16 %v139
    %v783 = vunpack.c.l.b16 %v140
    %v784 = vunpack.c.h.b16 %v140
    %v785 = vunpack.c.l.b16 %v141
    %v786 = vunpack.c.h.b16 %v141
    %v787 = vunpack.c.l.b16 %v142
    %v788 = vunpack.c.h.b16 %v142
    %v789 = vunpack.c.l.b16 %v143
    %v790 = vunpack.c.h.b16 %v143
    %v791 = vunpack.c.l.b16 %v144
    %v792 = vunpack.c.h.b16 %v144
    %v793 = vunpack.c.l.b16 %v145
    %v794 = vunpack.c.h.b16 %v145
    %v795 = vunpack.c.l.b16 %v146
    %v796 = vunpack.c.h.b16 %v146
    %v797 = vunpack.c.l.b16 %v147
    %v798 = vunpack.c.h.b16 %v147
    %v799 = vunpack.c.l.b16 %v148
    %v800 = vunpack.c.h.b16 %v148
    %v801 = vunpack.c.l.b16 %v149
    %v802 = vunpack.c.h.b16 %v149
    %v803 = vunpack.c.l.b16 %v150
    %v804 = vunpack.c.h.b16 %v150
    %v805 = vunpack.c.l.b16 %v151
    %v806 = vunpack.c.h.b16 %v151
    %v807 = vunpack.c.l.b16 %v152
    %v808 = vunpack.c.h.b16 %v152
    %v809 = vunpack.c.l.b16 %v153
    %v810 = vunpack.c.h.b16 %v153
    %v811 = vunpack.c.l.b16 %v154
    %v812 = vunpack.c.h.b16 %v154
    %v813 = vunpack.c.l.b16 %v155
    %v814 = vunpack.c.h.b16 %v155
    %v815 = vunpack.c.l.b16 %v156
    %v816 = vunpack.c.h.b16 %v156
    %v817 = vunpack.c.l.b16 %v157
    %v818 = vunpack.c.h.b16 %v157
    %v819 = vunpack.c.l.b16 %v158
    %v820 = vunpack.c.h.b16 %v158
    %v821 = vunpack.c.l.b16 %v159
    %v822 = vunpack.c.h.b16 %v159
    %v823 = vunpack.c.l.b16 %v160
    %v824 = vunpack.c.h.b16 %v160
    %v825 = vunpack.c.l.b16 %v161
    %v826 = vunpack.c.h.b16 %v161
    %v827 = vunpack.c.l.b16 %v162
    %v828 = vunpack.c.h.b16 %v162
    %v829 = vunpack.c.l.b16 %v163
    %v830 = vunpack.c.h.b16 %v163
    %v831 = vunpack.c.l.b16 %v164
    %v832 = vunpack.c.h.b16 %v164
    %v833 = vunpack.c.l.b16 %v165
    %v834 = vunpack.c.h.b16 %v165
    %v835 = vunpack.c.l.b16 %v166
    %v836 = vunpack.c.h.b16 %v166
    %v837 = vunpack.c.l.b16 %v167
    %v838 = vunpack.c.h.b16 %v167
    %v839 = vunpack.c.l.b16 %v168
    %v840 = vunpack.c.h.b16 %v168
    %v841 = vunpack.c.l.b16 %v169
    %v842 = vunpack.c.h.b16 %v169
    %v843 = vunpack.c.l.b16 %v170
    %v844 = vunpack.c.h.b16 %v170
    %v845 = vunpack.c.l.b16 %v171
    %v846 = vunpack.c.h.b16 %v171
    %v847 = vunpack.c.l.b16 %v172
    %v848 = vunpack.c.h.b16 %v172
    %v849 = vunpack.c.l.b16 %v173
    %v850 = vunpack.c.h.b16 %v173
    %v851 = vunpack.c.l.b16 %v174
    %v852 = vunpack.c.h.b16 %v174
    %v853 = vunpack.c.l.b16 %v175
    %v854 = vunpack.c.h.b16 %v175
    %v855 = vunpack.c.l.b16 %v176
    %v856 = vunpack.c.h.b16 %v176
    %v857 = vunpack.c.l.b16 %v177
    %v858 = vunpack.c.h.b16 %v177
    %v859 = vunpack.c.l.b16 %v178
    %v860 = vunpack.c.h.b16 %v178
    %v861 = vunpack.c.l.b16 %v179
    %v862 = vunpack.c.h.b16 %v179
    %v863 = vunpack.c.l.b16 %v180
    %v864 = vunpack.c.h.b16 %v180
    %v865 = vunpack.c.l.b16 %v181
    %v866 = vunpack.c.h.b16 %v181
    %v867 = vunpack.c.l.b16 %v182
    %v868 = vunpack.c.h.b16 %v182
    %v869 = vunpack.c.l.b16 %v183
    %v870 = vunpack.c.h.b16 %v183
    %v871 = vunpack.c.l.b16 %v184
    %v872 = vunpack.c.h.b16 %v184
    %v873 = vunpack.c.l.b16 %v185
    %v874 = vunpack.c.h.b16 %v185
    %v875 = vunpack.c.l.b16 %v186
    %v876 = vunpack.c.h.b16 %v186
    %v877 = vunpack.c.l.b16 %v187
    %v878 = vunpack.c.h.b16 %v187
    %v879 = vunpack.c.l.b16 %v188
    %v880 = vunpack.c.h.b16 %v188
    %v881 = vunpack.c.l.b16 %v189
    %v882 = vunpack.c.h.b16 %v189
    %v883 = vunpack.c.l.b16 %v190
    %v884 = vunpack.c.h.b16 %v190
    %v885 = vunpack.c.l.b16 %v191
    %v886 = vunpack.c.h.b16 %v191
    %v887 = vunpack.c.l.b16 %v192
    %v888 = vunpack.c.h.b16 %v192
    %v889 = vunpack.c.l.b16 %v193
    %v890 = vunpack.c.h.b16 %v193
    %v891 = vunpack.c.l.b16 %v194
    %v892 = vunpack.c.h.b16 %v194
    %v893 = vunpack.c.l.b16 %v195
    %v894 = vunpack.c.h.b16 %v195
    %v895 = vunpack.c.l.b16 %v196
    %v896 = vunpack.c.h.b16 %v196
    %v897 = vunpack.c.l.b16 %v197
    %v898 = vunpack.c.h.b16 %v197
    %v899 = vunpack.c.l.b16 %v198
    %v900 = vunpack.c.h.b16 %v198
    %v901 = vunpack.c.l.b16 %v199
    %v902 = vunpack.c.h.b16 %v199
    %v903 = vunpack.c.l.b16 %v200
    %v904 = vunpack.c.h.b16 %v200
    %v905 = vunpack.c.l.b16 %v201
    %v906 = vunpack.c.h.b16 %v201
    %v907 = vunpack.c.l.b16 %v202
    %v908 = vunpack.c.h.b16 %v202
    %v909 = vunpack.c.l.b16 %v203
    %v910 = vunpack.c.h.b16 %v203
    %v911 = vunpack.c.l.b16 %v204
    %v912 = vunpack.c.h.b16 %v204
    %v913 = vunpack.c.l.b16 %v205
    %v914 = vunpack.c.h.b16 %v205
    %v915 = vunpack.c.l.b16 %v206
    %v916 = vunpack.c.h.b16 %v206
    %v917 = vunpack.c.l.b16 %v207
    %v918 = vunpack.c.h.b16 %v207
    %v919 = vunpack.c.l.b16 %v208
    %v920 = vunpack.c.h.b16 %v208
    %v921 = vunpack.c.l.b16 %v209
    %v922 = vunpack.c.h.b16 %v209
    %v923 = vunpack.c.l.b16 %v210
    %v924 = vunpack.c.h.b16 %v210
    %v925 = vunpack.c.l.b16 %v211
    %v926 = vunpack.c.h.b16 %v211
    %v927 = vunpack.c.l.b16 %v212
    %v928 = vunpack.c.h.b16 %v212
    %v929 = vunpack.c.l.b16 %v213
    %v930 = vunpack.c.h.b16 %v213
    %v931 = vunpack.c.l.b16 %v214
    %v932 = vunpack.c.h.b16 %v214
    %v933 = vunpack.c.l.b16 %v215
    %v934 = vunpack.c.h.b16 %v215
    %v935 = vunpack.c.l.b16 %v216
    %v936 = vunpack.c.h.b16 %v216
    %v937 = vunpack.c.l.b16 %v217
    %v938 = vunpack.c.h.b16 %v217
    %v939 = vunpack.c.l.b16 %v218
    %v940 = vunpack.c.h.b16 %v218
    %v941 = vunpack.c.l.b16 %v219
    %v942 = vunpack.c.h.b16 %v219
    %v943 = vunpack.c.l.b16 %v220
    %v944 = vunpack.c.h.b16 %v220
    %v945 = vunpack.c.l.b16 %v221
    %v946 = vunpack.c.h.b16 %v221
    %v947 = vunpack.c.l.b16 %v222
    %v948 = vunpack.c.h.b16 %v222
    %v949 = vunpack.c.l.b16 %v223
    %v950 = vunpack.c.h.b16 %v223
    %v951 = vunpack.c.l.b16 %v224
    %v952 = vunpack.c.h.b16 %v224
    %v953 = vunpack.c.l.b16 %v225
    %v954 = vunpack.c.h.b16 %v225
    %v955 = vunpack.c.l.b16 %v226
    %v956 = vunpack.c.h.b16 %v226
    %v957 = vunpack.c.l.b16 %v227
    %v958 = vunpack.c.h.b16 %v227
    %v959 = vunpack.c.l.b16 %v228
    %v960 = vunpack.c.h.b16 %v228
    %v961 = vunpack.c.l.b16 %v229
    %v962 = vunpack.c.h.b16 %v229
    %v963 = vunpack.c.l.b16 %v230
    %v964 = vunpack.c.h.b16 %v230
    %v965 = vunpack.c.l.b16 %v231
    %v966 = vunpack.c.h.b16 %v231
    %v967 = vunpack.c.l.b16 %v232
    %v968 = vunpack.c.h.b16 %v232
    %v969 = vunpack.c.l.b16 %v233
    %v970 = vunpack.c.h.b16 %v233
    %v971 = vunpack.c.l.b16 %v234
    %v972 = vunpack.c.h.b16 %v234
    %v973 = vunpack.c.l.b16 %v235
    %v974 = vunpack.c.h.b16 %v235
    %v975 = vunpack.c.l.b16 %v236
    %v976 = vunpack.c.h.b16 %v236
    %v977 = vunpack.c.l.b16 %v237
    %v978 = vunpack.c.h.b16 %v237
    %v979 = vunpack.c.l.b16 %v238
    %v980 = vunpack.c.h.b16 %v238
    %v981 = vunpack.c.l.b16 %v239
    %v982 = vunpack.c.h.b16 %v239
    %v983 = vunpack.c.l.b16 %v240
    %v984 = vunpack.c.h.b16 %v240
    %v985 = vunpack.c.l.b16 %v241
    %v986 = vunpack.c.h.b16 %v241
    %v987 = vunpack.c.l.b16 %v242
    %v988 = vunpack.c.h.b16 %v242
    %v989 = vunpack.c.l.b16 %v243
    %v990 = vunpack.c.h.b16 %v243
    %v991 = vunpack.c.l.b16 %v244
    %v992 = vunpack.c.h.b16 %v244
    %v993 = vunpack.c.l.b16 %v245
    %v994 = vunpack.c.h.b16 %v245
    %v995 = vunpack.c.l.b16 %v246
    %v996 = vunpack.c.h.b16 %v246
    %v997 = vunpack.c.l.b16 %v247
    %v998 = vunpack.c.h.b16 %v247
    %v999 = vunpack.c.l.b16 %v248
    %v1000 = vunpack.c.h.b16 %v248
    %v1001 = vunpack.c.l.b16 %v249
    %v1002 = vunpack.c.h.b16 %v249
    %v1003 = vunpack.c.l.b16 %v250
    %v1004 = vunpack.c.h.b16 %v250
    %v1005 = vunpack.c.l.b16 %v251
    %v1006 = vunpack.c.h.b16 %v251
    %v1007 = vunpack.c.l.b16 %v252
    %v1008 = vunpack.c.h.b16 %v252
    %v1009 = vunpack.c.l.b16 %v253
    %v1010 = vunpack.c.h.b16 %v253
    %v1011 = vunpack.c.l.b16 %v254
    %v1012 = vunpack.c.h.b16 %v254
    %v1013 = vunpack.c.l.b16 %v255
    %v1014 = vunpack.c.h.b16 %v255
    %v1015 = vunpack.c.l.b16 %v256
    %v1016 = vunpack.c.h.b16 %v256
    %v1017 = vunpack.c.l.b16 %v257
    %v1018 = vunpack.c.h.b16 %v257
    %v1019 = vunpack.c.l.b16 %v258
    %v1020 = vunpack.c.h.b16 %v258
    %v1021 = vunpack.c.l.b16 %v259
    %v1022 = vunpack.c.h.b16 %v259
    %v1023 = vunpack.c.l.b16 %v260
    %v1024 = vunpack.c.h.b16 %v260
    %v1025 = vunpack.c.l.b16 %v261
    %v1026 = vunpack.c.h.b16 %v261
    %v1027 = vunpack.c.l.b16 %v262
    %v1028 = vunpack.c.h.b16 %v262
    %v1029 = vunpack.c.l.b16 %v263
    %v1030 = vunpack.c.h.b16 %v263
    %v1031 = vunpack.c.l.b16 %v264
    %v1032 = vunpack.c.h.b16 %v264
    %v1033 = vunpack.c.l.b16 %v265
    %v1034 = vunpack.c.h.b16 %v265
    %v1035 = vunpack.c.l.b16 %v266
    %v1036 = vunpack.c.h.b16 %v266
    %v1037 = vunpack.c.l.b16 %v267
    %v1038 = vunpack.c.h.b16 %v267
    %v1039 = vunpack.c.l.b16 %v268
    %v1040 = vunpack.c.h.b16 %v268
    %v1041 = vunpack.c.l.b16 %v269
    %v1042 = vunpack.c.h.b16 %v269
    %v1043 = vunpack.c.l.b16 %v270
    %v1044 = vunpack.c.h.b16 %v270
    %v1045 = vunpack.c.l.b16 %v271
    %v1046 = vunpack.c.h.b16 %v271
    %v1047 = vunpack.c.l.b16 %v272
    %v1048 = vunpack.c.h.b16 %v272
    %v1049 = vunpack.c.l.b16 %v273
    %v1050 = vunpack.c.h.b16 %v273
    %v1051 = vunpack.c.l.b16 %v274
    %v1052 = vunpack.c.h.b16 %v274
    %v1053 = vunpack.c.l.b16 %v275
    %v1054 = vunpack.c.h.b16 %v275
    %v1055 = vunpack.c.l.b16 %v276
    %v1056 = vunpack.c.h.b16 %v276
    %v1057 = vunpack.c.l.b16 %v277
    %v1058 = vunpack.c.h.b16 %v277
    %v1059 = vunpack.c.l.b16 %v278
    %v1060 = vunpack.c.h.b16 %v278
    %v1061 = vunpack.c.l.b16 %v279
    %v1062 = vunpack.c.h.b16 %v279
    %v1063 = vunpack.c.l.b16 %v280
    %v1064 = vunpack.c.h.b16 %v280
    %v1065 = vunpack.c.l.b16 %v281
    %v1066 = vunpack.c.h.b16 %v281
    %v1067 = vunpack.c.l.b16 %v282
    %v1068 = vunpack.c.h.b16 %v282
    %v1069 = vunpack.c.l.b16 %v283
    %v1070 = vunpack.c.h.b16 %v283
    %v1071 = vunpack.c.l.b16 %v284
    %v1072 = vunpack.c.h.b16 %v284
    %v1073 = vunpack.c.l.b16 %v285
    %v1074 = vunpack.c.h.b16 %v285
    %v1075 = vunpack.c.l.b16 %v286
    %v1076 = vunpack.c.h.b16 %v286
    %v1077 = vunpack.c.l.b16 %v287
    %v1078 = vunpack.c.h.b16 %v287
    %v1079 = vunpack.c.l.b16 %v288
    %v1080 = vunpack.c.h.b16 %v288
    %v1081 = vunpack.c.l.b16 %v289
    %v1082 = vunpack.c.h.b16 %v289
    %v1083 = vunpack.c.l.b16 %v290
    %v1084 = vunpack.c.h.b16 %v290
    %v1085 = vunpack.c.l.b16 %v291
    %v1086 = vunpack.c.h.b16 %v291
    %v1087 = vunpack.c.l.b16 %v292
    %v1088 = vunpack.c.h.b16 %v292
    %v1089 = vunpack.c.l.b16 %v293
    %v1090 = vunpack.c.h.b16 %v293
    %v1091 = vunpack.c.l.b16 %v294
    %v1092 = vunpack.c.h.b16 %v294
    %v1093 = vunpack.c.l.b16 %v295
    %v1094 = vunpack.c.h.b16 %v295
    %v1095 = vunpack.c.l.b16 %v296
    %v1096 = vunpack.c.h.b16 %v296
    %v1097 = vunpack.c.l.b16 %v297
    %v1098 = vunpack.c.h.b16 %v297
    %v1099 = vunpack.c.l.b16 %v298
    %v1100 = vunpack.c.h.b16 %v298
    %v1101 = vunpack.c.l.b16 %v299
    %v1102 = vunpack.c.h.b16 %v299
    %v1103 = vunpack.c.l.b16 %v300
    %v1104 = vunpack.c.h.b16 %v300
    %v1105 = vunpack.c.l.b16 %v301
    %v1106 = vunpack.c.h.b16 %v301
    %v1107 = vunpack.c.l.b16 %v302
    %v1108 = vunpack.c.h.b16 %v302
    %v1109 = vunpack.c.l.b16 %v303
    %v1110 = vunpack.c.h.b16 %v303
    %v1111 = vunpack.c.l.b16 %v304
    %v1112 = vunpack.c.h.b16 %v304
    %v1113 = vunpack.c.l.b16 %v305
    %v1114 = vunpack.c.h.b16 %v305
    %v1115 = vunpack.c.l.b16 %v306
    %v1116 = vunpack.c.h.b16 %v306
    %v1117 = vunpack.c.l.b16 %v307
    %v1118 = vunpack.c.h.b16 %v307
    %v1119 = vunpack.c.l.b16 %v308
    %v1120 = vunpack.c.h.b16 %v308
    %v1121 = vunpack.c.l.b16 %v309
    %v1122 = vunpack.c.h.b16 %v309
    %v1123 = vunpack.c.l.b16 %v310
    %v1124 = vunpack.c.h.b16 %v310
    %v1125 = vunpack.c.l.b16 %v311
    %v1126 = vunpack.c.h.b16 %v311
    %v1127 = vunpack.c.l.b16 %v312
    %v1128 = vunpack.c.h.b16 %v312
    %v1129 = vunpack.c.l.b16 %v313
    %v1130 = vunpack.c.h.b16 %v313
    %v1131 = vunpack.c.l.b16 %v314
    %v1132 = vunpack.c.h.b16 %v314
    %v1133 = vunpack.c.l.b16 %v315
    %v1134 = vunpack.c.h.b16 %v315
    %v1135 = vunpack.c.l.b16 %v316
    %v1136 = vunpack.c.h.b16 %v316
    %v1137 = vunpack.c.l.b16 %v317
    %v1138 = vunpack.c.h.b16 %v317
    %v1139 = vunpack.c.l.b16 %v318
    %v1140 = vunpack.c.h.b16 %v318
    %v1141 = vunpack.c.l.b16 %v319
    %v1142 = vunpack.c.h.b16 %v319
    %v1143 = vunpack.c.l.b16 %v320
    %v1144 = vunpack.c.h.b16 %v320
    %v1145 = vunpack.c.l.b16 %v321
    %v1146 = vunpack.c.h.b16 %v321
    %v1147 = vunpack.c.l.b16 %v322
    %v1148 = vunpack.c.h.b16 %v322
    %v1149 = vunpack.c.l.b16 %v323
    %v1150 = vunpack.c.h.b16 %v323
    %v1151 = vunpack.c.l.b16 %v324
    %v1152 = vunpack.c.h.b16 %v324
    %v1153 = vunpack.c.l.b16 %v325
    %v1154 = vunpack.c.h.b16 %v325
    %v1155 = vunpack.c.l.b16 %v326
    %v1156 = vunpack.c.h.b16 %v326
    %v1157 = vunpack.c.l.b16 %v327
    %v1158 = vunpack.c.h.b16 %v327
    %v1159 = vunpack.c.l.b16 %v328
    %v1160 = vunpack.c.h.b16 %v328
    %v1161 = vunpack.c.l.b16 %v329
    %v1162 = vunpack.c.h.b16 %v329
    %v1163 = vunpack.c.l.b16 %v330
    %v1164 = vunpack.c.h.b16 %v330
    %v1165 = vunpack.c.l.b16 %v331
    %v1166 = vunpack.c.h.b16 %v331
    %v1167 = vunpack.c.l.b16 %v332
    %v1168 = vunpack.c.h.b16 %v332
    %v1169 = vunpack.c.l.b16 %v333
    %v1170 = vunpack.c.h.b16 %v333
    %v1171 = vunpack.c.l.b16 %v334
    %v1172 = vunpack.c.h.b16 %v334
    %v1173 = vunpack.c.l.b16 %v335
    %v1174 = vunpack.c.h.b16 %v335
    %v1175 = vunpack.c.l.b16 %v336
    %v1176 = vunpack.c.h.b16 %v336
    %v1177 = vunpack.c.l.b16 %v337
    %v1178 = vunpack.c.h.b16 %v337
    %v1179 = vunpack.c.l.b16 %v338
    %v1180 = vunpack.c.h.b16 %v338
    %v1181 = vunpack.c.l.b16 %v339
    %v1182 = vunpack.c.h.b16 %v339
    %v1183 = vunpack.c.l.b16 %v340
    %v1184 = vunpack.c.h.b16 %v340
    %v1185 = vunpack.c.l.b16 %v341
    %v1186 = vunpack.c.h.b16 %v341
    %v1187 = vunpack.c.l.b16 %v342
    %v1188 = vunpack.c.h.b16 %v342
    %v1189 = vunpack.c.l.b16 %v343
    %v1190 = vunpack.c.h.b16 %v343
    %v1191 = vunpack.c.l.b16 %v344
    %v1192 = vunpack.c.h.b16 %v344
    %v1193 = vunpack.c.l.b16 %v345
    %v1194 = vunpack.c.h.b16 %v345
    %v1195 = vunpack.c.l.b16 %v346
    %v1196 = vunpack.c.h.b16 %v346
    %v1197 = vunpack.c.l.b16 %v347
    %v1198 = vunpack.c.h.b16 %v347
    %v1199 = vunpack.c.l.b16 %v348
    %v1200 = vunpack.c.h.b16 %v348
    %v1201 = vunpack.c.l.b16 %v349
    %v1202 = vunpack.c.h.b16 %v349
    %v1203 = vunpack.c.l.b16 %v350
    %v1204 = vunpack.c.h.b16 %v350
    %v1205 = vunpack.c.l.b16 %v351
    %v1206 = vunpack.c.h.b16 %v351
    %v1207 = vunpack.c.l.b16 %v352
    %v1208 = vunpack.c.h.b16 %v352
    %v1209 = vunpack.c.l.b16 %v353
    %v1210 = vunpack.c.h.b16 %v353
    %v1211 = vunpack.c.l.b16 %v354
    %v1212 = vunpack.c.h.b16 %v354
    %v1213 = vunpack.c.l.b16 %v355
    %v1214 = vunpack.c.h.b16 %v355
    %v1215 = vunpack.c.l.b16 %v356
    %v1216 = vunpack.c.h.b16 %v356
    %v1217 = vunpack.c.l.b16 %v357
    %v1218 = vunpack.c.h.b16 %v357
    %v1219 = vunpack.c.l.b16 %v358
    %v1220 = vunpack.c.h.b16 %v358
    %v1221 = vunpack.c.l.b16 %v359
    %v1222 = vunpack.c.h.b16 %v359
    %v1223 = vunpack.c.l.b16 %v360
    %v1224 = vunpack.c.h.b16 %v360
    %v1225 = vunpack.c.l.b16 %v361
    %v1226 = vunpack.c.h.b16 %v361
    %v1227 = vunpack.c.l.b16 %v362
    %v1228 = vunpack.c.h.b16 %v362
    %v1229 = vunpack.c.l.b16 %v363
    %v1230 = vunpack.c.h.b16 %v363
    %v1231 = vunpack.c.l.b16 %v364
    %v1232 = vunpack.c.h.b16 %v364
    %v1233 = vunpack.c.l.b16 %v365
    %v1234 = vunpack.c.h.b16 %v365
    %v1235 = vunpack.c.l.b16 %v366
    %v1236 = vunpack.c.h.b16 %v366
    %v1237 = vunpack.c.l.b16 %v367
    %v1238 = vunpack.c.h.b16 %v367
    %v1239 = vunpack.c.l.b16 %v368
    %v1240 = vunpack.c.h.b16 %v368
    %v1241 = vunpack.c.l.b16 %v369
    %v1242 = vunpack.c.h.b16 %v369
    %v1243 = vunpack.c.l.b16 %v370
    %v1244 = vunpack.c.h.b16 %v370
    %v1245 = vunpack.c.l.b16 %v371
    %v1246 = vunpack.c.h.b16 %v371
    %v1247 = vunpack.c.l.b16 %v372
    %v1248 = vunpack.c.h.b16 %v372
    %v1249 = vunpack.c.l.b16 %v373
    %v1250 = vunpack.c.h.b16 %v373
    %v1251 = vunpack.c.l.b16 %v374
    %v1252 = vunpack.c.h.b16 %v374
    %v1253 = vunpack.c.l.b16 %v375
    %v1254 = vunpack.c.h.b16 %v375
    %v1255 = vunpack.c.l.b16 %v376
    %v1256 = vunpack.c.h.b16 %v376
    %v1257 = vunpack.c.l.b16 %v377
    %v1258 = vunpack.c.h.b16 %v377
    %v1259 = vunpack.c.l.b16 %v378
    %v1260 = vunpack.c.h.b16 %v378
    %v1261 = vunpack.c.l.b16 %v379
    %v1262 = vunpack.c.h.b16 %v379
    %v1263 = vunpack.c.l.b16 %v380
    %v1264 = vunpack.c.h.b16 %v380
    %v1265 = vunpack.c.l.b16 %v381
    %v1266 = vunpack.c.h.b16 %v381
    %v1267 = vunpack.c.l.b16 %v382
    %v1268 = vunpack.c.h.b16 %v382
    %v1269 = vunpack.c.l.b16 %v383
    %v1270 = vunpack.c.h.b16 %v383
    %v1271 = vunpack.c.l.b16 %v384
    %v1272 = vunpack.c.h.b16 %v384
    %v1273 = vunpack.c.l.b16 %v385
    %v1274 = vunpack.c.h.b16 %v385
    %v1275 = vunpack.c.l.b16 %v386
    %v1276 = vunpack.c.h.b16 %v386
    %v1277 = vunpack.c.l.b16 %v387
    %v1278 = vunpack.c.h.b16 %v387
    %v1279 = vunpack.c.l.b16 %v388
    %v1280 = vunpack.c.h.b16 %v388
    %v1281 = vunpack.c.l.b16 %v389
    %v1282 = vunpack.c.h.b16 %v389
    %v1283 = vunpack.c.l.b16 %v390
    %v1284 = vunpack.c.h.b16 %v390
    %v1285 = vunpack.c.l.b16 %v391
    %v1286 = vunpack.c.h.b16 %v391
    %v1287 = vunpack.c.l.b16 %v392
    %v1288 = vunpack.c.h.b16 %v392
    %v1289 = vunpack.c.l.b16 %v393
    %v1290 = vunpack.c.h.b16 %v393
    %v1291 = vpack.c.b16 %v721, %v715
    %v1292 = vpack.c.b16 %v722, %v716
    %v1293 = vpack.c.b16 %v723, %v717
    %v1294 = vpack.c.b16 %v724, %v718
    %v1295 = vpack.c.b16 %v725, %v719
    %v1296 = vpack.c.b16 %v726, %v720
    %v1297 = vpack.c.b16 %v733, %v727
    %v1298 = vpack.c.b16 %v734, %v728
    %v1299 = vpack.c.b16 %v735, %v729
    %v1300 = vpack.c.b16 %v736, %v730
    %v1301 = vpack.c.b16 %v737, %v731
    %v1302 = vpack.c.b16 %v738, %v732
    %v1303 = vpack.c.b16 %v745, %v739
    %v1304 = vpack.c.b16 %v746, %v740
    %v1305 = vpack.c.b16 %v747, %v741
    %v1306 = vpack.c.b16 %v748, %v742
    %v1307 = vpack.c.b16 %v749, %v743
    %v1308 = vpack.c.b16 %v750, %v744
    %v1309 = vpack.c.b16 %v757, %v751
    %v1310 = vpack.c.b16 %v758, %v752
    %v1311 = vpack.c.b16 %v759, %v753
    %v1312 = vpack.c.b16 %v760, %v754
    %v1313 = vpack.c.b16 %v761, %v755
    %v1314 = vpack.c.b16 %v762, %v756
    %v1315 = vpack.c.b16 %v769, %v763
    %v1316 = vpack.c.b16 %v770, %v764
    %v1317 = vpack.c.b16 %v771, %v765
    %v1318 = vpack.c.b16 %v772, %v766
    %v1319 = vpack.c.b16 %v773, %v767
    %v1320 = vpack.c.b16 %v774, %v768
    %v1321 = vpack.c.b16 %v781, %v775
    %v1322 = vpack.c.b16 %v782, %v776
    %v1323 = vpack.c.b16 %v783, %v777
    %v1324 = vpack.c.b16 %v784, %v778
    %v1325 = vpack.c.b16 %v785, %v779
    %v1326 = vpack.c.b16 %v786, %v780
    %v1327 = vpack.c.b16 %v793, %v787
    %v1328 = vpack.c.b16 %v794, %v788
    %v1329 = vpack.c.b16 %v795, %v789
    %v1330 = vpack.c.b16 %v796, %v790
    %v1331 = vpack.c.b16 %v797, %v791
    %v1332 = vpack.c.b16 %v798, %v792
    %v1333 = vpack.c.b16 %v805, %v799
    %v1334 = vpack.c.b16 %v806, %v800
    %v1335 = vpack.c.b16 %v807, %v801
    %v1336 = vpack.c.b16 %v808, %v802
    %v1337 = vpack.c.b16 %v809, %v803
    %v1338 = vpack.c.b16 %v810, %v804
    %v1339 = vpack.c.b16 %v817, %v811
    %v1340 = vpack.c.b16 %v818, %v812
    %v1341 = vpack.c.b16 %v819, %v813
    %v1342 = vpack.c.b16 %v820, %v814
    %v1343 = vpack.c.b16 %v821, %v815
    %v1344 = vpack.c.b16 %v822, %v816
    %v1345 = vpack.c.b16 %v829, %v823
    %v1346 = vpack.c.b16 %v830, %v824
    %v1347 = vpack.c.b16 %v831, %v825
    %v1348 = vpack.c.b16 %v832, %v826
    %v1349 = vpack.c.b16 %v833, %v827
    %v1350 = vpack.c.b16 %v834, %v828
    %v1351 = vpack.c.b16 %v841, %v835
    %v1352 = vpack.c.b16 %v842, %v836
    %v1353 = vpack.c.b16 %v843, %v837
    %v1354 = vpack.c.b16 %v844, %v838
    %v1355 = vpack.c.b16 %v845, %v839
    %v1356 = vpack.c.b16 %v846, %v840
    %v1357 = vpack.c.b16 %v853, %v847
    %v1358 = vpack.c.b16 %v854, %v848
    %v1359 = vpack.c.b16 %v855, %v849
    %v1360 = vpack.c.b16 %v856, %v850
    %v1361 = vpack.c.b16 %v857, %v851
    %v1362 = vpack.c.b16 %v858, %v852
    %v1363 = vpack.c.b16 %v865, %v859
    %v1364 = vpack.c.b16 %v866, %v860
    %v1365 = vpack.c.b16 %v867, %v861
    %v1366 = vpack.c.b16 %v868, %v862
    %v1367 = vpack.c.b16 %v869, %v863
    %v1368 = vpack.c.b16 %v870, %v864
    %v1369 = vpack.c.b16 %v877, %v871
    %v1370 = vpack.c.b16 %v878, %v872
    %v1371 = vpack.c.b16 %v879, %v873
    %v1372 = vpack.c.b16 %v880, %v874
    %v1373 = vpack.c.b16 %v881, %v875
    %v1374 = vpack.c.b16 %v882, %v876
    %v1375 = vpack.c.b16 %v889, %v883
    %v1376 = vpack.c.b16 %v890, %v884
    %v1377 = vpack.c.b16 %v891, %v885
    %v1378 = vpack.c.b16 %v892, %v886
    %v1379 = vpack.c.b16 %v893, %v887
    %v1380 = vpack.c.b16 %v894, %v888
    %v1381 = vpack.c.b16 %v901, %v895
    %v1382 = vpack.c.b16 %v902, %v896
    %v1383 = vpack.c.b16 %v903, %v897
    %v1384 = vpack.c.b16 %v904, %v898
    %v1385 = vpack.c.b16 %v905, %v899
    %v1386 = vpack.c.b16 %v906, %v900
    %v1387 = vpack.c.b16 %v913, %v907
    %v1388 = vpack.c.b16 %v914, %v908
    %v1389 = vpack.c.b16 %v915, %v909
    %v1390 = vpack.c.b16 %v916, %v910
    %v1391 = vpack.c.b16 %v917, %v911
    %v1392 = vpack.c.b16 %v918, %v912
    %v1393 = vpack.c.b16 %v925, %v919
    %v1394 = vpack.c.b16 %v926, %v920
    %v1395 = vpack.c.b16 %v927, %v921
    %v1396 = vpack.c.b16 %v928, %v922
    %v1397 = vpack.c.b16 %v929, %v923
    %v1398 = vpack.c.b16 %v930, %v924
    %v1399 = vpack.c.b16 %v937, %v931
    %v1400 = vpack.c.b16 %v938, %v932
    %v1401 = vpack.c.b16 %v939, %v933
    %v1402 = vpack.c.b16 %v940, %v934
    %v1403 = vpack.c.b16 %v941, %v935
    %v1404 = vpack.c.b16 %v942, %v936
    %v1405 = vpack.c.b16 %v949, %v943
    %v1406 = vpack.c.b16 %v950, %v944
    %v1407 = vpack.c.b16 %v951, %v945
    %v1408 = vpack.c.b16 %v952, %v946
    %v1409 = vpack.c.b16 %v953, %v947
    %v1410 = vpack.c.b16 %v954, %v948
    %v1411 = vpack.c.b16 %v961, %v955
    %v1412 = vpack.c.b16 %v962, %v956
    %v1413 = vpack.c.b16 %v963, %v957
    %v1414 = vpack.c.b16 %v964, %v958
    %v1415 = vpack.c.b16 %v965, %v959
    %v1416 = vpack.c.b16 %v966, %v960
    %v1417 = vpack.c.b16 %v973, %v967
    %v1418 = vpack.c.b16 %v974, %v968
    %v1419 = vpack.c.b16 %v975, %v969
    %v1420 = vpack.c.b16 %v976, %v970
    %v1421 = vpack.c.b16 %v977, %v971
    %v1422 = vpack.c.b16 %v978, %v972
    %v1423 = vpack.c.b16 %v985, %v979
    %v1424 = vpack.c.b16 %v986, %v980
    %v1425 = vpack.c.b16 %v987, %v981
    %v1426 = vpack.c.b16 %v988, %v982
    %v1427 = vpack.c.b16 %v989, %v983
    %v1428 = vpack.c.b16 %v990, %v984
    %v1429 = vpack.c.b16 %v997, %v991
    %v1430 = vpack.c.b16 %v998, %v992
    %v1431 = vpack.c.b16 %v999, %v993
    %v1432 = vpack.c.b16 %v1000, %v994
    %v1433 = vpack.c.b16 %v1001, %v995
    %v1434 = vpack.c.b16 %v1002, %v996
    %v1435 = vpack.c.b16 %v1009, %v1003
    %v1436 = vpack.c.b16 %v1010, %v1004
    %v1437 = vpack.c.b16 %v1011, %v1005
    %v1438 = vpack.c.b16 %v1012, %v1006
    %v1439 = vpack.c.b16 %v1013, %v1007
    %v1440 = vpack.c.b16 %v1014, %v1008
    %v1441 = vpack.c.b16 %v1021, %v1015
    %v1442 = vpack.c.b16 %v1022, %v1016
    %v1443 = vpack.c.b16 %v1023, %v1017
    %v1444 = vpack.c.b16 %v1024, %v1018
    %v1445 = vpack.c.b16 %v1025, %v1019
    %v1446 = vpack.c.b16 %v1026, %v1020
    %v1447 = vpack.c.b16 %v1033, %v1027
    %v1448 = vpack.c.b16 %v1034, %v1028
    %v1449 = vpack.c.b16 %v1035, %v1029
    %v1450 = vpack.c.b16 %v1036, %v1030
    %v1451 = vpack.c.b16 %v1037, %v1031
    %v1452 = vpack.c.b16 %v1038, %v1032
    %v1453 = vpack.c.b16 %v1045, %v1039
    %v1454 = vpack.c.b16 %v1046, %v1040
    %v1455 = vpack.c.b16 %v1047, %v1041
    %v1456 = vpack.c.b16 %v1048, %v1042
    %v1457 = vpack.c.b16 %v1049, %v1043
    %v1458 = vpack.c.b16 %v1050, %v1044
    %v1459 = vpack.c.b16 %v1057, %v1051
    %v1460 = vpack.c.b16 %v1058, %v1052
    %v1461 = vpack.c.b16 %v1059, %v1053
    %v1462 = vpack.c.b16 %v1060, %v1054
    %v1463 = vpack.c.b16 %v1061, %v1055
    %v1464 = vpack.c.b16 %v1062, %v1056
    %v1465 = vpack.c.b16 %v1069, %v1063
    %v1466 = vpack.c.b16 %v1070, %v1064
    %v1467 = vpack.c.b16 %v1071, %v1065
    %v1468 = vpack.c.b16 %v1072, %v1066
    %v1469 = vpack.c.b16 %v1073, %v1067
    %v1470 = vpack.c.b16 %v1074, %v1068
    %v1471 = vpack.c.b16 %v1081, %v1075
    %v1472 = vpack.c.b16 %v1082, %v1076
    %v1473 = vpack.c.b16 %v1083, %v1077
    %v1474 = vpack.c.b16 %v1084, %v1078
    %v1475 = vpack.c.b16 %v1085, %v1079
    %v1476 = vpack.c.b16 %v1086, %v1080
    %v1477 = vpack.c.b16 %v1093, %v1087
    %v1478 = vpack.c.b16 %v1094, %v1088
    %v1479 = vpack.c.b16 %v1095, %v1089
    %v1480 = vpack.c.b16 %v1096, %v1090
    %v1481 = vpack.c.b16 %v1097, %v1091
    %v1482 = vpack.c.b16 %v1098, %v1092
    %v1483 = vpack.c.b16 %v1105, %v1099
    %v1484 = vpack.c.b16 %v1106, %v1100
    %v1485 = vpack.c.b16 %v1107, %v1101
    %v1486 = vpack.c.b16 %v1108, %v1102
    %v1487 = vpack.c.b16 %v1109, %v1103
    %v1488 = vpack.c.b16 %v1110, %v1104
    %v1489 = vpack.c.b16 %v1117, %v1111
    %v1490 = vpack.c.b16 %v1118, %v1112
    %v1491 = vpack.c.b16 %v1119, %v1113
    %v1492 = vpack.c.b16 %v1120, %v1114
    %v1493 = vpack.c.b16 %v1121, %v1115
    %v1494 = vpack.c.b16 %v1122, %v1116
    %v1495 = vpack.c.b16 %v1129, %v1123
    %v1496 = vpack.c.b16 %v1130, %v1124
    %v1497 = vpack.c.b16 %v1131, %v1125
    %v1498 = vpack.c.b16 %v1132, %v1126
    %v1499 = vpack.c.b16 %v1133, %v1127
    %v1500 = vpack.c.b16 %v1134, %v1128
    %v1501 = vpack.c.b16 %v1141, %v1135
    %v1502 = vpack.c.b16 %v1142, %v1136
    %v1503 = vpack.c.b16 %v1143, %v1137
    %v1504 = vpack.c.b16 %v1144, %v1138
    %v1505 = vpack.c.b16 %v1145, %v1139
    %v1506 = vpack.c.b16 %v1146, %v1140
    %v1507 = vpack.c.b16 %v1153, %v1147
    %v1508 = vpack.c.b16 %v1154, %v1148
    %v1509 = vpack.c.b16 %v1155, %v1149
    %v1510 = vpack.c.b16 %v1156, %v1150
    %v1511 = vpack.c.b16 %v1157, %v1151
    %v1512 = vpack.c.b16 %v1158, %v1152
    %v1513 = vpack.c.b16 %v1165, %v1159
    %v1514 = vpack.c.b16 %v1166, %v1160
    %v1515 = vpack.c.b16 %v1167, %v1161
    %v1516 = vpack.c.b16 %v1168, %v1162
    %v1517 = vpack.c.b16 %v1169, %v1163
    %v1518 = vpack.c.b16 %v1170, %v1164
    %v1519 = vpack.c.b16 %v1177, %v1171
    %v1520 = vpack.c.b16 %v1178, %v1172
    %v1521 = vpack.c.b16 %v1179, %v1173
    %v1522 = vpack.c.b16 %v1180, %v1174
    %v1523 = vpack.c.b16 %v1181, %v1175
    %v1524 = vpack.c.b16 %v1182, %v1176
    %v1525 = vpack.c.b16 %v1189, %v1183
    %v1526 = vpack.c.b16 %v1190, %v1184
    %v1527 = vpack.c.b16 %v1191, %v1185
    %v1528 = vpack.c.b16 %v1192, %v1186
    %v1529 = vpack.c.b16 %v1193, %v1187
    %v1530 = vpack.c.b16 %v1194, %v1188
    %v1531 = vpack.c.b16 %v1201, %v1195
    %v1532 = vpack.c.b16 %v1202, %v1196
    %v1533 = vpack.c.b16 %v1203, %v1197
    %v1534 = vpack.c.b16 %v1204, %v1198
    %v1535 = vpack.c.b16 %v1205, %v1199
    %v1536 = vpack.c.b16 %v1206, %v1200
    %v1537 = vpack.c.b16 %v1213, %v1207
    %v1538 = vpack.c.b16 %v1214, %v1208
    %v1539 = vpack.c.b16 %v1215, %v1209
    %v1540 = vpack.c.b16 %v1216, %v1210
    %v1541 = vpack.c.b16 %v1217, %v1211
    %v1542 = vpack.c.b16 %v1218, %v1212
    %v1543 = vpack.c.b16 %v1225, %v1219
    %v1544 = vpack.c.b16 %v1226, %v1220
    %v1545 = vpack.c.b16 %v1227, %v1221
    %v1546 = vpack.c.b16 %v1228, %v1222
    %v1547 = vpack.c.b16 %v1229, %v1223
    %v1548 = vpack.c.b16 %v1230, %v1224
    %v1549 = vpack.c.b16 %v1237, %v1231
    %v1550 = vpack.c.b16 %v1238, %v1232
    %v1551 = vpack.c.b16 %v1239, %v1233
    %v1552 = vpack.c.b16 %v1240, %v1234
    %v1553 = vpack.c.b16 %v1241, %v1235
    %v1554 = vpack.c.b16 %v1242, %v1236
    %v1555 = vpack.c.b16 %v1249, %v1243
    %v1556 = vpack.c.b16 %v1250, %v1244
    %v1557 = vpack.c.b16 %v1251, %v1245
    %v1558 = vpack.c.b16 %v1252, %v1246
    %v1559 = vpack.c.b16 %v1253, %v1247
    %v1560 = vpack.c.b16 %v1254, %v1248
    %v1561 = vpack.c.b16 %v1261, %v1255
    %v1562 = vpack.c.b16 %v1262, %v1256
    %v1563 = vpack.c.b16 %v1263, %v1257
    %v1564 = vpack.c.b16 %v1264, %v1258
    %v1565 = vpack.c.b16 %v1265, %v1259
    %v1566 = vpack.c.b16 %v1266, %v1260
    %v1567 = vpack.c.b16 %v1273, %v1267
    %v1568 = vpack.c.b16 %v1274, %v1268
    %v1569 = vpack.c.b16 %v1275, %v1269
    %v1570 = vpack.c.b16 %v1276, %v1270
    %v1571 = vpack.c.b16 %v1277, %v1271
    %v1572 = vpack.c.b16 %v1278, %v1272
    %v1573 = vpack.c.b16 %v1285, %v1279
    %v1574 = vpack.c.b16 %v1286, %v1280
    %v1575 = vpack.c.b16 %v1287, %v1281
    %v1576 = vpack.c.b16 %v1288, %v1282
    %v1577 = vpack.c.b16 %v1289, %v1283
    %v1578 = vpack.c.b16 %v1290, %v1284
    %1867 = vmatprep.subr.bf16.mxu0 %v1292
    %1868 = vmatpush1.bf16.msra.mxu0 %v1291
    %1869 = vmatprep.subr.bf16.mxu0 %v1298
    %1870 = vmatpush1.bf16.msra.mxu0 %v1297
    %1871 = vmatprep.subr.bf16.mxu0 %v1304
    %1872 = vmatpush1.bf16.msra.mxu0 %v1303
    %1873 = vmatprep.subr.bf16.mxu0 %v1310
    %1874 = vmatpush1.bf16.msra.mxu0 %v1309
    %1875 = vmatprep.subr.bf16.mxu0 %v1316
    %1876 = vmatpush1.bf16.msra.mxu0 %v1315
    %1877 = vmatprep.subr.bf16.mxu0 %v1322
    %1878 = vmatpush1.bf16.msra.mxu0 %v1321
    %1879 = vmatprep.subr.bf16.mxu0 %v1328
    %1880 = vmatpush1.bf16.msra.mxu0 %v1327
    %1881 = vmatprep.subr.bf16.mxu0 %v1334
    %1882 = vmatpush1.bf16.msra.mxu0 %v1333
    %1883 = vmatprep.subr.bf16.mxu0 %v1340
    %1884 = vmatpush1.bf16.msra.mxu0 %v1339
    %1885 = vmatprep.subr.bf16.mxu0 %v1346
    %1886 = vmatpush1.bf16.msra.mxu0 %v1345
    %1887 = vmatprep.subr.bf16.mxu0 %v1352
    %1888 = vmatpush1.bf16.msra.mxu0 %v1351
    %1889 = vmatprep.subr.bf16.mxu0 %v1358
    %1890 = vmatpush1.bf16.msra.mxu0 %v1357
    %1891 = vmatprep.subr.bf16.mxu0 %v1364
    %1892 = vmatpush1.bf16.msra.mxu0 %v1363
    %1893 = vmatprep.subr.bf16.mxu0 %v1370
    %1894 = vmatpush1.bf16.msra.mxu0 %v1369
    %1895 = vmatprep.subr.bf16.mxu0 %v1376
    %1896 = vmatpush1.bf16.msra.mxu0 %v1375
    %1897 = vmatprep.subr.bf16.mxu0 %v1382
    %1898 = vmatpush1.bf16.msra.mxu0 %v1381
    %1899 = vmatprep.mubr.bf16.mxu0 %v411
    %1900 = vmatmul.mubr.bf16.gmra.mrb[0].mxu0 %v403
    %v1901 = vpop.f32.mrb[0].mxu0
    %v1902 = vadd.f32 0.0, %v1901
    %v1903 = vpop.f32.mrb[0].mxu0
    %v1904 = vadd.f32 0.0, %v1903
    %v1905 = vpop.f32.mrb[0].mxu0
    %v1906 = vpop.f32.mrb[0].mxu0
    %1907 = vdwg.mxu0
    %1908 = vmatprep.subr.bf16.mxu0 %v1388
    %1909 = vmatpush1.bf16.msra.mxu0 %v1387
    %1910 = vmatprep.subr.bf16.mxu0 %v1394
    %1911 = vmatpush1.bf16.msra.mxu0 %v1393
    %1912 = vmatprep.subr.bf16.mxu0 %v1400
    %1913 = vmatpush1.bf16.msra.mxu0 %v1399
    %1914 = vmatprep.subr.bf16.mxu0 %v1406
    %1915 = vmatpush1.bf16.msra.mxu0 %v1405
    %1916 = vmatprep.subr.bf16.mxu0 %v1412
    %1917 = vmatpush1.bf16.msra.mxu0 %v1411
    %1918 = vmatprep.subr.bf16.mxu0 %v1418
    %1919 = vmatpush1.bf16.msra.mxu0 %v1417
    %1920 = vmatprep.subr.bf16.mxu0 %v1424
    %1921 = vmatpush1.bf16.msra.mxu0 %v1423
    %1922 = vmatprep.subr.bf16.mxu0 %v1430
    %1923 = vmatpush1.bf16.msra.mxu0 %v1429
    %1924 = vmatprep.subr.bf16.mxu0 %v1436
    %1925 = vmatpush1.bf16.msra.mxu0 %v1435
    %1926 = vmatprep.subr.bf16.mxu0 %v1442
    %1927 = vmatpush1.bf16.msra.mxu0 %v1441
    %1928 = vmatprep.subr.bf16.mxu0 %v1448
    %1929 = vmatpush1.bf16.msra.mxu0 %v1447
    %1930 = vmatprep.subr.bf16.mxu0 %v1454
    %1931 = vmatpush1.bf16.msra.mxu0 %v1453
    %1932 = vmatprep.subr.bf16.mxu0 %v1460
    %1933 = vmatpush1.bf16.msra.mxu0 %v1459
    %1934 = vmatprep.subr.bf16.mxu0 %v1466
    %1935 = vmatpush1.bf16.msra.mxu0 %v1465
    %1936 = vmatprep.subr.bf16.mxu0 %v1472
    %1937 = vmatpush1.bf16.msra.mxu0 %v1471
    %1938 = vmatprep.subr.bf16.mxu0 %v1478
    %1939 = vmatpush1.bf16.msra.mxu0 %v1477
    %1940 = vmatprep.mubr.bf16.mxu0 %v412
    %1941 = vmatmul.mubr.bf16.gmra.mrb[0].mxu0 %v410
    %v1942 = vpop.f32.mrb[0].mxu0
    %v1943 = vadd.f32 %v1902, %v1942
    %v1944 = vpop.f32.mrb[0].mxu0
    %v1945 = vadd.f32 %v1904, %v1944
    %v1946 = vpop.f32.mrb[0].mxu0
    %v1947 = vpop.f32.mrb[0].mxu0
    %1948 = vdwg.mxu0
    %1949 = vmatprep.subr.bf16.mxu0 %v1484
    %1950 = vmatpush1.bf16.msra.mxu0 %v1483
    %1951 = vmatprep.subr.bf16.mxu0 %v1490
    %1952 = vmatpush1.bf16.msra.mxu0 %v1489
    %1953 = vmatprep.subr.bf16.mxu0 %v1496
    %1954 = vmatpush1.bf16.msra.mxu0 %v1495
    %1955 = vmatprep.subr.bf16.mxu0 %v1502
    %1956 = vmatpush1.bf16.msra.mxu0 %v1501
    %1957 = vmatprep.subr.bf16.mxu0 %v1508
    %1958 = vmatpush1.bf16.msra.mxu0 %v1507
    %1959 = vmatprep.subr.bf16.mxu0 %v1514
    %1960 = vmatpush1.bf16.msra.mxu0 %v1513
    %1961 = vmatprep.subr.bf16.mxu0 %v1520
    %1962 = vmatpush1.bf16.msra.mxu0 %v1519
    %1963 = vmatprep.subr.bf16.mxu0 %v1526
    %1964 = vmatpush1.bf16.msra.mxu0 %v1525
    %1965 = vmatprep.subr.bf16.mxu0 %v1532
    %1966 = vmatpush1.bf16.msra.mxu0 %v1531
    %1967 = vmatprep.subr.bf16.mxu0 %v1538
    %1968 = vmatpush1.bf16.msra.mxu0 %v1537
    %1969 = vmatprep.subr.bf16.mxu0 %v1544
    %1970 = vmatpush1.bf16.msra.mxu0 %v1543
    %1971 = vmatprep.subr.bf16.mxu0 %v1550
    %1972 = vmatpush1.bf16.msra.mxu0 %v1549
    %1973 = vmatprep.subr.bf16.mxu0 %v1556
    %1974 = vmatpush1.bf16.msra.mxu0 %v1555
    %1975 = vmatprep.subr.bf16.mxu0 %v1562
    %1976 = vmatpush1.bf16.msra.mxu0 %v1561
    %1977 = vmatprep.subr.bf16.mxu0 %v1568
    %1978 = vmatpush1.bf16.msra.mxu0 %v1567
    %1979 = vmatprep.subr.bf16.mxu0 %v1574
    %1980 = vmatpush1.bf16.msra.mxu0 %v1573
    %1981 = vmatprep.mubr.bf16.mxu0 %v420
    %1982 = vmatmul.mubr.bf16.gmra.mrb[0].mxu0 %v419
    %v1983 = vpop.f32.mrb[0].mxu0
    %v1984 = vadd.f32 %v1943, %v1983
    %v1985 = vpop.f32.mrb[0].mxu0
    %v1986 = vadd.f32 %v1945, %v1985
    %v1987 = vpop.f32.mrb[0].mxu0
    %v1988 = vpop.f32.mrb[0].mxu0
    %1989 = vdwg.mxu0
    %1990 = vmatprep.subr.bf16.mxu0 %v1294
    %1991 = vmatpush1.bf16.msra.mxu0 %v1293
    %1992 = vmatprep.subr.bf16.mxu0 %v1300
    %1993 = vmatpush1.bf16.msra.mxu0 %v1299
    %1994 = vmatprep.subr.bf16.mxu0 %v1306
    %1995 = vmatpush1.bf16.msra.mxu0 %v1305
    %1996 = vmatprep.subr.bf16.mxu0 %v1312
    %1997 = vmatpush1.bf16.msra.mxu0 %v1311
    %1998 = vmatprep.subr.bf16.mxu0 %v1318
    %1999 = vmatpush1.bf16.msra.mxu0 %v1317
    %2000 = vmatprep.subr.bf16.mxu0 %v1324
    %2001 = vmatpush1.bf16.msra.mxu0 %v1323
    %2002 = vmatprep.subr.bf16.mxu0 %v1330
    %2003 = vmatpush1.bf16.msra.mxu0 %v1329
    %2004 = vmatprep.subr.bf16.mxu0 %v1336
    %2005 = vmatpush1.bf16.msra.mxu0 %v1335
    %2006 = vmatprep.subr.bf16.mxu0 %v1342
    %2007 = vmatpush1.bf16.msra.mxu0 %v1341
    %2008 = vmatprep.subr.bf16.mxu0 %v1348
    %2009 = vmatpush1.bf16.msra.mxu0 %v1347
    %2010 = vmatprep.subr.bf16.mxu0 %v1354
    %2011 = vmatpush1.bf16.msra.mxu0 %v1353
    %2012 = vmatprep.subr.bf16.mxu0 %v1360
    %2013 = vmatpush1.bf16.msra.mxu0 %v1359
    %2014 = vmatprep.subr.bf16.mxu0 %v1366
    %2015 = vmatpush1.bf16.msra.mxu0 %v1365
    %2016 = vmatprep.subr.bf16.mxu0 %v1372
    %2017 = vmatpush1.bf16.msra.mxu0 %v1371
    %2018 = vmatprep.subr.bf16.mxu0 %v1378
    %2019 = vmatpush1.bf16.msra.mxu0 %v1377
    %2020 = vmatprep.subr.bf16.mxu0 %v1384
    %2021 = vmatpush1.bf16.msra.mxu0 %v1383
    %2022 = vmatprep.mubr.bf16.mxu0 %v411
    %2023 = vmatmul.mubr.bf16.gmra.mrb[0].mxu0 %v403
    %v2024 = vpop.f32.mrb[0].mxu0
    %v2025 = vadd.f32 0.0, %v2024
    %v2026 = vpop.f32.mrb[0].mxu0
    %v2027 = vadd.f32 0.0, %v2026
    %v2028 = vpop.f32.mrb[0].mxu0
    %v2029 = vpop.f32.mrb[0].mxu0
    %2030 = vdwg.mxu0
    %2031 = vmatprep.subr.bf16.mxu0 %v1390
    %2032 = vmatpush1.bf16.msra.mxu0 %v1389
    %2033 = vmatprep.subr.bf16.mxu0 %v1396
    %2034 = vmatpush1.bf16.msra.mxu0 %v1395
    %2035 = vmatprep.subr.bf16.mxu0 %v1402
    %2036 = vmatpush1.bf16.msra.mxu0 %v1401
    %2037 = vmatprep.subr.bf16.mxu0 %v1408
    %2038 = vmatpush1.bf16.msra.mxu0 %v1407
    %2039 = vmatprep.subr.bf16.mxu0 %v1414
    %2040 = vmatpush1.bf16.msra.mxu0 %v1413
    %2041 = vmatprep.subr.bf16.mxu0 %v1420
    %2042 = vmatpush1.bf16.msra.mxu0 %v1419
    %2043 = vmatprep.subr.bf16.mxu0 %v1426
    %2044 = vmatpush1.bf16.msra.mxu0 %v1425
    %2045 = vmatprep.subr.bf16.mxu0 %v1432
    %2046 = vmatpush1.bf16.msra.mxu0 %v1431
    %2047 = vmatprep.subr.bf16.mxu0 %v1438
    %2048 = vmatpush1.bf16.msra.mxu0 %v1437
    %2049 = vmatprep.subr.bf16.mxu0 %v1444
    %2050 = vmatpush1.bf16.msra.mxu0 %v1443
    %2051 = vmatprep.subr.bf16.mxu0 %v1450
    %2052 = vmatpush1.bf16.msra.mxu0 %v1449
    %2053 = vmatprep.subr.bf16.mxu0 %v1456
    %2054 = vmatpush1.bf16.msra.mxu0 %v1455
    %2055 = vmatprep.subr.bf16.mxu0 %v1462
    %2056 = vmatpush1.bf16.msra.mxu0 %v1461
    %2057 = vmatprep.subr.bf16.mxu0 %v1468
    %2058 = vmatpush1.bf16.msra.mxu0 %v1467
    %2059 = vmatprep.subr.bf16.mxu0 %v1474
    %2060 = vmatpush1.bf16.msra.mxu0 %v1473
    %2061 = vmatprep.subr.bf16.mxu0 %v1480
    %2062 = vmatpush1.bf16.msra.mxu0 %v1479
    %2063 = vmatprep.mubr.bf16.mxu0 %v412
    %2064 = vmatmul.mubr.bf16.gmra.mrb[0].mxu0 %v410
    %v2065 = vpop.f32.mrb[0].mxu0
    %v2066 = vadd.f32 %v2025, %v2065
    %v2067 = vpop.f32.mrb[0].mxu0
    %v2068 = vadd.f32 %v2027, %v2067
    %v2069 = vpop.f32.mrb[0].mxu0
    %v2070 = vpop.f32.mrb[0].mxu0
    %2071 = vdwg.mxu0
    %2072 = vmatprep.subr.bf16.mxu0 %v1486
    %2073 = vmatpush1.bf16.msra.mxu0 %v1485
    %2074 = vmatprep.subr.bf16.mxu0 %v1492
    %2075 = vmatpush1.bf16.msra.mxu0 %v1491
    %2076 = vmatprep.subr.bf16.mxu0 %v1498
    %2077 = vmatpush1.bf16.msra.mxu0 %v1497
    %2078 = vmatprep.subr.bf16.mxu0 %v1504
    %2079 = vmatpush1.bf16.msra.mxu0 %v1503
    %2080 = vmatprep.subr.bf16.mxu0 %v1510
    %2081 = vmatpush1.bf16.msra.mxu0 %v1509
    %2082 = vmatprep.subr.bf16.mxu0 %v1516
    %2083 = vmatpush1.bf16.msra.mxu0 %v1515
    %2084 = vmatprep.subr.bf16.mxu0 %v1522
    %2085 = vmatpush1.bf16.msra.mxu0 %v1521
    %2086 = vmatprep.subr.bf16.mxu0 %v1528
    %2087 = vmatpush1.bf16.msra.mxu0 %v1527
    %2088 = vmatprep.subr.bf16.mxu0 %v1534
    %2089 = vmatpush1.bf16.msra.mxu0 %v1533
    %2090 = vmatprep.subr.bf16.mxu0 %v1540
    %2091 = vmatpush1.bf16.msra.mxu0 %v1539
    %2092 = vmatprep.subr.bf16.mxu0 %v1546
    %2093 = vmatpush1.bf16.msra.mxu0 %v1545
    %2094 = vmatprep.subr.bf16.mxu0 %v1552
    %2095 = vmatpush1.bf16.msra.mxu0 %v1551
    %2096 = vmatprep.subr.bf16.mxu0 %v1558
    %2097 = vmatpush1.bf16.msra.mxu0 %v1557
    %2098 = vmatprep.subr.bf16.mxu0 %v1564
    %2099 = vmatpush1.bf16.msra.mxu0 %v1563
    %2100 = vmatprep.subr.bf16.mxu0 %v1570
    %2101 = vmatpush1.bf16.msra.mxu0 %v1569
    %2102 = vmatprep.subr.bf16.mxu0 %v1576
    %2103 = vmatpush1.bf16.msra.mxu0 %v1575
    %2104 = vmatprep.mubr.bf16.mxu0 %v420
    %2105 = vmatmul.mubr.bf16.gmra.mrb[0].mxu0 %v419
    %v2106 = vpop.f32.mrb[0].mxu0
    %v2107 = vadd.f32 %v2066, %v2106
    %v2108 = vpop.f32.mrb[0].mxu0
    %v2109 = vadd.f32 %v2068, %v2108
    %v2110 = vpop.f32.mrb[0].mxu0
    %v2111 = vpop.f32.mrb[0].mxu0
    %2112 = vdwg.mxu0
    %2113 = vmatprep.subr.bf16.mxu0 %v1296
    %2114 = vmatpush1.bf16.msra.mxu0 %v1295
    %2115 = vmatprep.subr.bf16.mxu0 %v1302
    %2116 = vmatpush1.bf16.msra.mxu0 %v1301
    %2117 = vmatprep.subr.bf16.mxu0 %v1308
    %2118 = vmatpush1.bf16.msra.mxu0 %v1307
    %2119 = vmatprep.subr.bf16.mxu0 %v1314
    %2120 = vmatpush1.bf16.msra.mxu0 %v1313
    %2121 = vmatprep.subr.bf16.mxu0 %v1320
    %2122 = vmatpush1.bf16.msra.mxu0 %v1319
    %2123 = vmatprep.subr.bf16.mxu0 %v1326
    %2124 = vmatpush1.bf16.msra.mxu0 %v1325
    %2125 = vmatprep.subr.bf16.mxu0 %v1332
    %2126 = vmatpush1.bf16.msra.mxu0 %v1331
    %2127 = vmatprep.subr.bf16.mxu0 %v1338
    %2128 = vmatpush1.bf16.msra.mxu0 %v1337
    %2129 = vmatprep.subr.bf16.mxu0 %v1344
    %2130 = vmatpush1.bf16.msra.mxu0 %v1343
    %2131 = vmatprep.subr.bf16.mxu0 %v1350
    %2132 = vmatpush1.bf16.msra.mxu0 %v1349
    %2133 = vmatprep.subr.bf16.mxu0 %v1356
    %2134 = vmatpush1.bf16.msra.mxu0 %v1355
    %2135 = vmatprep.subr.bf16.mxu0 %v1362
    %2136 = vmatpush1.bf16.msra.mxu0 %v1361
    %2137 = vmatprep.subr.bf16.mxu0 %v1368
    %2138 = vmatpush1.bf16.msra.mxu0 %v1367
    %2139 = vmatprep.subr.bf16.mxu0 %v1374
    %2140 = vmatpush1.bf16.msra.mxu0 %v1373
    %2141 = vmatprep.subr.bf16.mxu0 %v1380
    %2142 = vmatpush1.bf16.msra.mxu0 %v1379
    %2143 = vmatprep.subr.bf16.mxu0 %v1386
    %2144 = vmatpush1.bf16.msra.mxu0 %v1385
    %2145 = vmatprep.mubr.bf16.mxu0 %v411
    %2146 = vmatmul.mubr.bf16.gmra.mrb[0].mxu0 %v403
    %v2147 = vpop.f32.mrb[0].mxu0
    %v2148 = vadd.f32 0.0, %v2147
    %v2149 = vpop.f32.mrb[0].mxu0
    %v2150 = vadd.f32 0.0, %v2149
    %v2151 = vpop.f32.mrb[0].mxu0
    %v2152 = vpop.f32.mrb[0].mxu0
    %2153 = vdwg.mxu0
    %2154 = vmatprep.subr.bf16.mxu0 %v1392
    %2155 = vmatpush1.bf16.msra.mxu0 %v1391
    %2156 = vmatprep.subr.bf16.mxu0 %v1398
    %2157 = vmatpush1.bf16.msra.mxu0 %v1397
    %2158 = vmatprep.subr.bf16.mxu0 %v1404
    %2159 = vmatpush1.bf16.msra.mxu0 %v1403
    %2160 = vmatprep.subr.bf16.mxu0 %v1410
    %2161 = vmatpush1.bf16.msra.mxu0 %v1409
    %2162 = vmatprep.subr.bf16.mxu0 %v1416
    %2163 = vmatpush1.bf16.msra.mxu0 %v1415
    %2164 = vmatprep.subr.bf16.mxu0 %v1422
    %2165 = vmatpush1.bf16.msra.mxu0 %v1421
    %2166 = vmatprep.subr.bf16.mxu0 %v1428
    %2167 = vmatpush1.bf16.msra.mxu0 %v1427
    %2168 = vmatprep.subr.bf16.mxu0 %v1434
    %2169 = vmatpush1.bf16.msra.mxu0 %v1433
    %2170 = vmatprep.subr.bf16.mxu0 %v1440
    %2171 = vmatpush1.bf16.msra.mxu0 %v1439
    %2172 = vmatprep.subr.bf16.mxu0 %v1446
    %2173 = vmatpush1.bf16.msra.mxu0 %v1445
    %2174 = vmatprep.subr.bf16.mxu0 %v1452
    %2175 = vmatpush1.bf16.msra.mxu0 %v1451
    %2176 = vmatprep.subr.bf16.mxu0 %v1458
    %2177 = vmatpush1.bf16.msra.mxu0 %v1457
    %2178 = vmatprep.subr.bf16.mxu0 %v1464
    %2179 = vmatpush1.bf16.msra.mxu0 %v1463
    %2180 = vmatprep.subr.bf16.mxu0 %v1470
    %2181 = vmatpush1.bf16.msra.mxu0 %v1469
    %2182 = vmatprep.subr.bf16.mxu0 %v1476
    %2183 = vmatpush1.bf16.msra.mxu0 %v1475
    %2184 = vmatprep.subr.bf16.mxu0 %v1482
    %2185 = vmatpush1.bf16.msra.mxu0 %v1481
    %2186 = vmatprep.mubr.bf16.mxu0 %v412
    %2187 = vmatmul.mubr.bf16.gmra.mrb[0].mxu0 %v410
    %v2188 = vpop.f32.mrb[0].mxu0
    %v2189 = vadd.f32 %v2148, %v2188
    %v2190 = vpop.f32.mrb[0].mxu0
    %v2191 = vadd.f32 %v2150, %v2190
    %v2192 = vpop.f32.mrb[0].mxu0
    %v2193 = vpop.f32.mrb[0].mxu0
    %2194 = vdwg.mxu0
    %2195 = vmatprep.subr.bf16.mxu0 %v1488
    %2196 = vmatpush1.bf16.msra.mxu0 %v1487
    %2197 = vmatprep.subr.bf16.mxu0 %v1494
    %2198 = vmatpush1.bf16.msra.mxu0 %v1493
    %2199 = vmatprep.subr.bf16.mxu0 %v1500
    %2200 = vmatpush1.bf16.msra.mxu0 %v1499
    %2201 = vmatprep.subr.bf16.mxu0 %v1506
    %2202 = vmatpush1.bf16.msra.mxu0 %v1505
    %2203 = vmatprep.subr.bf16.mxu0 %v1512
    %2204 = vmatpush1.bf16.msra.mxu0 %v1511
    %2205 = vmatprep.subr.bf16.mxu0 %v1518
    %2206 = vmatpush1.bf16.msra.mxu0 %v1517
    %2207 = vmatprep.subr.bf16.mxu0 %v1524
    %2208 = vmatpush1.bf16.msra.mxu0 %v1523
    %2209 = vmatprep.subr.bf16.mxu0 %v1530
    %2210 = vmatpush1.bf16.msra.mxu0 %v1529
    %2211 = vmatprep.subr.bf16.mxu0 %v1536
    %2212 = vmatpush1.bf16.msra.mxu0 %v1535
    %2213 = vmatprep.subr.bf16.mxu0 %v1542
    %2214 = vmatpush1.bf16.msra.mxu0 %v1541
    %2215 = vmatprep.subr.bf16.mxu0 %v1548
    %2216 = vmatpush1.bf16.msra.mxu0 %v1547
    %2217 = vmatprep.subr.bf16.mxu0 %v1554
    %2218 = vmatpush1.bf16.msra.mxu0 %v1553
    %2219 = vmatprep.subr.bf16.mxu0 %v1560
    %2220 = vmatpush1.bf16.msra.mxu0 %v1559
    %2221 = vmatprep.subr.bf16.mxu0 %v1566
    %2222 = vmatpush1.bf16.msra.mxu0 %v1565
    %2223 = vmatprep.subr.bf16.mxu0 %v1572
    %2224 = vmatpush1.bf16.msra.mxu0 %v1571
    %2225 = vmatprep.subr.bf16.mxu0 %v1578
    %2226 = vmatpush1.bf16.msra.mxu0 %v1577
    %2227 = vmatprep.mubr.bf16.mxu0 %v420
    %2228 = vmatmul.mubr.bf16.gmra.mrb[0].mxu0 %v419
    %v2229 = vpop.f32.mrb[0].mxu0
    %v2230 = vadd.f32 %v2189, %v2229
    %v2231 = vpop.f32.mrb[0].mxu0
    %v2232 = vadd.f32 %v2191, %v2231
    %v2233 = vpop.f32.mrb[0].mxu0
    %v2234 = vpop.f32.mrb[0].mxu0
    %2235 = vdwg.mxu0
    %v2236 = vpack.c.bf16 %v1984, %v1984
    %v2237 = vpack.c.bf16 %v1986, %v1986
    %v2238 = vpack.c.bf16 %v2107, %v2107
    %v2239 = vpack.c.bf16 %v2109, %v2109
    %v2240 = vpack.c.bf16 %v2230, %v2230
    %v2241 = vpack.c.bf16 %v2232, %v2232
    %v2242 = vld [vmem:[#allocation2] sm:$0xff]
    %v2243 = vld [vmem:[#allocation2 + $0x8] sm:$0xff]
    %v2244 = vld [vmem:[#allocation2 + $0x10] sm:$0xff]
    %v2245 = vld [vmem:[#allocation2 + $0x18] sm:$0xff]
    %v2246 = vld [vmem:[#allocation2 + $0x20] sm:$0xff]
    %v2247 = vld [vmem:[#allocation2 + $0x28] sm:$0xff]
    %v2248 = vld [vmem:[#allocation2 + $0x30] sm:$0xff]
    %v2249 = vld [vmem:[#allocation2 + $0x38] sm:$0xff]
    %v2250 = vld [vmem:[#allocation2 + $0x40] sm:$0xff]
    %v2251 = vld [vmem:[#allocation2 + $0x48] sm:$0xff]
    %v2252 = vld [vmem:[#allocation2 + $0x50] sm:$0xff]
    %v2253 = vld [vmem:[#allocation2 + $0x58] sm:$0xff]
    %v2254 = vld [vmem:[#allocation2 + $0x60] sm:$0xff]
    %v2255 = vld [vmem:[#allocation2 + $0x68] sm:$0xff]
    %v2256 = vld [vmem:[#allocation2 + $0x70] sm:$0xff]
    %v2257 = vld [vmem:[#allocation2 + $0x78] sm:$0xff]
    %v2258 = vld [vmem:[#allocation2 + $0x80] sm:$0xff]
    %v2259 = vld [vmem:[#allocation2 + $0x88] sm:$0xff]
    %v2260 = vld [vmem:[#allocation2 + $0x90] sm:$0xff]
    %v2261 = vld [vmem:[#allocation2 + $0x98] sm:$0xff]
    %v2262 = vld [vmem:[#allocation2 + $0xa0] sm:$0xff]
    %v2263 = vld [vmem:[#allocation2 + $0xa8] sm:$0xff]
    %v2264 = vld [vmem:[#allocation2 + $0xb0] sm:$0xff]
    %v2265 = vld [vmem:[#allocation2 + $0xb8] sm:$0xff]
    %v2266 = vld [vmem:[#allocation2 + $0xc0] sm:$0xff]
    %v2267 = vld [vmem:[#allocation2 + $0xc8] sm:$0xff]
    %v2268 = vld [vmem:[#allocation2 + $0xd0] sm:$0xff]
    %v2269 = vld [vmem:[#allocation2 + $0xd8] sm:$0xff]
    %v2270 = vld [vmem:[#allocation2 + $0xe0] sm:$0xff]
    %v2271 = vld [vmem:[#allocation2 + $0xe8] sm:$0xff]
    %v2272 = vld [vmem:[#allocation2 + $0xf0] sm:$0xff]
    %v2273 = vld [vmem:[#allocation2 + $0xf8] sm:$0xff]
    %v2274 = vld [vmem:[#allocation2 + $0x100] sm:$0xff]
    %v2275 = vld [vmem:[#allocation2 + $0x108] sm:$0xff]
    %v2276 = vld [vmem:[#allocation2 + $0x110] sm:$0xff]
    %v2277 = vld [vmem:[#allocation2 + $0x118] sm:$0xff]
    %v2278 = vld [vmem:[#allocation2 + $0x120] sm:$0xff]
    %v2279 = vld [vmem:[#allocation2 + $0x128] sm:$0xff]
    %v2280 = vld [vmem:[#allocation2 + $0x130] sm:$0xff]
    %v2281 = vld [vmem:[#allocation2 + $0x138] sm:$0xff]
    %v2282 = vld [vmem:[#allocation2 + $0x140] sm:$0xff]
    %v2283 = vld [vmem:[#allocation2 + $0x148] sm:$0xff]
    %v2284 = vld [vmem:[#allocation2 + $0x150] sm:$0xff]
    %v2285 = vld [vmem:[#allocation2 + $0x158] sm:$0xff]
    %v2286 = vld [vmem:[#allocation2 + $0x160] sm:$0xff]
    %v2287 = vld [vmem:[#allocation2 + $0x168] sm:$0xff]
    %v2288 = vld [vmem:[#allocation2 + $0x170] sm:$0xff]
    %v2289 = vld [vmem:[#allocation2 + $0x178] sm:$0xff]
    %v2290 = vld [vmem:[#allocation2 + $0x180] sm:$0xff]
    %v2291 = vld [vmem:[#allocation2 + $0x188] sm:$0xff]
    %v2292 = vld [vmem:[#allocation2 + $0x190] sm:$0xff]
    %v2293 = vld [vmem:[#allocation2 + $0x198] sm:$0xff]
    %v2294 = vld [vmem:[#allocation2 + $0x1a0] sm:$0xff]
    %v2295 = vld [vmem:[#allocation2 + $0x1a8] sm:$0xff]
    %v2296 = vld [vmem:[#allocation2 + $0x1b0] sm:$0xff]
    %v2297 = vld [vmem:[#allocation2 + $0x1b8] sm:$0xff]
    %v2298 = vld [vmem:[#allocation2 + $0x1c0] sm:$0xff]
    %v2299 = vld [vmem:[#allocation2 + $0x1c8] sm:$0xff]
    %v2300 = vld [vmem:[#allocation2 + $0x1d0] sm:$0xff]
    %v2301 = vld [vmem:[#allocation2 + $0x1d8] sm:$0xff]
    %v2302 = vld [vmem:[#allocation2 + $0x1e0] sm:$0xff]
    %v2303 = vld [vmem:[#allocation2 + $0x1e8] sm:$0xff]
    %v2304 = vld [vmem:[#allocation2 + $0x1f0] sm:$0xff]
    %v2305 = vld [vmem:[#allocation2 + $0x1f8] sm:$0xff]
    %v2306 = vld [vmem:[#allocation2 + $0x200] sm:$0xff]
    %v2307 = vld [vmem:[#allocation2 + $0x208] sm:$0xff]
    %v2308 = vld [vmem:[#allocation2 + $0x210] sm:$0xff]
    %v2309 = vld [vmem:[#allocation2 + $0x218] sm:$0xff]
    %v2310 = vld [vmem:[#allocation2 + $0x220] sm:$0xff]
    %v2311 = vld [vmem:[#allocation2 + $0x228] sm:$0xff]
    %v2312 = vld [vmem:[#allocation2 + $0x230] sm:$0xff]
    %v2313 = vld [vmem:[#allocation2 + $0x238] sm:$0xff]
    %v2314 = vld [vmem:[#allocation2 + $0x240] sm:$0xff]
    %v2315 = vld [vmem:[#allocation2 + $0x248] sm:$0xff]
    %v2316 = vld [vmem:[#allocation2 + $0x250] sm:$0xff]
    %v2317 = vld [vmem:[#allocation2 + $0x258] sm:$0xff]
    %v2318 = vld [vmem:[#allocation2 + $0x260] sm:$0xff]
    %v2319 = vld [vmem:[#allocation2 + $0x268] sm:$0xff]
    %v2320 = vld [vmem:[#allocation2 + $0x270] sm:$0xff]
    %v2321 = vld [vmem:[#allocation2 + $0x278] sm:$0xff]
    %v2322 = vld [vmem:[#allocation2 + $0x280] sm:$0xff]
    %v2323 = vld [vmem:[#allocation2 + $0x288] sm:$0xff]
    %v2324 = vld [vmem:[#allocation2 + $0x290] sm:$0xff]
    %v2325 = vld [vmem:[#allocation2 + $0x298] sm:$0xff]
    %v2326 = vld [vmem:[#allocation2 + $0x2a0] sm:$0xff]
    %v2327 = vld [vmem:[#allocation2 + $0x2a8] sm:$0xff]
    %v2328 = vld [vmem:[#allocation2 + $0x2b0] sm:$0xff]
    %v2329 = vld [vmem:[#allocation2 + $0x2b8] sm:$0xff]
    %v2330 = vld [vmem:[#allocation2 + $0x2c0] sm:$0xff]
    %v2331 = vld [vmem:[#allocation2 + $0x2c8] sm:$0xff]
    %v2332 = vld [vmem:[#allocation2 + $0x2d0] sm:$0xff]
    %v2333 = vld [vmem:[#allocation2 + $0x2d8] sm:$0xff]
    %v2334 = vld [vmem:[#allocation2 + $0x2e0] sm:$0xff]
    %v2335 = vld [vmem:[#allocation2 + $0x2e8] sm:$0xff]
    %v2336 = vld [vmem:[#allocation2 + $0x2f0] sm:$0xff]
    %v2337 = vld [vmem:[#allocation2 + $0x2f8] sm:$0xff]
    %v2338 = vld [vmem:[#allocation2 + $0x300] sm:$0xff]
    %v2339 = vld [vmem:[#allocation2 + $0x308] sm:$0xff]
    %v2340 = vld [vmem:[#allocation2 + $0x310] sm:$0xff]
    %v2341 = vld [vmem:[#allocation2 + $0x318] sm:$0xff]
    %v2342 = vld [vmem:[#allocation2 + $0x320] sm:$0xff]
    %v2343 = vld [vmem:[#allocation2 + $0x328] sm:$0xff]
    %v2344 = vld [vmem:[#allocation2 + $0x330] sm:$0xff]
    %v2345 = vld [vmem:[#allocation2 + $0x338] sm:$0xff]
    %v2346 = vld [vmem:[#allocation2 + $0x340] sm:$0xff]
    %v2347 = vld [vmem:[#allocation2 + $0x348] sm:$0xff]
    %v2348 = vld [vmem:[#allocation2 + $0x350] sm:$0xff]
    %v2349 = vld [vmem:[#allocation2 + $0x358] sm:$0xff]
    %v2350 = vld [vmem:[#allocation2 + $0x360] sm:$0xff]
    %v2351 = vld [vmem:[#allocation2 + $0x368] sm:$0xff]
    %v2352 = vld [vmem:[#allocation2 + $0x370] sm:$0xff]
    %v2353 = vld [vmem:[#allocation2 + $0x378] sm:$0xff]
    %v2354 = vld [vmem:[#allocation2 + $0x380] sm:$0xff]
    %v2355 = vld [vmem:[#allocation2 + $0x388] sm:$0xff]
    %v2356 = vld [vmem:[#allocation2 + $0x390] sm:$0xff]
    %v2357 = vld [vmem:[#allocation2 + $0x398] sm:$0xff]
    %v2358 = vld [vmem:[#allocation2 + $0x3a0] sm:$0xff]
    %v2359 = vld [vmem:[#allocation2 + $0x3a8] sm:$0xff]
    %v2360 = vld [vmem:[#allocation2 + $0x3b0] sm:$0xff]
    %v2361 = vld [vmem:[#allocation2 + $0x3b8] sm:$0xff]
    %v2362 = vld [vmem:[#allocation2 + $0x3c0] sm:$0xff]
    %v2363 = vld [vmem:[#allocation2 + $0x3c8] sm:$0xff]
    %v2364 = vld [vmem:[#allocation2 + $0x3d0] sm:$0xff]
    %v2365 = vld [vmem:[#allocation2 + $0x3d8] sm:$0xff]
    %v2366 = vld [vmem:[#allocation2 + $0x3e0] sm:$0xff]
    %v2367 = vld [vmem:[#allocation2 + $0x3e8] sm:$0xff]
    %v2368 = vld [vmem:[#allocation2 + $0x3f0] sm:$0xff]
    %v2369 = vld [vmem:[#allocation2 + $0x3f8] sm:$0xff]
    %v2370 = vld [vmem:[#allocation2 + $0x400] sm:$0xff]
    %v2371 = vld [vmem:[#allocation2 + $0x408] sm:$0xff]
    %v2372 = vld [vmem:[#allocation2 + $0x410] sm:$0xff]
    %v2373 = vld [vmem:[#allocation2 + $0x418] sm:$0xff]
    %v2374 = vld [vmem:[#allocation2 + $0x420] sm:$0xff]
    %v2375 = vld [vmem:[#allocation2 + $0x428] sm:$0xff]
    %v2376 = vld [vmem:[#allocation2 + $0x430] sm:$0xff]
    %v2377 = vld [vmem:[#allocation2 + $0x438] sm:$0xff]
    %v2378 = vld [vmem:[#allocation2 + $0x440] sm:$0xff]
    %v2379 = vld [vmem:[#allocation2 + $0x448] sm:$0xff]
    %v2380 = vld [vmem:[#allocation2 + $0x450] sm:$0xff]
    %v2381 = vld [vmem:[#allocation2 + $0x458] sm:$0xff]
    %v2382 = vld [vmem:[#allocation2 + $0x460] sm:$0xff]
    %v2383 = vld [vmem:[#allocation2 + $0x468] sm:$0xff]
    %v2384 = vld [vmem:[#allocation2 + $0x470] sm:$0xff]
    %v2385 = vld [vmem:[#allocation2 + $0x478] sm:$0xff]
    %v2386 = vld [vmem:[#allocation2 + $0x480] sm:$0xff]
    %v2387 = vld [vmem:[#allocation2 + $0x488] sm:$0xff]
    %v2388 = vld [vmem:[#allocation2 + $0x490] sm:$0xff]
    %v2389 = vld [vmem:[#allocation2 + $0x498] sm:$0xff]
    %v2390 = vld [vmem:[#allocation2 + $0x4a0] sm:$0xff]
    %v2391 = vld [vmem:[#allocation2 + $0x4a8] sm:$0xff]
    %v2392 = vld [vmem:[#allocation2 + $0x4b0] sm:$0xff]
    %v2393 = vld [vmem:[#allocation2 + $0x4b8] sm:$0xff]
    %v2394 = vld [vmem:[#allocation2 + $0x4c0] sm:$0xff]
    %v2395 = vld [vmem:[#allocation2 + $0x4c8] sm:$0xff]
    %v2396 = vld [vmem:[#allocation2 + $0x4d0] sm:$0xff]
    %v2397 = vld [vmem:[#allocation2 + $0x4d8] sm:$0xff]
    %v2398 = vld [vmem:[#allocation2 + $0x4e0] sm:$0xff]
    %v2399 = vld [vmem:[#allocation2 + $0x4e8] sm:$0xff]
    %v2400 = vld [vmem:[#allocation2 + $0x4f0] sm:$0xff]
    %v2401 = vld [vmem:[#allocation2 + $0x4f8] sm:$0xff]
    %v2402 = vld [vmem:[#allocation2 + $0x500] sm:$0xff]
    %v2403 = vld [vmem:[#allocation2 + $0x508] sm:$0xff]
    %v2404 = vld [vmem:[#allocation2 + $0x510] sm:$0xff]
    %v2405 = vld [vmem:[#allocation2 + $0x518] sm:$0xff]
    %v2406 = vld [vmem:[#allocation2 + $0x520] sm:$0xff]
    %v2407 = vld [vmem:[#allocation2 + $0x528] sm:$0xff]
    %v2408 = vld [vmem:[#allocation2 + $0x530] sm:$0xff]
    %v2409 = vld [vmem:[#allocation2 + $0x538] sm:$0xff]
    %v2410 = vld [vmem:[#allocation2 + $0x540] sm:$0xff]
    %v2411 = vld [vmem:[#allocation2 + $0x548] sm:$0xff]
    %v2412 = vld [vmem:[#allocation2 + $0x550] sm:$0xff]
    %v2413 = vld [vmem:[#allocation2 + $0x558] sm:$0xff]
    %v2414 = vld [vmem:[#allocation2 + $0x560] sm:$0xff]
    %v2415 = vld [vmem:[#allocation2 + $0x568] sm:$0xff]
    %v2416 = vld [vmem:[#allocation2 + $0x570] sm:$0xff]
    %v2417 = vld [vmem:[#allocation2 + $0x578] sm:$0xff]
    %v2418 = vld [vmem:[#allocation2 + $0x580] sm:$0xff]
    %v2419 = vld [vmem:[#allocation2 + $0x588] sm:$0xff]
    %v2420 = vld [vmem:[#allocation2 + $0x590] sm:$0xff]
    %v2421 = vld [vmem:[#allocation2 + $0x598] sm:$0xff]
    %v2422 = vld [vmem:[#allocation2 + $0x5a0] sm:$0xff]
    %v2423 = vld [vmem:[#allocation2 + $0x5a8] sm:$0xff]
    %v2424 = vld [vmem:[#allocation2 + $0x5b0] sm:$0xff]
    %v2425 = vld [vmem:[#allocation2 + $0x5b8] sm:$0xff]
    %v2426 = vld [vmem:[#allocation2 + $0x5c0] sm:$0xff]
    %v2427 = vld [vmem:[#allocation2 + $0x5c8] sm:$0xff]
    %v2428 = vld [vmem:[#allocation2 + $0x5d0] sm:$0xff]
    %v2429 = vld [vmem:[#allocation2 + $0x5d8] sm:$0xff]
    %v2430 = vld [vmem:[#allocation2 + $0x5e0] sm:$0xff]
    %v2431 = vld [vmem:[#allocation2 + $0x5e8] sm:$0xff]
    %v2432 = vld [vmem:[#allocation2 + $0x5f0] sm:$0xff]
    %v2433 = vld [vmem:[#allocation2 + $0x5f8] sm:$0xff]
    %v2626 = vunpack.c.l.b16 %v2242
    %v2627 = vunpack.c.h.b16 %v2242
    %v2628 = vunpack.c.l.b16 %v2243
    %v2629 = vunpack.c.h.b16 %v2243
    %v2630 = vunpack.c.l.b16 %v2244
    %v2631 = vunpack.c.h.b16 %v2244
    %v2632 = vunpack.c.l.b16 %v2245
    %v2633 = vunpack.c.h.b16 %v2245
    %v2634 = vunpack.c.l.b16 %v2246
    %v2635 = vunpack.c.h.b16 %v2246
    %v2636 = vunpack.c.l.b16 %v2247
    %v2637 = vunpack.c.h.b16 %v2247
    %v2638 = vunpack.c.l.b16 %v2248
    %v2639 = vunpack.c.h.b16 %v2248
    %v2640 = vunpack.c.l.b16 %v2249
    %v2641 = vunpack.c.h.b16 %v2249
    %v2642 = vunpack.c.l.b16 %v2250
    %v2643 = vunpack.c.h.b16 %v2250
    %v2644 = vunpack.c.l.b16 %v2251
    %v2645 = vunpack.c.h.b16 %v2251
    %v2646 = vunpack.c.l.b16 %v2252
    %v2647 = vunpack.c.h.b16 %v2252
    %v2648 = vunpack.c.l.b16 %v2253
    %v2649 = vunpack.c.h.b16 %v2253
    %v2650 = vunpack.c.l.b16 %v2254
    %v2651 = vunpack.c.h.b16 %v2254
    %v2652 = vunpack.c.l.b16 %v2255
    %v2653 = vunpack.c.h.b16 %v2255
    %v2654 = vunpack.c.l.b16 %v2256
    %v2655 = vunpack.c.h.b16 %v2256
    %v2656 = vunpack.c.l.b16 %v2257
    %v2657 = vunpack.c.h.b16 %v2257
    %v2658 = vunpack.c.l.b16 %v2258
    %v2659 = vunpack.c.h.b16 %v2258
    %v2660 = vunpack.c.l.b16 %v2259
    %v2661 = vunpack.c.h.b16 %v2259
    %v2662 = vunpack.c.l.b16 %v2260
    %v2663 = vunpack.c.h.b16 %v2260
    %v2664 = vunpack.c.l.b16 %v2261
    %v2665 = vunpack.c.h.b16 %v2261
    %v2666 = vunpack.c.l.b16 %v2262
    %v2667 = vunpack.c.h.b16 %v2262
    %v2668 = vunpack.c.l.b16 %v2263
    %v2669 = vunpack.c.h.b16 %v2263
    %v2670 = vunpack.c.l.b16 %v2264
    %v2671 = vunpack.c.h.b16 %v2264
    %v2672 = vunpack.c.l.b16 %v2265
    %v2673 = vunpack.c.h.b16 %v2265
    %v2674 = vunpack.c.l.b16 %v2266
    %v2675 = vunpack.c.h.b16 %v2266
    %v2676 = vunpack.c.l.b16 %v2267
    %v2677 = vunpack.c.h.b16 %v2267
    %v2678 = vunpack.c.l.b16 %v2268
    %v2679 = vunpack.c.h.b16 %v2268
    %v2680 = vunpack.c.l.b16 %v2269
    %v2681 = vunpack.c.h.b16 %v2269
    %v2682 = vunpack.c.l.b16 %v2270
    %v2683 = vunpack.c.h.b16 %v2270
    %v2684 = vunpack.c.l.b16 %v2271
    %v2685 = vunpack.c.h.b16 %v2271
    %v2686 = vunpack.c.l.b16 %v2272
    %v2687 = vunpack.c.h.b16 %v2272
    %v2688 = vunpack.c.l.b16 %v2273
    %v2689 = vunpack.c.h.b16 %v2273
    %v2690 = vunpack.c.l.b16 %v2274
    %v2691 = vunpack.c.h.b16 %v2274
    %v2692 = vunpack.c.l.b16 %v2275
    %v2693 = vunpack.c.h.b16 %v2275
    %v2694 = vunpack.c.l.b16 %v2276
    %v2695 = vunpack.c.h.b16 %v2276
    %v2696 = vunpack.c.l.b16 %v2277
    %v2697 = vunpack.c.h.b16 %v2277
    %v2698 = vunpack.c.l.b16 %v2278
    %v2699 = vunpack.c.h.b16 %v2278
    %v2700 = vunpack.c.l.b16 %v2279
    %v2701 = vunpack.c.h.b16 %v2279
    %v2702 = vunpack.c.l.b16 %v2280
    %v2703 = vunpack.c.h.b16 %v2280
    %v2704 = vunpack.c.l.b16 %v2281
    %v2705 = vunpack.c.h.b16 %v2281
    %v2706 = vunpack.c.l.b16 %v2282
    %v2707 = vunpack.c.h.b16 %v2282
    %v2708 = vunpack.c.l.b16 %v2283
    %v2709 = vunpack.c.h.b16 %v2283
    %v2710 = vunpack.c.l.b16 %v2284
    %v2711 = vunpack.c.h.b16 %v2284
    %v2712 = vunpack.c.l.b16 %v2285
    %v2713 = vunpack.c.h.b16 %v2285
    %v2714 = vunpack.c.l.b16 %v2286
    %v2715 = vunpack.c.h.b16 %v2286
    %v2716 = vunpack.c.l.b16 %v2287
    %v2717 = vunpack.c.h.b16 %v2287
    %v2718 = vunpack.c.l.b16 %v2288
    %v2719 = vunpack.c.h.b16 %v2288
    %v2720 = vunpack.c.l.b16 %v2289
    %v2721 = vunpack.c.h.b16 %v2289
    %v2722 = vunpack.c.l.b16 %v2290
    %v2723 = vunpack.c.h.b16 %v2290
    %v2724 = vunpack.c.l.b16 %v2291
    %v2725 = vunpack.c.h.b16 %v2291
    %v2726 = vunpack.c.l.b16 %v2292
    %v2727 = vunpack.c.h.b16 %v2292
    %v2728 = vunpack.c.l.b16 %v2293
    %v2729 = vunpack.c.h.b16 %v2293
    %v2730 = vunpack.c.l.b16 %v2294
    %v2731 = vunpack.c.h.b16 %v2294
    %v2732 = vunpack.c.l.b16 %v2295
    %v2733 = vunpack.c.h.b16 %v2295
    %v2734 = vunpack.c.l.b16 %v2296
    %v2735 = vunpack.c.h.b16 %v2296
    %v2736 = vunpack.c.l.b16 %v2297
    %v2737 = vunpack.c.h.b16 %v2297
    %v2738 = vunpack.c.l.b16 %v2298
    %v2739 = vunpack.c.h.b16 %v2298
    %v2740 = vunpack.c.l.b16 %v2299
    %v2741 = vunpack.c.h.b16 %v2299
    %v2742 = vunpack.c.l.b16 %v2300
    %v2743 = vunpack.c.h.b16 %v2300
    %v2744 = vunpack.c.l.b16 %v2301
    %v2745 = vunpack.c.h.b16 %v2301
    %v2746 = vunpack.c.l.b16 %v2302
    %v2747 = vunpack.c.h.b16 %v2302
    %v2748 = vunpack.c.l.b16 %v2303
    %v2749 = vunpack.c.h.b16 %v2303
    %v2750 = vunpack.c.l.b16 %v2304
    %v2751 = vunpack.c.h.b16 %v2304
    %v2752 = vunpack.c.l.b16 %v2305
    %v2753 = vunpack.c.h.b16 %v2305
    %v2754 = vunpack.c.l.b16 %v2306
    %v2755 = vunpack.c.h.b16 %v2306
    %v2756 = vunpack.c.l.b16 %v2307
    %v2757 = vunpack.c.h.b16 %v2307
    %v2758 = vunpack.c.l.b16 %v2308
    %v2759 = vunpack.c.h.b16 %v2308
    %v2760 = vunpack.c.l.b16 %v2309
    %v2761 = vunpack.c.h.b16 %v2309
    %v2762 = vunpack.c.l.b16 %v2310
    %v2763 = vunpack.c.h.b16 %v2310
    %v2764 = vunpack.c.l.b16 %v2311
    %v2765 = vunpack.c.h.b16 %v2311
    %v2766 = vunpack.c.l.b16 %v2312
    %v2767 = vunpack.c.h.b16 %v2312
    %v2768 = vunpack.c.l.b16 %v2313
    %v2769 = vunpack.c.h.b16 %v2313
    %v2770 = vunpack.c.l.b16 %v2314
    %v2771 = vunpack.c.h.b16 %v2314
    %v2772 = vunpack.c.l.b16 %v2315
    %v2773 = vunpack.c.h.b16 %v2315
    %v2774 = vunpack.c.l.b16 %v2316
    %v2775 = vunpack.c.h.b16 %v2316
    %v2776 = vunpack.c.l.b16 %v2317
    %v2777 = vunpack.c.h.b16 %v2317
    %v2778 = vunpack.c.l.b16 %v2318
    %v2779 = vunpack.c.h.b16 %v2318
    %v2780 = vunpack.c.l.b16 %v2319
    %v2781 = vunpack.c.h.b16 %v2319
    %v2782 = vunpack.c.l.b16 %v2320
    %v2783 = vunpack.c.h.b16 %v2320
    %v2784 = vunpack.c.l.b16 %v2321
    %v2785 = vunpack.c.h.b16 %v2321
    %v2786 = vunpack.c.l.b16 %v2322
    %v2787 = vunpack.c.h.b16 %v2322
    %v2788 = vunpack.c.l.b16 %v2323
    %v2789 = vunpack.c.h.b16 %v2323
    %v2790 = vunpack.c.l.b16 %v2324
    %v2791 = vunpack.c.h.b16 %v2324
    %v2792 = vunpack.c.l.b16 %v2325
    %v2793 = vunpack.c.h.b16 %v2325
    %v2794 = vunpack.c.l.b16 %v2326
    %v2795 = vunpack.c.h.b16 %v2326
    %v2796 = vunpack.c.l.b16 %v2327
    %v2797 = vunpack.c.h.b16 %v2327
    %v2798 = vunpack.c.l.b16 %v2328
    %v2799 = vunpack.c.h.b16 %v2328
    %v2800 = vunpack.c.l.b16 %v2329
    %v2801 = vunpack.c.h.b16 %v2329
    %v2802 = vunpack.c.l.b16 %v2330
    %v2803 = vunpack.c.h.b16 %v2330
    %v2804 = vunpack.c.l.b16 %v2331
    %v2805 = vunpack.c.h.b16 %v2331
    %v2806 = vunpack.c.l.b16 %v2332
    %v2807 = vunpack.c.h.b16 %v2332
    %v2808 = vunpack.c.l.b16 %v2333
    %v2809 = vunpack.c.h.b16 %v2333
    %v2810 = vunpack.c.l.b16 %v2334
    %v2811 = vunpack.c.h.b16 %v2334
    %v2812 = vunpack.c.l.b16 %v2335
    %v2813 = vunpack.c.h.b16 %v2335
    %v2814 = vunpack.c.l.b16 %v2336
    %v2815 = vunpack.c.h.b16 %v2336
    %v2816 = vunpack.c.l.b16 %v2337
    %v2817 = vunpack.c.h.b16 %v2337
    %v2818 = vunpack.c.l.b16 %v2338
    %v2819 = vunpack.c.h.b16 %v2338
    %v2820 = vunpack.c.l.b16 %v2339
    %v2821 = vunpack.c.h.b16 %v2339
    %v2822 = vunpack.c.l.b16 %v2340
    %v2823 = vunpack.c.h.b16 %v2340
    %v2824 = vunpack.c.l.b16 %v2341
    %v2825 = vunpack.c.h.b16 %v2341
    %v2826 = vunpack.c.l.b16 %v2342
    %v2827 = vunpack.c.h.b16 %v2342
    %v2828 = vunpack.c.l.b16 %v2343
    %v2829 = vunpack.c.h.b16 %v2343
    %v2830 = vunpack.c.l.b16 %v2344
    %v2831 = vunpack.c.h.b16 %v2344
    %v2832 = vunpack.c.l.b16 %v2345
    %v2833 = vunpack.c.h.b16 %v2345
    %v2834 = vunpack.c.l.b16 %v2346
    %v2835 = vunpack.c.h.b16 %v2346
    %v2836 = vunpack.c.l.b16 %v2347
    %v2837 = vunpack.c.h.b16 %v2347
    %v2838 = vunpack.c.l.b16 %v2348
    %v2839 = vunpack.c.h.b16 %v2348
    %v2840 = vunpack.c.l.b16 %v2349
    %v2841 = vunpack.c.h.b16 %v2349
    %v2842 = vunpack.c.l.b16 %v2350
    %v2843 = vunpack.c.h.b16 %v2350
    %v2844 = vunpack.c.l.b16 %v2351
    %v2845 = vunpack.c.h.b16 %v2351
    %v2846 = vunpack.c.l.b16 %v2352
    %v2847 = vunpack.c.h.b16 %v2352
    %v2848 = vunpack.c.l.b16 %v2353
    %v2849 = vunpack.c.h.b16 %v2353
    %v2850 = vunpack.c.l.b16 %v2354
    %v2851 = vunpack.c.h.b16 %v2354
    %v2852 = vunpack.c.l.b16 %v2355
    %v2853 = vunpack.c.h.b16 %v2355
    %v2854 = vunpack.c.l.b16 %v2356
    %v2855 = vunpack.c.h.b16 %v2356
    %v2856 = vunpack.c.l.b16 %v2357
    %v2857 = vunpack.c.h.b16 %v2357
    %v2858 = vunpack.c.l.b16 %v2358
    %v2859 = vunpack.c.h.b16 %v2358
    %v2860 = vunpack.c.l.b16 %v2359
    %v2861 = vunpack.c.h.b16 %v2359
    %v2862 = vunpack.c.l.b16 %v2360
    %v2863 = vunpack.c.h.b16 %v2360
    %v2864 = vunpack.c.l.b16 %v2361
    %v2865 = vunpack.c.h.b16 %v2361
    %v2866 = vunpack.c.l.b16 %v2362
    %v2867 = vunpack.c.h.b16 %v2362
    %v2868 = vunpack.c.l.b16 %v2363
    %v2869 = vunpack.c.h.b16 %v2363
    %v2870 = vunpack.c.l.b16 %v2364
    %v2871 = vunpack.c.h.b16 %v2364
    %v2872 = vunpack.c.l.b16 %v2365
    %v2873 = vunpack.c.h.b16 %v2365
    %v2874 = vunpack.c.l.b16 %v2366
    %v2875 = vunpack.c.h.b16 %v2366
    %v2876 = vunpack.c.l.b16 %v2367
    %v2877 = vunpack.c.h.b16 %v2367
    %v2878 = vunpack.c.l.b16 %v2368
    %v2879 = vunpack.c.h.b16 %v2368
    %v2880 = vunpack.c.l.b16 %v2369
    %v2881 = vunpack.c.h.b16 %v2369
    %v2882 = vunpack.c.l.b16 %v2370
    %v2883 = vunpack.c.h.b16 %v2370
    %v2884 = vunpack.c.l.b16 %v2371
    %v2885 = vunpack.c.h.b16 %v2371
    %v2886 = vunpack.c.l.b16 %v2372
    %v2887 = vunpack.c.h.b16 %v2372
    %v2888 = vunpack.c.l.b16 %v2373
    %v2889 = vunpack.c.h.b16 %v2373
    %v2890 = vunpack.c.l.b16 %v2374
    %v2891 = vunpack.c.h.b16 %v2374
    %v2892 = vunpack.c.l.b16 %v2375
    %v2893 = vunpack.c.h.b16 %v2375
    %v2894 = vunpack.c.l.b16 %v2376
    %v2895 = vunpack.c.h.b16 %v2376
    %v2896 = vunpack.c.l.b16 %v2377
    %v2897 = vunpack.c.h.b16 %v2377
    %v2898 = vunpack.c.l.b16 %v2378
    %v2899 = vunpack.c.h.b16 %v2378
    %v2900 = vunpack.c.l.b16 %v2379
    %v2901 = vunpack.c.h.b16 %v2379
    %v2902 = vunpack.c.l.b16 %v2380
    %v2903 = vunpack.c.h.b16 %v2380
    %v2904 = vunpack.c.l.b16 %v2381
    %v2905 = vunpack.c.h.b16 %v2381
    %v2906 = vunpack.c.l.b16 %v2382
    %v2907 = vunpack.c.h.b16 %v2382
    %v2908 = vunpack.c.l.b16 %v2383
    %v2909 = vunpack.c.h.b16 %v2383
    %v2910 = vunpack.c.l.b16 %v2384
    %v2911 = vunpack.c.h.b16 %v2384
    %v2912 = vunpack.c.l.b16 %v2385
    %v2913 = vunpack.c.h.b16 %v2385
    %v2914 = vunpack.c.l.b16 %v2386
    %v2915 = vunpack.c.h.b16 %v2386
    %v2916 = vunpack.c.l.b16 %v2387
    %v2917 = vunpack.c.h.b16 %v2387
    %v2918 = vunpack.c.l.b16 %v2388
    %v2919 = vunpack.c.h.b16 %v2388
    %v2920 = vunpack.c.l.b16 %v2389
    %v2921 = vunpack.c.h.b16 %v2389
    %v2922 = vunpack.c.l.b16 %v2390
    %v2923 = vunpack.c.h.b16 %v2390
    %v2924 = vunpack.c.l.b16 %v2391
    %v2925 = vunpack.c.h.b16 %v2391
    %v2926 = vunpack.c.l.b16 %v2392
    %v2927 = vunpack.c.h.b16 %v2392
    %v2928 = vunpack.c.l.b16 %v2393
    %v2929 = vunpack.c.h.b16 %v2393
    %v2930 = vunpack.c.l.b16 %v2394
    %v2931 = vunpack.c.h.b16 %v2394
    %v2932 = vunpack.c.l.b16 %v2395
    %v2933 = vunpack.c.h.b16 %v2395
    %v2934 = vunpack.c.l.b16 %v2396
    %v2935 = vunpack.c.h.b16 %v2396
    %v2936 = vunpack.c.l.b16 %v2397
    %v2937 = vunpack.c.h.b16 %v2397
    %v2938 = vunpack.c.l.b16 %v2398
    %v2939 = vunpack.c.h.b16 %v2398
    %v2940 = vunpack.c.l.b16 %v2399
    %v2941 = vunpack.c.h.b16 %v2399
    %v2942 = vunpack.c.l.b16 %v2400
    %v2943 = vunpack.c.h.b16 %v2400
    %v2944 = vunpack.c.l.b16 %v2401
    %v2945 = vunpack.c.h.b16 %v2401
    %v2946 = vunpack.c.l.b16 %v2402
    %v2947 = vunpack.c.h.b16 %v2402
    %v2948 = vunpack.c.l.b16 %v2403
    %v2949 = vunpack.c.h.b16 %v2403
    %v2950 = vunpack.c.l.b16 %v2404
    %v2951 = vunpack.c.h.b16 %v2404
    %v2952 = vunpack.c.l.b16 %v2405
    %v2953 = vunpack.c.h.b16 %v2405
    %v2954 = vunpack.c.l.b16 %v2406
    %v2955 = vunpack.c.h.b16 %v2406
    %v2956 = vunpack.c.l.b16 %v2407
    %v2957 = vunpack.c.h.b16 %v2407
    %v2958 = vunpack.c.l.b16 %v2408
    %v2959 = vunpack.c.h.b16 %v2408
    %v2960 = vunpack.c.l.b16 %v2409
    %v2961 = vunpack.c.h.b16 %v2409
    %v2962 = vunpack.c.l.b16 %v2410
    %v2963 = vunpack.c.h.b16 %v2410
    %v2964 = vunpack.c.l.b16 %v2411
    %v2965 = vunpack.c.h.b16 %v2411
    %v2966 = vunpack.c.l.b16 %v2412
    %v2967 = vunpack.c.h.b16 %v2412
    %v2968 = vunpack.c.l.b16 %v2413
    %v2969 = vunpack.c.h.b16 %v2413
    %v2970 = vunpack.c.l.b16 %v2414
    %v2971 = vunpack.c.h.b16 %v2414
    %v2972 = vunpack.c.l.b16 %v2415
    %v2973 = vunpack.c.h.b16 %v2415
    %v2974 = vunpack.c.l.b16 %v2416
    %v2975 = vunpack.c.h.b16 %v2416
    %v2976 = vunpack.c.l.b16 %v2417
    %v2977 = vunpack.c.h.b16 %v2417
    %v2978 = vunpack.c.l.b16 %v2418
    %v2979 = vunpack.c.h.b16 %v2418
    %v2980 = vunpack.c.l.b16 %v2419
    %v2981 = vunpack.c.h.b16 %v2419
    %v2982 = vunpack.c.l.b16 %v2420
    %v2983 = vunpack.c.h.b16 %v2420
    %v2984 = vunpack.c.l.b16 %v2421
    %v2985 = vunpack.c.h.b16 %v2421
    %v2986 = vunpack.c.l.b16 %v2422
    %v2987 = vunpack.c.h.b16 %v2422
    %v2988 = vunpack.c.l.b16 %v2423
    %v2989 = vunpack.c.h.b16 %v2423
    %v2990 = vunpack.c.l.b16 %v2424
    %v2991 = vunpack.c.h.b16 %v2424
    %v2992 = vunpack.c.l.b16 %v2425
    %v2993 = vunpack.c.h.b16 %v2425
    %v2994 = vunpack.c.l.b16 %v2426
    %v2995 = vunpack.c.h.b16 %v2426
    %v2996 = vunpack.c.l.b16 %v2427
    %v2997 = vunpack.c.h.b16 %v2427
    %v2998 = vunpack.c.l.b16 %v2428
    %v2999 = vunpack.c.h.b16 %v2428
    %v3000 = vunpack.c.l.b16 %v2429
    %v3001 = vunpack.c.h.b16 %v2429
    %v3002 = vunpack.c.l.b16 %v2430
    %v3003 = vunpack.c.h.b16 %v2430
    %v3004 = vunpack.c.l.b16 %v2431
    %v3005 = vunpack.c.h.b16 %v2431
    %v3006 = vunpack.c.l.b16 %v2432
    %v3007 = vunpack.c.h.b16 %v2432
    %v3008 = vunpack.c.l.b16 %v2433
    %v3009 = vunpack.c.h.b16 %v2433
    %v3010 = vpack.c.b16 %v2630, %v2626
    %v3011 = vpack.c.b16 %v2631, %v2627
    %v3012 = vpack.c.b16 %v2632, %v2628
    %v3013 = vpack.c.b16 %v2633, %v2629
    %v3014 = vpack.c.b16 %v2638, %v2634
    %v3015 = vpack.c.b16 %v2639, %v2635
    %v3016 = vpack.c.b16 %v2640, %v2636
    %v3017 = vpack.c.b16 %v2641, %v2637
    %v3018 = vpack.c.b16 %v2646, %v2642
    %v3019 = vpack.c.b16 %v2647, %v2643
    %v3020 = vpack.c.b16 %v2648, %v2644
    %v3021 = vpack.c.b16 %v2649, %v2645
    %v3022 = vpack.c.b16 %v2654, %v2650
    %v3023 = vpack.c.b16 %v2655, %v2651
    %v3024 = vpack.c.b16 %v2656, %v2652
    %v3025 = vpack.c.b16 %v2657, %v2653
    %v3026 = vpack.c.b16 %v2662, %v2658
    %v3027 = vpack.c.b16 %v2663, %v2659
    %v3028 = vpack.c.b16 %v2664, %v2660
    %v3029 = vpack.c.b16 %v2665, %v2661
    %v3030 = vpack.c.b16 %v2670, %v2666
    %v3031 = vpack.c.b16 %v2671, %v2667
    %v3032 = vpack.c.b16 %v2672, %v2668
    %v3033 = vpack.c.b16 %v2673, %v2669
    %v3034 = vpack.c.b16 %v2678, %v2674
    %v3035 = vpack.c.b16 %v2679, %v2675
    %v3036 = vpack.c.b16 %v2680, %v2676
    %v3037 = vpack.c.b16 %v2681, %v2677
    %v3038 = vpack.c.b16 %v2686, %v2682
    %v3039 = vpack.c.b16 %v2687, %v2683
    %v3040 = vpack.c.b16 %v2688, %v2684
    %v3041 = vpack.c.b16 %v2689, %v2685
    %v3042 = vpack.c.b16 %v2694, %v2690
    %v3043 = vpack.c.b16 %v2695, %v2691
    %v3044 = vpack.c.b16 %v2696, %v2692
    %v3045 = vpack.c.b16 %v2697, %v2693
    %v3046 = vpack.c.b16 %v2702, %v2698
    %v3047 = vpack.c.b16 %v2703, %v2699
    %v3048 = vpack.c.b16 %v2704, %v2700
    %v3049 = vpack.c.b16 %v2705, %v2701
    %v3050 = vpack.c.b16 %v2710, %v2706
    %v3051 = vpack.c.b16 %v2711, %v2707
    %v3052 = vpack.c.b16 %v2712, %v2708
    %v3053 = vpack.c.b16 %v2713, %v2709
    %v3054 = vpack.c.b16 %v2718, %v2714
    %v3055 = vpack.c.b16 %v2719, %v2715
    %v3056 = vpack.c.b16 %v2720, %v2716
    %v3057 = vpack.c.b16 %v2721, %v2717
    %v3058 = vpack.c.b16 %v2726, %v2722
    %v3059 = vpack.c.b16 %v2727, %v2723
    %v3060 = vpack.c.b16 %v2728, %v2724
    %v3061 = vpack.c.b16 %v2729, %v2725
    %v3062 = vpack.c.b16 %v2734, %v2730
    %v3063 = vpack.c.b16 %v2735, %v2731
    %v3064 = vpack.c.b16 %v2736, %v2732
    %v3065 = vpack.c.b16 %v2737, %v2733
    %v3066 = vpack.c.b16 %v2742, %v2738
    %v3067 = vpack.c.b16 %v2743, %v2739
    %v3068 = vpack.c.b16 %v2744, %v2740
    %v3069 = vpack.c.b16 %v2745, %v2741
    %v3070 = vpack.c.b16 %v2750, %v2746
    %v3071 = vpack.c.b16 %v2751, %v2747
    %v3072 = vpack.c.b16 %v2752, %v2748
    %v3073 = vpack.c.b16 %v2753, %v2749
    %v3074 = vpack.c.b16 %v2758, %v2754
    %v3075 = vpack.c.b16 %v2759, %v2755
    %v3076 = vpack.c.b16 %v2760, %v2756
    %v3077 = vpack.c.b16 %v2761, %v2757
    %v3078 = vpack.c.b16 %v2766, %v2762
    %v3079 = vpack.c.b16 %v2767, %v2763
    %v3080 = vpack.c.b16 %v2768, %v2764
    %v3081 = vpack.c.b16 %v2769, %v2765
    %v3082 = vpack.c.b16 %v2774, %v2770
    %v3083 = vpack.c.b16 %v2775, %v2771
    %v3084 = vpack.c.b16 %v2776, %v2772
    %v3085 = vpack.c.b16 %v2777, %v2773
    %v3086 = vpack.c.b16 %v2782, %v2778
    %v3087 = vpack.c.b16 %v2783, %v2779
    %v3088 = vpack.c.b16 %v2784, %v2780
    %v3089 = vpack.c.b16 %v2785, %v2781
    %v3090 = vpack.c.b16 %v2790, %v2786
    %v3091 = vpack.c.b16 %v2791, %v2787
    %v3092 = vpack.c.b16 %v2792, %v2788
    %v3093 = vpack.c.b16 %v2793, %v2789
    %v3094 = vpack.c.b16 %v2798, %v2794
    %v3095 = vpack.c.b16 %v2799, %v2795
    %v3096 = vpack.c.b16 %v2800, %v2796
    %v3097 = vpack.c.b16 %v2801, %v2797
    %v3098 = vpack.c.b16 %v2806, %v2802
    %v3099 = vpack.c.b16 %v2807, %v2803
    %v3100 = vpack.c.b16 %v2808, %v2804
    %v3101 = vpack.c.b16 %v2809, %v2805
    %v3102 = vpack.c.b16 %v2814, %v2810
    %v3103 = vpack.c.b16 %v2815, %v2811
    %v3104 = vpack.c.b16 %v2816, %v2812
    %v3105 = vpack.c.b16 %v2817, %v2813
    %v3106 = vpack.c.b16 %v2822, %v2818
    %v3107 = vpack.c.b16 %v2823, %v2819
    %v3108 = vpack.c.b16 %v2824, %v2820
    %v3109 = vpack.c.b16 %v2825, %v2821
    %v3110 = vpack.c.b16 %v2830, %v2826
    %v3111 = vpack.c.b16 %v2831, %v2827
    %v3112 = vpack.c.b16 %v2832, %v2828
    %v3113 = vpack.c.b16 %v2833, %v2829
    %v3114 = vpack.c.b16 %v2838, %v2834
    %v3115 = vpack.c.b16 %v2839, %v2835
    %v3116 = vpack.c.b16 %v2840, %v2836
    %v3117 = vpack.c.b16 %v2841, %v2837
    %v3118 = vpack.c.b16 %v2846, %v2842
    %v3119 = vpack.c.b16 %v2847, %v2843
    %v3120 = vpack.c.b16 %v2848, %v2844
    %v3121 = vpack.c.b16 %v2849, %v2845
    %v3122 = vpack.c.b16 %v2854, %v2850
    %v3123 = vpack.c.b16 %v2855, %v2851
    %v3124 = vpack.c.b16 %v2856, %v2852
    %v3125 = vpack.c.b16 %v2857, %v2853
    %v3126 = vpack.c.b16 %v2862, %v2858
    %v3127 = vpack.c.b16 %v2863, %v2859
    %v3128 = vpack.c.b16 %v2864, %v2860
    %v3129 = vpack.c.b16 %v2865, %v2861
    %v3130 = vpack.c.b16 %v2870, %v2866
    %v3131 = vpack.c.b16 %v2871, %v2867
    %v3132 = vpack.c.b16 %v2872, %v2868
    %v3133 = vpack.c.b16 %v2873, %v2869
    %v3134 = vpack.c.b16 %v2878, %v2874
    %v3135 = vpack.c.b16 %v2879, %v2875
    %v3136 = vpack.c.b16 %v2880, %v2876
    %v3137 = vpack.c.b16 %v2881, %v2877
    %v3138 = vpack.c.b16 %v2886, %v2882
    %v3139 = vpack.c.b16 %v2887, %v2883
    %v3140 = vpack.c.b16 %v2888, %v2884
    %v3141 = vpack.c.b16 %v2889, %v2885
    %v3142 = vpack.c.b16 %v2894, %v2890
    %v3143 = vpack.c.b16 %v2895, %v2891
    %v3144 = vpack.c.b16 %v2896, %v2892
    %v3145 = vpack.c.b16 %v2897, %v2893
    %v3146 = vpack.c.b16 %v2902, %v2898
    %v3147 = vpack.c.b16 %v2903, %v2899
    %v3148 = vpack.c.b16 %v2904, %v2900
    %v3149 = vpack.c.b16 %v2905, %v2901
    %v3150 = vpack.c.b16 %v2910, %v2906
    %v3151 = vpack.c.b16 %v2911, %v2907
    %v3152 = vpack.c.b16 %v2912, %v2908
    %v3153 = vpack.c.b16 %v2913, %v2909
    %v3154 = vpack.c.b16 %v2918, %v2914
    %v3155 = vpack.c.b16 %v2919, %v2915
    %v3156 = vpack.c.b16 %v2920, %v2916
    %v3157 = vpack.c.b16 %v2921, %v2917
    %v3158 = vpack.c.b16 %v2926, %v2922
    %v3159 = vpack.c.b16 %v2927, %v2923
    %v3160 = vpack.c.b16 %v2928, %v2924
    %v3161 = vpack.c.b16 %v2929, %v2925
    %v3162 = vpack.c.b16 %v2934, %v2930
    %v3163 = vpack.c.b16 %v2935, %v2931
    %v3164 = vpack.c.b16 %v2936, %v2932
    %v3165 = vpack.c.b16 %v2937, %v2933
    %v3166 = vpack.c.b16 %v2942, %v2938
    %v3167 = vpack.c.b16 %v2943, %v2939
    %v3168 = vpack.c.b16 %v2944, %v2940
    %v3169 = vpack.c.b16 %v2945, %v2941
    %v3170 = vpack.c.b16 %v2950, %v2946
    %v3171 = vpack.c.b16 %v2951, %v2947
    %v3172 = vpack.c.b16 %v2952, %v2948
    %v3173 = vpack.c.b16 %v2953, %v2949
    %v3174 = vpack.c.b16 %v2958, %v2954
    %v3175 = vpack.c.b16 %v2959, %v2955
    %v3176 = vpack.c.b16 %v2960, %v2956
    %v3177 = vpack.c.b16 %v2961, %v2957
    %v3178 = vpack.c.b16 %v2966, %v2962
    %v3179 = vpack.c.b16 %v2967, %v2963
    %v3180 = vpack.c.b16 %v2968, %v2964
    %v3181 = vpack.c.b16 %v2969, %v2965
    %v3182 = vpack.c.b16 %v2974, %v2970
    %v3183 = vpack.c.b16 %v2975, %v2971
    %v3184 = vpack.c.b16 %v2976, %v2972
    %v3185 = vpack.c.b16 %v2977, %v2973
    %v3186 = vpack.c.b16 %v2982, %v2978
    %v3187 = vpack.c.b16 %v2983, %v2979
    %v3188 = vpack.c.b16 %v2984, %v2980
    %v3189 = vpack.c.b16 %v2985, %v2981
    %v3190 = vpack.c.b16 %v2990, %v2986
    %v3191 = vpack.c.b16 %v2991, %v2987
    %v3192 = vpack.c.b16 %v2992, %v2988
    %v3193 = vpack.c.b16 %v2993, %v2989
    %v3194 = vpack.c.b16 %v2998, %v2994
    %v3195 = vpack.c.b16 %v2999, %v2995
    %v3196 = vpack.c.b16 %v3000, %v2996
    %v3197 = vpack.c.b16 %v3001, %v2997
    %v3198 = vpack.c.b16 %v3006, %v3002
    %v3199 = vpack.c.b16 %v3007, %v3003
    %v3200 = vpack.c.b16 %v3008, %v3004
    %v3201 = vpack.c.b16 %v3009, %v3005
    %3394 = vmatprep.subr.bf16.mxu0 %v3011
    %3395 = vmatpush1.bf16.msra.mxu0 %v3010
    %3396 = vmatprep.subr.bf16.mxu0 %v3015
    %3397 = vmatpush1.bf16.msra.mxu0 %v3014
    %3398 = vmatprep.subr.bf16.mxu0 %v3019
    %3399 = vmatpush1.bf16.msra.mxu0 %v3018
    %3400 = vmatprep.subr.bf16.mxu0 %v3023
    %3401 = vmatpush1.bf16.msra.mxu0 %v3022
    %3402 = vmatprep.subr.bf16.mxu0 %v3027
    %3403 = vmatpush1.bf16.msra.mxu0 %v3026
    %3404 = vmatprep.subr.bf16.mxu0 %v3031
    %3405 = vmatpush1.bf16.msra.mxu0 %v3030
    %3406 = vmatprep.subr.bf16.mxu0 %v3035
    %3407 = vmatpush1.bf16.msra.mxu0 %v3034
    %3408 = vmatprep.subr.bf16.mxu0 %v3039
    %3409 = vmatpush1.bf16.msra.mxu0 %v3038
    %3410 = vmatprep.subr.bf16.mxu0 %v3043
    %3411 = vmatpush1.bf16.msra.mxu0 %v3042
    %3412 = vmatprep.subr.bf16.mxu0 %v3047
    %3413 = vmatpush1.bf16.msra.mxu0 %v3046
    %3414 = vmatprep.subr.bf16.mxu0 %v3051
    %3415 = vmatpush1.bf16.msra.mxu0 %v3050
    %3416 = vmatprep.subr.bf16.mxu0 %v3055
    %3417 = vmatpush1.bf16.msra.mxu0 %v3054
    %3418 = vmatprep.subr.bf16.mxu0 %v3059
    %3419 = vmatpush1.bf16.msra.mxu0 %v3058
    %3420 = vmatprep.subr.bf16.mxu0 %v3063
    %3421 = vmatpush1.bf16.msra.mxu0 %v3062
    %3422 = vmatprep.subr.bf16.mxu0 %v3067
    %3423 = vmatpush1.bf16.msra.mxu0 %v3066
    %3424 = vmatprep.subr.bf16.mxu0 %v3071
    %3425 = vmatpush1.bf16.msra.mxu0 %v3070
    %3426 = vmatprep.mubr.bf16.mxu0 %v2237
    %3427 = vmatmul.mubr.bf16.gmra.mrb[0].mxu0 %v2236
    %v3428 = vpop.f32.mrb[0].mxu0
    %v3429 = vadd.f32 0.0, %v3428
    %v3430 = vpop.f32.mrb[0].mxu0
    %v3431 = vadd.f32 0.0, %v3430
    %v3432 = vpop.f32.mrb[0].mxu0
    %v3433 = vpop.f32.mrb[0].mxu0
    %3434 = vdwg.mxu0
    %3435 = vmatprep.subr.bf16.mxu0 %v3075
    %3436 = vmatpush1.bf16.msra.mxu0 %v3074
    %3437 = vmatprep.subr.bf16.mxu0 %v3079
    %3438 = vmatpush1.bf16.msra.mxu0 %v3078
    %3439 = vmatprep.subr.bf16.mxu0 %v3083
    %3440 = vmatpush1.bf16.msra.mxu0 %v3082
    %3441 = vmatprep.subr.bf16.mxu0 %v3087
    %3442 = vmatpush1.bf16.msra.mxu0 %v3086
    %3443 = vmatprep.subr.bf16.mxu0 %v3091
    %3444 = vmatpush1.bf16.msra.mxu0 %v3090
    %3445 = vmatprep.subr.bf16.mxu0 %v3095
    %3446 = vmatpush1.bf16.msra.mxu0 %v3094
    %3447 = vmatprep.subr.bf16.mxu0 %v3099
    %3448 = vmatpush1.bf16.msra.mxu0 %v3098
    %3449 = vmatprep.subr.bf16.mxu0 %v3103
    %3450 = vmatpush1.bf16.msra.mxu0 %v3102
    %3451 = vmatprep.subr.bf16.mxu0 %v3107
    %3452 = vmatpush1.bf16.msra.mxu0 %v3106
    %3453 = vmatprep.subr.bf16.mxu0 %v3111
    %3454 = vmatpush1.bf16.msra.mxu0 %v3110
    %3455 = vmatprep.subr.bf16.mxu0 %v3115
    %3456 = vmatpush1.bf16.msra.mxu0 %v3114
    %3457 = vmatprep.subr.bf16.mxu0 %v3119
    %3458 = vmatpush1.bf16.msra.mxu0 %v3118
    %3459 = vmatprep.subr.bf16.mxu0 %v3123
    %3460 = vmatpush1.bf16.msra.mxu0 %v3122
    %3461 = vmatprep.subr.bf16.mxu0 %v3127
    %3462 = vmatpush1.bf16.msra.mxu0 %v3126
    %3463 = vmatprep.subr.bf16.mxu0 %v3131
    %3464 = vmatpush1.bf16.msra.mxu0 %v3130
    %3465 = vmatprep.subr.bf16.mxu0 %v3135
    %3466 = vmatpush1.bf16.msra.mxu0 %v3134
    %3467 = vmatprep.mubr.bf16.mxu0 %v2239
    %3468 = vmatmul.mubr.bf16.gmra.mrb[0].mxu0 %v2238
    %v3469 = vpop.f32.mrb[0].mxu0
    %v3470 = vadd.f32 %v3429, %v3469
    %v3471 = vpop.f32.mrb[0].mxu0
    %v3472 = vadd.f32 %v3431, %v3471
    %v3473 = vpop.f32.mrb[0].mxu0
    %v3474 = vpop.f32.mrb[0].mxu0
    %3475 = vdwg.mxu0
    %3476 = vmatprep.subr.bf16.mxu0 %v3139
    %3477 = vmatpush1.bf16.msra.mxu0 %v3138
    %3478 = vmatprep.subr.bf16.mxu0 %v3143
    %3479 = vmatpush1.bf16.msra.mxu0 %v3142
    %3480 = vmatprep.subr.bf16.mxu0 %v3147
    %3481 = vmatpush1.bf16.msra.mxu0 %v3146
    %3482 = vmatprep.subr.bf16.mxu0 %v3151
    %3483 = vmatpush1.bf16.msra.mxu0 %v3150
    %3484 = vmatprep.subr.bf16.mxu0 %v3155
    %3485 = vmatpush1.bf16.msra.mxu0 %v3154
    %3486 = vmatprep.subr.bf16.mxu0 %v3159
    %3487 = vmatpush1.bf16.msra.mxu0 %v3158
    %3488 = vmatprep.subr.bf16.mxu0 %v3163
    %3489 = vmatpush1.bf16.msra.mxu0 %v3162
    %3490 = vmatprep.subr.bf16.mxu0 %v3167
    %3491 = vmatpush1.bf16.msra.mxu0 %v3166
    %3492 = vmatprep.subr.bf16.mxu0 %v3171
    %3493 = vmatpush1.bf16.msra.mxu0 %v3170
    %3494 = vmatprep.subr.bf16.mxu0 %v3175
    %3495 = vmatpush1.bf16.msra.mxu0 %v3174
    %3496 = vmatprep.subr.bf16.mxu0 %v3179
    %3497 = vmatpush1.bf16.msra.mxu0 %v3178
    %3498 = vmatprep.subr.bf16.mxu0 %v3183
    %3499 = vmatpush1.bf16.msra.mxu0 %v3182
    %3500 = vmatprep.subr.bf16.mxu0 %v3187
    %3501 = vmatpush1.bf16.msra.mxu0 %v3186
    %3502 = vmatprep.subr.bf16.mxu0 %v3191
    %3503 = vmatpush1.bf16.msra.mxu0 %v3190
    %3504 = vmatprep.subr.bf16.mxu0 %v3195
    %3505 = vmatpush1.bf16.msra.mxu0 %v3194
    %3506 = vmatprep.subr.bf16.mxu0 %v3199
    %3507 = vmatpush1.bf16.msra.mxu0 %v3198
    %3508 = vmatprep.mubr.bf16.mxu0 %v2241
    %3509 = vmatmul.mubr.bf16.gmra.mrb[0].mxu0 %v2240
    %v3510 = vpop.f32.mrb[0].mxu0
    %v3511 = vadd.f32 %v3470, %v3510
    %v3512 = vpop.f32.mrb[0].mxu0
    %v3513 = vadd.f32 %v3472, %v3512
    %v3514 = vpop.f32.mrb[0].mxu0
    %v3515 = vpop.f32.mrb[0].mxu0
    %3516 = vdwg.mxu0
    %3517 = vmatprep.subr.bf16.mxu0 %v3013
    %3518 = vmatpush1.bf16.msra.mxu0 %v3012
    %3519 = vmatprep.subr.bf16.mxu0 %v3017
    %3520 = vmatpush1.bf16.msra.mxu0 %v3016
    %3521 = vmatprep.subr.bf16.mxu0 %v3021
    %3522 = vmatpush1.bf16.msra.mxu0 %v3020
    %3523 = vmatprep.subr.bf16.mxu0 %v3025
    %3524 = vmatpush1.bf16.msra.mxu0 %v3024
    %3525 = vmatprep.subr.bf16.mxu0 %v3029
    %3526 = vmatpush1.bf16.msra.mxu0 %v3028
    %3527 = vmatprep.subr.bf16.mxu0 %v3033
    %3528 = vmatpush1.bf16.msra.mxu0 %v3032
    %3529 = vmatprep.subr.bf16.mxu0 %v3037
    %3530 = vmatpush1.bf16.msra.mxu0 %v3036
    %3531 = vmatprep.subr.bf16.mxu0 %v3041
    %3532 = vmatpush1.bf16.msra.mxu0 %v3040
    %3533 = vmatprep.subr.bf16.mxu0 %v3045
    %3534 = vmatpush1.bf16.msra.mxu0 %v3044
    %3535 = vmatprep.subr.bf16.mxu0 %v3049
    %3536 = vmatpush1.bf16.msra.mxu0 %v3048
    %3537 = vmatprep.subr.bf16.mxu0 %v3053
    %3538 = vmatpush1.bf16.msra.mxu0 %v3052
    %3539 = vmatprep.subr.bf16.mxu0 %v3057
    %3540 = vmatpush1.bf16.msra.mxu0 %v3056
    %3541 = vmatprep.subr.bf16.mxu0 %v3061
    %3542 = vmatpush1.bf16.msra.mxu0 %v3060
    %3543 = vmatprep.subr.bf16.mxu0 %v3065
    %3544 = vmatpush1.bf16.msra.mxu0 %v3064
    %3545 = vmatprep.subr.bf16.mxu0 %v3069
    %3546 = vmatpush1.bf16.msra.mxu0 %v3068
    %3547 = vmatprep.subr.bf16.mxu0 %v3073
    %3548 = vmatpush1.bf16.msra.mxu0 %v3072
    %3549 = vmatprep.mubr.bf16.mxu0 %v2237
    %3550 = vmatmul.mubr.bf16.gmra.mrb[0].mxu0 %v2236
    %v3551 = vpop.f32.mrb[0].mxu0
    %v3552 = vadd.f32 0.0, %v3551
    %v3553 = vpop.f32.mrb[0].mxu0
    %v3554 = vadd.f32 0.0, %v3553
    %v3555 = vpop.f32.mrb[0].mxu0
    %v3556 = vpop.f32.mrb[0].mxu0
    %3557 = vdwg.mxu0
    %3558 = vmatprep.subr.bf16.mxu0 %v3077
    %3559 = vmatpush1.bf16.msra.mxu0 %v3076
    %3560 = vmatprep.subr.bf16.mxu0 %v3081
    %3561 = vmatpush1.bf16.msra.mxu0 %v3080
    %3562 = vmatprep.subr.bf16.mxu0 %v3085
    %3563 = vmatpush1.bf16.msra.mxu0 %v3084
    %3564 = vmatprep.subr.bf16.mxu0 %v3089
    %3565 = vmatpush1.bf16.msra.mxu0 %v3088
    %3566 = vmatprep.subr.bf16.mxu0 %v3093
    %3567 = vmatpush1.bf16.msra.mxu0 %v3092
    %3568 = vmatprep.subr.bf16.mxu0 %v3097
    %3569 = vmatpush1.bf16.msra.mxu0 %v3096
    %3570 = vmatprep.subr.bf16.mxu0 %v3101
    %3571 = vmatpush1.bf16.msra.mxu0 %v3100
    %3572 = vmatprep.subr.bf16.mxu0 %v3105
    %3573 = vmatpush1.bf16.msra.mxu0 %v3104
    %3574 = vmatprep.subr.bf16.mxu0 %v3109
    %3575 = vmatpush1.bf16.msra.mxu0 %v3108
    %3576 = vmatprep.subr.bf16.mxu0 %v3113
    %3577 = vmatpush1.bf16.msra.mxu0 %v3112
    %3578 = vmatprep.subr.bf16.mxu0 %v3117
    %3579 = vmatpush1.bf16.msra.mxu0 %v3116
    %3580 = vmatprep.subr.bf16.mxu0 %v3121
    %3581 = vmatpush1.bf16.msra.mxu0 %v3120
    %3582 = vmatprep.subr.bf16.mxu0 %v3125
    %3583 = vmatpush1.bf16.msra.mxu0 %v3124
    %3584 = vmatprep.subr.bf16.mxu0 %v3129
    %3585 = vmatpush1.bf16.msra.mxu0 %v3128
    %3586 = vmatprep.subr.bf16.mxu0 %v3133
    %3587 = vmatpush1.bf16.msra.mxu0 %v3132
    %3588 = vmatprep.subr.bf16.mxu0 %v3137
    %3589 = vmatpush1.bf16.msra.mxu0 %v3136
    %3590 = vmatprep.mubr.bf16.mxu0 %v2239
    %3591 = vmatmul.mubr.bf16.gmra.mrb[0].mxu0 %v2238
    %v3592 = vpop.f32.mrb[0].mxu0
    %v3593 = vadd.f32 %v3552, %v3592
    %v3594 = vpop.f32.mrb[0].mxu0
    %v3595 = vadd.f32 %v3554, %v3594
    %v3596 = vpop.f32.mrb[0].mxu0
    %v3597 = vpop.f32.mrb[0].mxu0
    %3598 = vdwg.mxu0
    %3599 = vmatprep.subr.bf16.mxu0 %v3141
    %3600 = vmatpush1.bf16.msra.mxu0 %v3140
    %3601 = vmatprep.subr.bf16.mxu0 %v3145
    %3602 = vmatpush1.bf16.msra.mxu0 %v3144
    %3603 = vmatprep.subr.bf16.mxu0 %v3149
    %3604 = vmatpush1.bf16.msra.mxu0 %v3148
    %3605 = vmatprep.subr.bf16.mxu0 %v3153
    %3606 = vmatpush1.bf16.msra.mxu0 %v3152
    %3607 = vmatprep.subr.bf16.mxu0 %v3157
    %3608 = vmatpush1.bf16.msra.mxu0 %v3156
    %3609 = vmatprep.subr.bf16.mxu0 %v3161
    %3610 = vmatpush1.bf16.msra.mxu0 %v3160
    %3611 = vmatprep.subr.bf16.mxu0 %v3165
    %3612 = vmatpush1.bf16.msra.mxu0 %v3164
    %3613 = vmatprep.subr.bf16.mxu0 %v3169
    %3614 = vmatpush1.bf16.msra.mxu0 %v3168
    %3615 = vmatprep.subr.bf16.mxu0 %v3173
    %3616 = vmatpush1.bf16.msra.mxu0 %v3172
    %3617 = vmatprep.subr.bf16.mxu0 %v3177
    %3618 = vmatpush1.bf16.msra.mxu0 %v3176
    %3619 = vmatprep.subr.bf16.mxu0 %v3181
    %3620 = vmatpush1.bf16.msra.mxu0 %v3180
    %3621 = vmatprep.subr.bf16.mxu0 %v3185
    %3622 = vmatpush1.bf16.msra.mxu0 %v3184
    %3623 = vmatprep.subr.bf16.mxu0 %v3189
    %3624 = vmatpush1.bf16.msra.mxu0 %v3188
    %3625 = vmatprep.subr.bf16.mxu0 %v3193
    %3626 = vmatpush1.bf16.msra.mxu0 %v3192
    %3627 = vmatprep.subr.bf16.mxu0 %v3197
    %3628 = vmatpush1.bf16.msra.mxu0 %v3196
    %3629 = vmatprep.subr.bf16.mxu0 %v3201
    %3630 = vmatpush1.bf16.msra.mxu0 %v3200
    %3631 = vmatprep.mubr.bf16.mxu0 %v2241
    %3632 = vmatmul.mubr.bf16.gmra.mrb[0].mxu0 %v2240
    %v3633 = vpop.f32.mrb[0].mxu0
    %v3634 = vadd.f32 %v3593, %v3633
    %v3635 = vpop.f32.mrb[0].mxu0
    %v3636 = vadd.f32 %v3595, %v3635
    %v3637 = vpop.f32.mrb[0].mxu0
    %v3638 = vpop.f32.mrb[0].mxu0
    %3639 = vdwg.mxu0
    %v3640 = vmul.f32 %v3511, %v3511
    %v3641 = vmul.f32 %v3513, %v3513
    %v3642 = vmul.f32 %v3634, %v3634
    %v3643 = vmul.f32 %v3636, %v3636
    %vm3644 = vcmask 1043456
    %v3645 = vsel %vm3644, %v3640, 0.0
    %v3646 = vsel %vm3644, %v3641, 0.0
    %v3647 = vadd.f32 %v3645, %v3646
    %v3648 = vsel %vm3644, %v3642, 0.0
    %v3649 = vadd.f32 %v3647, %v3648
    %v3650 = vsel %vm3644, %v3643, 0.0
    %v3651 = vadd.f32 %v3649, %v3650
    %3652 = vadd.xlane.f32.xlu0 %v3651
    %v3653 = vpop.xlane.xlu0 %3652
    %v3654 = vmax.f32 %v3653, 1e-24
    %v3655 = vrsqrt.pop %v3654
    %v3656 = vmul.f32 %v3511, %v3655
    %v3657 = vmul.f32 %v3513, %v3655
    %v3658 = vmul.f32 %v3634, %v3655
    %v3659 = vmul.f32 %v3636, %v3655
    %v3660 = vpack.c.bf16 %v3656, %v3656
    %v3661 = vpack.c.bf16 %v3657, %v3657
    %v3662 = vpack.c.bf16 %v3658, %v3658
    %v3663 = vpack.c.bf16 %v3659, %v3659
    %v3664 = vld [vmem:[#allocation5] sm:$0xff]
    %v3665 = vld [vmem:[#allocation5 + $0x8] sm:$0xf]
    %v3666 = vld [vmem:[#allocation5 + $0xc] sm:$0xff]
    %v3667 = vld [vmem:[#allocation5 + $0x14] sm:$0xf]
    %v3668 = vld [vmem:[#allocation5 + $0x18] sm:$0xff]
    %v3669 = vld [vmem:[#allocation5 + $0x20] sm:$0xf]
    %v3670 = vld [vmem:[#allocation5 + $0x24] sm:$0xff]
    %v3671 = vld [vmem:[#allocation5 + $0x2c] sm:$0xf]
    %v3672 = vld [vmem:[#allocation5 + $0x30] sm:$0xff]
    %v3673 = vld [vmem:[#allocation5 + $0x38] sm:$0xf]
    %v3674 = vld [vmem:[#allocation5 + $0x3c] sm:$0xff]
    %v3675 = vld [vmem:[#allocation5 + $0x44] sm:$0xf]
    %v3676 = vld [vmem:[#allocation5 + $0x48] sm:$0xff]
    %v3677 = vld [vmem:[#allocation5 + $0x50] sm:$0xf]
    %v3678 = vld [vmem:[#allocation5 + $0x54] sm:$0xff]
    %v3679 = vld [vmem:[#allocation5 + $0x5c] sm:$0xf]
    %v3680 = vld [vmem:[#allocation5 + $0x60] sm:$0xff]
    %v3681 = vld [vmem:[#allocation5 + $0x68] sm:$0xf]
    %v3682 = vld [vmem:[#allocation5 + $0x6c] sm:$0xff]
    %v3683 = vld [vmem:[#allocation5 + $0x74] sm:$0xf]
    %v3684 = vld [vmem:[#allocation5 + $0x78] sm:$0xff]
    %v3685 = vld [vmem:[#allocation5 + $0x80] sm:$0xf]
    %v3686 = vld [vmem:[#allocation5 + $0x84] sm:$0xff]
    %v3687 = vld [vmem:[#allocation5 + $0x8c] sm:$0xf]
    %v3688 = vld [vmem:[#allocation5 + $0x90] sm:$0xff]
    %v3689 = vld [vmem:[#allocation5 + $0x98] sm:$0xf]
    %v3690 = vld [vmem:[#allocation5 + $0x9c] sm:$0xff]
    %v3691 = vld [vmem:[#allocation5 + $0xa4] sm:$0xf]
    %v3692 = vld [vmem:[#allocation5 + $0xa8] sm:$0xff]
    %v3693 = vld [vmem:[#allocation5 + $0xb0] sm:$0xf]
    %v3694 = vld [vmem:[#allocation5 + $0xb4] sm:$0xff]
    %v3695 = vld [vmem:[#allocation5 + $0xbc] sm:$0xf]
    %v3696 = vld [vmem:[#allocation5 + $0xc0] sm:$0xff]
    %v3697 = vld [vmem:[#allocation5 + $0xc8] sm:$0xf]
    %v3698 = vld [vmem:[#allocation5 + $0xcc] sm:$0xff]
    %v3699 = vld [vmem:[#allocation5 + $0xd4] sm:$0xf]
    %v3700 = vld [vmem:[#allocation5 + $0xd8] sm:$0xff]
    %v3701 = vld [vmem:[#allocation5 + $0xe0] sm:$0xf]
    %v3702 = vld [vmem:[#allocation5 + $0xe4] sm:$0xff]
    %v3703 = vld [vmem:[#allocation5 + $0xec] sm:$0xf]
    %v3704 = vld [vmem:[#allocation5 + $0xf0] sm:$0xff]
    %v3705 = vld [vmem:[#allocation5 + $0xf8] sm:$0xf]
    %v3706 = vld [vmem:[#allocation5 + $0xfc] sm:$0xff]
    %v3707 = vld [vmem:[#allocation5 + $0x104] sm:$0xf]
    %v3708 = vld [vmem:[#allocation5 + $0x108] sm:$0xff]
    %v3709 = vld [vmem:[#allocation5 + $0x110] sm:$0xf]
    %v3710 = vld [vmem:[#allocation5 + $0x114] sm:$0xff]
    %v3711 = vld [vmem:[#allocation5 + $0x11c] sm:$0xf]
    %v3712 = vld [vmem:[#allocation5 + $0x120] sm:$0xff]
    %v3713 = vld [vmem:[#allocation5 + $0x128] sm:$0xf]
    %v3714 = vld [vmem:[#allocation5 + $0x12c] sm:$0xff]
    %v3715 = vld [vmem:[#allocation5 + $0x134] sm:$0xf]
    %v3716 = vld [vmem:[#allocation5 + $0x138] sm:$0xff]
    %v3717 = vld [vmem:[#allocation5 + $0x140] sm:$0xf]
    %v3718 = vld [vmem:[#allocation5 + $0x144] sm:$0xff]
    %v3719 = vld [vmem:[#allocation5 + $0x14c] sm:$0xf]
    %v3720 = vld [vmem:[#allocation5 + $0x150] sm:$0xff]
    %v3721 = vld [vmem:[#allocation5 + $0x158] sm:$0xf]
    %v3722 = vld [vmem:[#allocation5 + $0x15c] sm:$0xff]
    %v3723 = vld [vmem:[#allocation5 + $0x164] sm:$0xf]
    %v3724 = vld [vmem:[#allocation5 + $0x168] sm:$0xff]
    %v3725 = vld [vmem:[#allocation5 + $0x170] sm:$0xf]
    %v3726 = vld [vmem:[#allocation5 + $0x174] sm:$0xff]
    %v3727 = vld [vmem:[#allocation5 + $0x17c] sm:$0xf]
    %v3728 = vld [vmem:[#allocation5 + $0x180] sm:$0xff]
    %v3729 = vld [vmem:[#allocation5 + $0x188] sm:$0xf]
    %v3730 = vld [vmem:[#allocation5 + $0x18c] sm:$0xff]
    %v3731 = vld [vmem:[#allocation5 + $0x194] sm:$0xf]
    %v3732 = vld [vmem:[#allocation5 + $0x198] sm:$0xff]
    %v3733 = vld [vmem:[#allocation5 + $0x1a0] sm:$0xf]
    %v3734 = vld [vmem:[#allocation5 + $0x1a4] sm:$0xff]
    %v3735 = vld [vmem:[#allocation5 + $0x1ac] sm:$0xf]
    %v3736 = vld [vmem:[#allocation5 + $0x1b0] sm:$0xff]
    %v3737 = vld [vmem:[#allocation5 + $0x1b8] sm:$0xf]
    %v3738 = vld [vmem:[#allocation5 + $0x1bc] sm:$0xff]
    %v3739 = vld [vmem:[#allocation5 + $0x1c4] sm:$0xf]
    %v3740 = vld [vmem:[#allocation5 + $0x1c8] sm:$0xff]
    %v3741 = vld [vmem:[#allocation5 + $0x1d0] sm:$0xf]
    %v3742 = vld [vmem:[#allocation5 + $0x1d4] sm:$0xff]
    %v3743 = vld [vmem:[#allocation5 + $0x1dc] sm:$0xf]
    %v3744 = vld [vmem:[#allocation5 + $0x1e0] sm:$0xff]
    %v3745 = vld [vmem:[#allocation5 + $0x1e8] sm:$0xf]
    %v3746 = vld [vmem:[#allocation5 + $0x1ec] sm:$0xff]
    %v3747 = vld [vmem:[#allocation5 + $0x1f4] sm:$0xf]
    %v3748 = vld [vmem:[#allocation5 + $0x1f8] sm:$0xff]
    %v3749 = vld [vmem:[#allocation5 + $0x200] sm:$0xf]
    %v3750 = vld [vmem:[#allocation5 + $0x204] sm:$0xff]
    %v3751 = vld [vmem:[#allocation5 + $0x20c] sm:$0xf]
    %v3752 = vld [vmem:[#allocation5 + $0x210] sm:$0xff]
    %v3753 = vld [vmem:[#allocation5 + $0x218] sm:$0xf]
    %v3754 = vld [vmem:[#allocation5 + $0x21c] sm:$0xff]
    %v3755 = vld [vmem:[#allocation5 + $0x224] sm:$0xf]
    %v3756 = vld [vmem:[#allocation5 + $0x228] sm:$0xff]
    %v3757 = vld [vmem:[#allocation5 + $0x230] sm:$0xf]
    %v3758 = vld [vmem:[#allocation5 + $0x234] sm:$0xff]
    %v3759 = vld [vmem:[#allocation5 + $0x23c] sm:$0xf]
    %v3760 = vld [vmem:[#allocation5 + $0x240] sm:$0xff]
    %v3761 = vld [vmem:[#allocation5 + $0x248] sm:$0xf]
    %v3762 = vld [vmem:[#allocation5 + $0x24c] sm:$0xff]
    %v3763 = vld [vmem:[#allocation5 + $0x254] sm:$0xf]
    %v3764 = vld [vmem:[#allocation5 + $0x258] sm:$0xff]
    %v3765 = vld [vmem:[#allocation5 + $0x260] sm:$0xf]
    %v3766 = vld [vmem:[#allocation5 + $0x264] sm:$0xff]
    %v3767 = vld [vmem:[#allocation5 + $0x26c] sm:$0xf]
    %v3768 = vld [vmem:[#allocation5 + $0x270] sm:$0xff]
    %v3769 = vld [vmem:[#allocation5 + $0x278] sm:$0xf]
    %v3770 = vld [vmem:[#allocation5 + $0x27c] sm:$0xff]
    %v3771 = vld [vmem:[#allocation5 + $0x284] sm:$0xf]
    %v3772 = vld [vmem:[#allocation5 + $0x288] sm:$0xff]
    %v3773 = vld [vmem:[#allocation5 + $0x290] sm:$0xf]
    %v3774 = vld [vmem:[#allocation5 + $0x294] sm:$0xff]
    %v3775 = vld [vmem:[#allocation5 + $0x29c] sm:$0xf]
    %v3776 = vld [vmem:[#allocation5 + $0x2a0] sm:$0xff]
    %v3777 = vld [vmem:[#allocation5 + $0x2a8] sm:$0xf]
    %v3778 = vld [vmem:[#allocation5 + $0x2ac] sm:$0xff]
    %v3779 = vld [vmem:[#allocation5 + $0x2b4] sm:$0xf]
    %v3780 = vld [vmem:[#allocation5 + $0x2b8] sm:$0xff]
    %v3781 = vld [vmem:[#allocation5 + $0x2c0] sm:$0xf]
    %v3782 = vld [vmem:[#allocation5 + $0x2c4] sm:$0xff]
    %v3783 = vld [vmem:[#allocation5 + $0x2cc] sm:$0xf]
    %v3784 = vld [vmem:[#allocation5 + $0x2d0] sm:$0xff]
    %v3785 = vld [vmem:[#allocation5 + $0x2d8] sm:$0xf]
    %v3786 = vld [vmem:[#allocation5 + $0x2dc] sm:$0xff]
    %v3787 = vld [vmem:[#allocation5 + $0x2e4] sm:$0xf]
    %v3788 = vld [vmem:[#allocation5 + $0x2e8] sm:$0xff]
    %v3789 = vld [vmem:[#allocation5 + $0x2f0] sm:$0xf]
    %v3790 = vld [vmem:[#allocation5 + $0x2f4] sm:$0xff]
    %v3791 = vld [vmem:[#allocation5 + $0x2fc] sm:$0xf]
    %v3792 = vld [vmem:[%s4] sm:$0x3f]
    %v3793 = vld [vmem:[%s5] sm:$0x3f]
    %v3794 = vsel %vm3644, %v1984, 0.0
    %v3795 = vsel %vm3644, %v1986, 0.0
    %v3796 = vadd.f32 %v3794, %v3795
    %v3797 = vsel %vm3644, %v2107, 0.0
    %v3798 = vadd.f32 %v3796, %v3797
    %v3799 = vsel %vm3644, %v2109, 0.0
    %v3800 = vadd.f32 %v3798, %v3799
    %v3801 = vsel %vm3644, %v2230, 0.0
    %v3802 = vadd.f32 %v3800, %v3801
    %v3803 = vsel %vm3644, %v2232, 0.0
    %v3804 = vadd.f32 %v3802, %v3803
    %3805 = vadd.xlane.f32.xlu0 %v3804
    %v3806 = vpop.xlane.xlu0 %3805
    %v3807 = vrcp.pop 768.0
    %v3808 = vmul.f32 %v3806, %v3807
    %v3809 = vsub.f32 %v1984, %v3808
    %v3810 = vsub.f32 %v1986, %v3808
    %v3811 = vsub.f32 %v2107, %v3808
    %v3812 = vsub.f32 %v2109, %v3808
    %v3813 = vsub.f32 %v2230, %v3808
    %v3814 = vsub.f32 %v2232, %v3808
    %v3815 = vmul.f32 %v3809, %v3809
    %v3816 = vmul.f32 %v3810, %v3810
    %v3817 = vmul.f32 %v3811, %v3811
    %v3818 = vmul.f32 %v3812, %v3812
    %v3819 = vmul.f32 %v3813, %v3813
    %v3820 = vmul.f32 %v3814, %v3814
    %v3821 = vsel %vm3644, %v3815, 0.0
    %v3822 = vsel %vm3644, %v3816, 0.0
    %v3823 = vadd.f32 %v3821, %v3822
    %v3824 = vsel %vm3644, %v3817, 0.0
    %v3825 = vadd.f32 %v3823, %v3824
    %v3826 = vsel %vm3644, %v3818, 0.0
    %v3827 = vadd.f32 %v3825, %v3826
    %v3828 = vsel %vm3644, %v3819, 0.0
    %v3829 = vadd.f32 %v3827, %v3828
    %v3830 = vsel %vm3644, %v3820, 0.0
    %v3831 = vadd.f32 %v3829, %v3830
    %3832 = vadd.xlane.f32.xlu0 %v3831
    %v3833 = vpop.xlane.xlu0 %3832
    %v3834 = vmul.f32 %v3833, %v3807
    %v3835 = vadd.f32 %v3834, 1e-05
    %v3836 = vrsqrt.pop %v3835
    %v3837 = vmul.f32 %v3809, %v3836
    %v3838 = vmul.f32 %v3810, %v3836
    %v3839 = vmul.f32 %v3811, %v3836
    %v3840 = vmul.f32 %v3812, %v3836
    %v3841 = vmul.f32 %v3813, %v3836
    %v3842 = vmul.f32 %v3814, %v3836
    %v3844 = vlaneseq
    %v3845 = vshrl.u32 %v3844, 7
    %v3846 = vsub.s32 0, %v3845
    %v3847 = vrot.slane %v3792, %v3846
    %v3848 = vlaneseq
    %v3849 = vshrl.u32 %v3848, 7
    %v3850 = vsub.s32 1, %v3849
    %v3851 = vrot.slane %v3792, %v3850
    %v3852 = vlaneseq
    %v3853 = vshrl.u32 %v3852, 7
    %v3854 = vsub.s32 2, %v3853
    %v3855 = vrot.slane %v3792, %v3854
    %v3856 = vlaneseq
    %v3857 = vshrl.u32 %v3856, 7
    %v3858 = vsub.s32 3, %v3857
    %v3859 = vrot.slane %v3792, %v3858
    %v3860 = vlaneseq
    %v3861 = vshrl.u32 %v3860, 7
    %v3862 = vsub.s32 4, %v3861
    %v3863 = vrot.slane %v3792, %v3862
    %v3864 = vlaneseq
    %v3865 = vshrl.u32 %v3864, 7
    %v3866 = vsub.s32 5, %v3865
    %v3867 = vrot.slane %v3792, %v3866
    %v3874 = vmul.f32 %v3837, %v3847
    %v3875 = vmul.f32 %v3838, %v3851
    %v3876 = vmul.f32 %v3839, %v3855
    %v3877 = vmul.f32 %v3840, %v3859
    %v3878 = vmul.f32 %v3841, %v3863
    %v3879 = vmul.f32 %v3842, %v3867
    %v3881 = vlaneseq
    %v3882 = vshrl.u32 %v3881, 7
    %v3883 = vsub.s32 0, %v3882
    %v3884 = vrot.slane %v3793, %v3883
    %v3885 = vlaneseq
    %v3886 = vshrl.u32 %v3885, 7
    %v3887 = vsub.s32 1, %v3886
    %v3888 = vrot.slane %v3793, %v3887
    %v3889 = vlaneseq
    %v3890 = vshrl.u32 %v3889, 7
    %v3891 = vsub.s32 2, %v3890
    %v3892 = vrot.slane %v3793, %v3891
    %v3893 = vlaneseq
    %v3894 = vshrl.u32 %v3893, 7
    %v3895 = vsub.s32 3, %v3894
    %v3896 = vrot.slane %v3793, %v3895
    %v3897 = vlaneseq
    %v3898 = vshrl.u32 %v3897, 7
    %v3899 = vsub.s32 4, %v3898
    %v3900 = vrot.slane %v3793, %v3899
    %v3901 = vlaneseq
    %v3902 = vshrl.u32 %v3901, 7
    %v3903 = vsub.s32 5, %v3902
    %v3904 = vrot.slane %v3793, %v3903
    %v3911 = vadd.f32 %v3874, %v3884
    %v3912 = vadd.f32 %v3875, %v3888
    %v3913 = vadd.f32 %v3876, %v3892
    %v3914 = vadd.f32 %v3877, %v3896
    %v3915 = vadd.f32 %v3878, %v3900
    %v3916 = vadd.f32 %v3879, %v3904
    %v3917 = vpack.c.bf16 %v3911, %v3911
    %v3918 = vpack.c.bf16 %v3912, %v3912
    %v3919 = vpack.c.bf16 %v3913, %v3913
    %v3920 = vpack.c.bf16 %v3914, %v3914
    %v3921 = vpack.c.bf16 %v3915, %v3915
    %v3922 = vpack.c.bf16 %v3916, %v3916
    %v3923 = vld [vmem:[#allocation7] sm:$0xff]
    %v3924 = vld [vmem:[#allocation7 + $0x8] sm:$0xf]
    %v3925 = vld [vmem:[#allocation7 + $0xc] sm:$0xff]
    %v3926 = vld [vmem:[#allocation7 + $0x14] sm:$0xf]
    %v3927 = vld [vmem:[#allocation7 + $0x18] sm:$0xff]
    %v3928 = vld [vmem:[#allocation7 + $0x20] sm:$0xf]
    %v3929 = vld [vmem:[#allocation7 + $0x24] sm:$0xff]
    %v3930 = vld [vmem:[#allocation7 + $0x2c] sm:$0xf]
    %v3931 = vld [vmem:[#allocation7 + $0x30] sm:$0xff]
    %v3932 = vld [vmem:[#allocation7 + $0x38] sm:$0xf]
    %v3933 = vld [vmem:[#allocation7 + $0x3c] sm:$0xff]
    %v3934 = vld [vmem:[#allocation7 + $0x44] sm:$0xf]
    %v3935 = vld [vmem:[#allocation7 + $0x48] sm:$0xff]
    %v3936 = vld [vmem:[#allocation7 + $0x50] sm:$0xf]
    %v3937 = vld [vmem:[#allocation7 + $0x54] sm:$0xff]
    %v3938 = vld [vmem:[#allocation7 + $0x5c] sm:$0xf]
    %v3939 = vld [vmem:[#allocation7 + $0x60] sm:$0xff]
    %v3940 = vld [vmem:[#allocation7 + $0x68] sm:$0xf]
    %v3941 = vld [vmem:[#allocation7 + $0x6c] sm:$0xff]
    %v3942 = vld [vmem:[#allocation7 + $0x74] sm:$0xf]
    %v3943 = vld [vmem:[#allocation7 + $0x78] sm:$0xff]
    %v3944 = vld [vmem:[#allocation7 + $0x80] sm:$0xf]
    %v3945 = vld [vmem:[#allocation7 + $0x84] sm:$0xff]
    %v3946 = vld [vmem:[#allocation7 + $0x8c] sm:$0xf]
    %v3947 = vld [vmem:[#allocation7 + $0x90] sm:$0xff]
    %v3948 = vld [vmem:[#allocation7 + $0x98] sm:$0xf]
    %v3949 = vld [vmem:[#allocation7 + $0x9c] sm:$0xff]
    %v3950 = vld [vmem:[#allocation7 + $0xa4] sm:$0xf]
    %v3951 = vld [vmem:[#allocation7 + $0xa8] sm:$0xff]
    %v3952 = vld [vmem:[#allocation7 + $0xb0] sm:$0xf]
    %v3953 = vld [vmem:[#allocation7 + $0xb4] sm:$0xff]
    %v3954 = vld [vmem:[#allocation7 + $0xbc] sm:$0xf]
    %v3955 = vld [vmem:[#allocation7 + $0xc0] sm:$0xff]
    %v3956 = vld [vmem:[#allocation7 + $0xc8] sm:$0xf]
    %v3957 = vld [vmem:[#allocation7 + $0xcc] sm:$0xff]
    %v3958 = vld [vmem:[#allocation7 + $0xd4] sm:$0xf]
    %v3959 = vld [vmem:[#allocation7 + $0xd8] sm:$0xff]
    %v3960 = vld [vmem:[#allocation7 + $0xe0] sm:$0xf]
    %v3961 = vld [vmem:[#allocation7 + $0xe4] sm:$0xff]
    %v3962 = vld [vmem:[#allocation7 + $0xec] sm:$0xf]
    %v3963 = vld [vmem:[#allocation7 + $0xf0] sm:$0xff]
    %v3964 = vld [vmem:[#allocation7 + $0xf8] sm:$0xf]
    %v3965 = vld [vmem:[#allocation7 + $0xfc] sm:$0xff]
    %v3966 = vld [vmem:[#allocation7 + $0x104] sm:$0xf]
    %v3967 = vld [vmem:[#allocation7 + $0x108] sm:$0xff]
    %v3968 = vld [vmem:[#allocation7 + $0x110] sm:$0xf]
    %v3969 = vld [vmem:[#allocation7 + $0x114] sm:$0xff]
    %v3970 = vld [vmem:[#allocation7 + $0x11c] sm:$0xf]
    %v3971 = vld [vmem:[#allocation7 + $0x120] sm:$0xff]
    %v3972 = vld [vmem:[#allocation7 + $0x128] sm:$0xf]
    %v3973 = vld [vmem:[#allocation7 + $0x12c] sm:$0xff]
    %v3974 = vld [vmem:[#allocation7 + $0x134] sm:$0xf]
    %v3975 = vld [vmem:[#allocation7 + $0x138] sm:$0xff]
    %v3976 = vld [vmem:[#allocation7 + $0x140] sm:$0xf]
    %v3977 = vld [vmem:[#allocation7 + $0x144] sm:$0xff]
    %v3978 = vld [vmem:[#allocation7 + $0x14c] sm:$0xf]
    %v3979 = vld [vmem:[#allocation7 + $0x150] sm:$0xff]
    %v3980 = vld [vmem:[#allocation7 + $0x158] sm:$0xf]
    %v3981 = vld [vmem:[#allocation7 + $0x15c] sm:$0xff]
    %v3982 = vld [vmem:[#allocation7 + $0x164] sm:$0xf]
    %v3983 = vld [vmem:[#allocation7 + $0x168] sm:$0xff]
    %v3984 = vld [vmem:[#allocation7 + $0x170] sm:$0xf]
    %v3985 = vld [vmem:[#allocation7 + $0x174] sm:$0xff]
    %v3986 = vld [vmem:[#allocation7 + $0x17c] sm:$0xf]
    %v3987 = vld [vmem:[#allocation7 + $0x180] sm:$0xff]
    %v3988 = vld [vmem:[#allocation7 + $0x188] sm:$0xf]
    %v3989 = vld [vmem:[#allocation7 + $0x18c] sm:$0xff]
    %v3990 = vld [vmem:[#allocation7 + $0x194] sm:$0xf]
    %v3991 = vld [vmem:[#allocation7 + $0x198] sm:$0xff]
    %v3992 = vld [vmem:[#allocation7 + $0x1a0] sm:$0xf]
    %v3993 = vld [vmem:[#allocation7 + $0x1a4] sm:$0xff]
    %v3994 = vld [vmem:[#allocation7 + $0x1ac] sm:$0xf]
    %v3995 = vld [vmem:[#allocation7 + $0x1b0] sm:$0xff]
    %v3996 = vld [vmem:[#allocation7 + $0x1b8] sm:$0xf]
    %v3997 = vld [vmem:[#allocation7 + $0x1bc] sm:$0xff]
    %v3998 = vld [vmem:[#allocation7 + $0x1c4] sm:$0xf]
    %v3999 = vld [vmem:[#allocation7 + $0x1c8] sm:$0xff]
    %v4000 = vld [vmem:[#allocation7 + $0x1d0] sm:$0xf]
    %v4001 = vld [vmem:[#allocation7 + $0x1d4] sm:$0xff]
    %v4002 = vld [vmem:[#allocation7 + $0x1dc] sm:$0xf]
    %v4003 = vld [vmem:[#allocation7 + $0x1e0] sm:$0xff]
    %v4004 = vld [vmem:[#allocation7 + $0x1e8] sm:$0xf]
    %v4005 = vld [vmem:[#allocation7 + $0x1ec] sm:$0xff]
    %v4006 = vld [vmem:[#allocation7 + $0x1f4] sm:$0xf]
    %v4007 = vld [vmem:[#allocation7 + $0x1f8] sm:$0xff]
    %v4008 = vld [vmem:[#allocation7 + $0x200] sm:$0xf]
    %v4009 = vld [vmem:[#allocation7 + $0x204] sm:$0xff]
    %v4010 = vld [vmem:[#allocation7 + $0x20c] sm:$0xf]
    %v4011 = vld [vmem:[#allocation7 + $0x210] sm:$0xff]
    %v4012 = vld [vmem:[#allocation7 + $0x218] sm:$0xf]
    %v4013 = vld [vmem:[#allocation7 + $0x21c] sm:$0xff]
    %v4014 = vld [vmem:[#allocation7 + $0x224] sm:$0xf]
    %v4015 = vld [vmem:[#allocation7 + $0x228] sm:$0xff]
    %v4016 = vld [vmem:[#allocation7 + $0x230] sm:$0xf]
    %v4017 = vld [vmem:[#allocation7 + $0x234] sm:$0xff]
    %v4018 = vld [vmem:[#allocation7 + $0x23c] sm:$0xf]
    %v4019 = vld [vmem:[#allocation7 + $0x240] sm:$0xff]
    %v4020 = vld [vmem:[#allocation7 + $0x248] sm:$0xf]
    %v4021 = vld [vmem:[#allocation7 + $0x24c] sm:$0xff]
    %v4022 = vld [vmem:[#allocation7 + $0x254] sm:$0xf]
    %v4023 = vld [vmem:[#allocation7 + $0x258] sm:$0xff]
    %v4024 = vld [vmem:[#allocation7 + $0x260] sm:$0xf]
    %v4025 = vld [vmem:[#allocation7 + $0x264] sm:$0xff]
    %v4026 = vld [vmem:[#allocation7 + $0x26c] sm:$0xf]
    %v4027 = vld [vmem:[#allocation7 + $0x270] sm:$0xff]
    %v4028 = vld [vmem:[#allocation7 + $0x278] sm:$0xf]
    %v4029 = vld [vmem:[#allocation7 + $0x27c] sm:$0xff]
    %v4030 = vld [vmem:[#allocation7 + $0x284] sm:$0xf]
    %v4031 = vld [vmem:[#allocation7 + $0x288] sm:$0xff]
    %v4032 = vld [vmem:[#allocation7 + $0x290] sm:$0xf]
    %v4033 = vld [vmem:[#allocation7 + $0x294] sm:$0xff]
    %v4034 = vld [vmem:[#allocation7 + $0x29c] sm:$0xf]
    %v4035 = vld [vmem:[#allocation7 + $0x2a0] sm:$0xff]
    %v4036 = vld [vmem:[#allocation7 + $0x2a8] sm:$0xf]
    %v4037 = vld [vmem:[#allocation7 + $0x2ac] sm:$0xff]
    %v4038 = vld [vmem:[#allocation7 + $0x2b4] sm:$0xf]
    %v4039 = vld [vmem:[#allocation7 + $0x2b8] sm:$0xff]
    %v4040 = vld [vmem:[#allocation7 + $0x2c0] sm:$0xf]
    %v4041 = vld [vmem:[#allocation7 + $0x2c4] sm:$0xff]
    %v4042 = vld [vmem:[#allocation7 + $0x2cc] sm:$0xf]
    %v4043 = vld [vmem:[#allocation7 + $0x2d0] sm:$0xff]
    %v4044 = vld [vmem:[#allocation7 + $0x2d8] sm:$0xf]
    %v4045 = vld [vmem:[#allocation7 + $0x2dc] sm:$0xff]
    %v4046 = vld [vmem:[#allocation7 + $0x2e4] sm:$0xf]
    %v4047 = vld [vmem:[#allocation7 + $0x2e8] sm:$0xff]
    %v4048 = vld [vmem:[#allocation7 + $0x2f0] sm:$0xf]
    %v4049 = vld [vmem:[#allocation7 + $0x2f4] sm:$0xff]
    %v4050 = vld [vmem:[#allocation7 + $0x2fc] sm:$0xf]
    %v4051 = vld [vmem:[#allocation7 + $0x300] sm:$0xff]
    %v4052 = vld [vmem:[#allocation7 + $0x308] sm:$0xf]
    %v4053 = vld [vmem:[#allocation7 + $0x30c] sm:$0xff]
    %v4054 = vld [vmem:[#allocation7 + $0x314] sm:$0xf]
    %v4055 = vld [vmem:[#allocation7 + $0x318] sm:$0xff]
    %v4056 = vld [vmem:[#allocation7 + $0x320] sm:$0xf]
    %v4057 = vld [vmem:[#allocation7 + $0x324] sm:$0xff]
    %v4058 = vld [vmem:[#allocation7 + $0x32c] sm:$0xf]
    %v4059 = vld [vmem:[#allocation7 + $0x330] sm:$0xff]
    %v4060 = vld [vmem:[#allocation7 + $0x338] sm:$0xf]
    %v4061 = vld [vmem:[#allocation7 + $0x33c] sm:$0xff]
    %v4062 = vld [vmem:[#allocation7 + $0x344] sm:$0xf]
    %v4063 = vld [vmem:[#allocation7 + $0x348] sm:$0xff]
    %v4064 = vld [vmem:[#allocation7 + $0x350] sm:$0xf]
    %v4065 = vld [vmem:[#allocation7 + $0x354] sm:$0xff]
    %v4066 = vld [vmem:[#allocation7 + $0x35c] sm:$0xf]
    %v4067 = vld [vmem:[#allocation7 + $0x360] sm:$0xff]
    %v4068 = vld [vmem:[#allocation7 + $0x368] sm:$0xf]
    %v4069 = vld [vmem:[#allocation7 + $0x36c] sm:$0xff]
    %v4070 = vld [vmem:[#allocation7 + $0x374] sm:$0xf]
    %v4071 = vld [vmem:[#allocation7 + $0x378] sm:$0xff]
    %v4072 = vld [vmem:[#allocation7 + $0x380] sm:$0xf]
    %v4073 = vld [vmem:[#allocation7 + $0x384] sm:$0xff]
    %v4074 = vld [vmem:[#allocation7 + $0x38c] sm:$0xf]
    %v4075 = vld [vmem:[#allocation7 + $0x390] sm:$0xff]
    %v4076 = vld [vmem:[#allocation7 + $0x398] sm:$0xf]
    %v4077 = vld [vmem:[#allocation7 + $0x39c] sm:$0xff]
    %v4078 = vld [vmem:[#allocation7 + $0x3a4] sm:$0xf]
    %v4079 = vld [vmem:[#allocation7 + $0x3a8] sm:$0xff]
    %v4080 = vld [vmem:[#allocation7 + $0x3b0] sm:$0xf]
    %v4081 = vld [vmem:[#allocation7 + $0x3b4] sm:$0xff]
    %v4082 = vld [vmem:[#allocation7 + $0x3bc] sm:$0xf]
    %v4083 = vld [vmem:[#allocation7 + $0x3c0] sm:$0xff]
    %v4084 = vld [vmem:[#allocation7 + $0x3c8] sm:$0xf]
    %v4085 = vld [vmem:[#allocation7 + $0x3cc] sm:$0xff]
    %v4086 = vld [vmem:[#allocation7 + $0x3d4] sm:$0xf]
    %v4087 = vld [vmem:[#allocation7 + $0x3d8] sm:$0xff]
    %v4088 = vld [vmem:[#allocation7 + $0x3e0] sm:$0xf]
    %v4089 = vld [vmem:[#allocation7 + $0x3e4] sm:$0xff]
    %v4090 = vld [vmem:[#allocation7 + $0x3ec] sm:$0xf]
    %v4091 = vld [vmem:[#allocation7 + $0x3f0] sm:$0xff]
    %v4092 = vld [vmem:[#allocation7 + $0x3f8] sm:$0xf]
    %v4093 = vld [vmem:[#allocation7 + $0x3fc] sm:$0xff]
    %v4094 = vld [vmem:[#allocation7 + $0x404] sm:$0xf]
    %v4095 = vld [vmem:[#allocation7 + $0x408] sm:$0xff]
    %v4096 = vld [vmem:[#allocation7 + $0x410] sm:$0xf]
    %v4097 = vld [vmem:[#allocation7 + $0x414] sm:$0xff]
    %v4098 = vld [vmem:[#allocation7 + $0x41c] sm:$0xf]
    %v4099 = vld [vmem:[#allocation7 + $0x420] sm:$0xff]
    %v4100 = vld [vmem:[#allocation7 + $0x428] sm:$0xf]
    %v4101 = vld [vmem:[#allocation7 + $0x42c] sm:$0xff]
    %v4102 = vld [vmem:[#allocation7 + $0x434] sm:$0xf]
    %v4103 = vld [vmem:[#allocation7 + $0x438] sm:$0xff]
    %v4104 = vld [vmem:[#allocation7 + $0x440] sm:$0xf]
    %v4105 = vld [vmem:[#allocation7 + $0x444] sm:$0xff]
    %v4106 = vld [vmem:[#allocation7 + $0x44c] sm:$0xf]
    %v4107 = vld [vmem:[#allocation7 + $0x450] sm:$0xff]
    %v4108 = vld [vmem:[#allocation7 + $0x458] sm:$0xf]
    %v4109 = vld [vmem:[#allocation7 + $0x45c] sm:$0xff]
    %v4110 = vld [vmem:[#allocation7 + $0x464] sm:$0xf]
    %v4111 = vld [vmem:[#allocation7 + $0x468] sm:$0xff]
    %v4112 = vld [vmem:[#allocation7 + $0x470] sm:$0xf]
    %v4113 = vld [vmem:[#allocation7 + $0x474] sm:$0xff]
    %v4114 = vld [vmem:[#allocation7 + $0x47c] sm:$0xf]
    %v4115 = vld [vmem:[%s7] sm:$0x7]
    %v4117 = vlaneseq
    %v4118 = vshrl.u32 %v4117, 7
    %v4119 = vsub.s32 0, %v4118
    %v4120 = vrot.slane %v4115, %v4119
    %v4121 = vlaneseq
    %v4122 = vshrl.u32 %v4121, 7
    %v4123 = vsub.s32 1, %v4122
    %v4124 = vrot.slane %v4115, %v4123
    %v4125 = vlaneseq
    %v4126 = vshrl.u32 %v4125, 7
    %v4127 = vsub.s32 2, %v4126
    %v4128 = vrot.slane %v4115, %v4127
    %v4324 = vunpack.c.l.b16 %v3923
    %v4325 = vunpack.c.h.b16 %v3923
    %v4326 = vunpack.c.l.b16 %v3924
    %v4327 = vunpack.c.l.b16 %v3925
    %v4328 = vunpack.c.h.b16 %v3925
    %v4329 = vunpack.c.l.b16 %v3926
    %v4330 = vunpack.c.l.b16 %v3927
    %v4331 = vunpack.c.h.b16 %v3927
    %v4332 = vunpack.c.l.b16 %v3928
    %v4333 = vunpack.c.l.b16 %v3929
    %v4334 = vunpack.c.h.b16 %v3929
    %v4335 = vunpack.c.l.b16 %v3930
    %v4336 = vunpack.c.l.b16 %v3931
    %v4337 = vunpack.c.h.b16 %v3931
    %v4338 = vunpack.c.l.b16 %v3932
    %v4339 = vunpack.c.l.b16 %v3933
    %v4340 = vunpack.c.h.b16 %v3933
    %v4341 = vunpack.c.l.b16 %v3934
    %v4342 = vunpack.c.l.b16 %v3935
    %v4343 = vunpack.c.h.b16 %v3935
    %v4344 = vunpack.c.l.b16 %v3936
    %v4345 = vunpack.c.l.b16 %v3937
    %v4346 = vunpack.c.h.b16 %v3937
    %v4347 = vunpack.c.l.b16 %v3938
    %v4348 = vunpack.c.l.b16 %v3939
    %v4349 = vunpack.c.h.b16 %v3939
    %v4350 = vunpack.c.l.b16 %v3940
    %v4351 = vunpack.c.l.b16 %v3941
    %v4352 = vunpack.c.h.b16 %v3941
    %v4353 = vunpack.c.l.b16 %v3942
    %v4354 = vunpack.c.l.b16 %v3943
    %v4355 = vunpack.c.h.b16 %v3943
    %v4356 = vunpack.c.l.b16 %v3944
    %v4357 = vunpack.c.l.b16 %v3945
    %v4358 = vunpack.c.h.b16 %v3945
    %v4359 = vunpack.c.l.b16 %v3946
    %v4360 = vunpack.c.l.b16 %v3947
    %v4361 = vunpack.c.h.b16 %v3947
    %v4362 = vunpack.c.l.b16 %v3948
    %v4363 = vunpack.c.l.b16 %v3949
    %v4364 = vunpack.c.h.b16 %v3949
    %v4365 = vunpack.c.l.b16 %v3950
    %v4366 = vunpack.c.l.b16 %v3951
    %v4367 = vunpack.c.h.b16 %v3951
    %v4368 = vunpack.c.l.b16 %v3952
    %v4369 = vunpack.c.l.b16 %v3953
    %v4370 = vunpack.c.h.b16 %v3953
    %v4371 = vunpack.c.l.b16 %v3954
    %v4372 = vunpack.c.l.b16 %v3955
    %v4373 = vunpack.c.h.b16 %v3955
    %v4374 = vunpack.c.l.b16 %v3956
    %v4375 = vunpack.c.l.b16 %v3957
    %v4376 = vunpack.c.h.b16 %v3957
    %v4377 = vunpack.c.l.b16 %v3958
    %v4378 = vunpack.c.l.b16 %v3959
    %v4379 = vunpack.c.h.b16 %v3959
    %v4380 = vunpack.c.l.b16 %v3960
    %v4381 = vunpack.c.l.b16 %v3961
    %v4382 = vunpack.c.h.b16 %v3961
    %v4383 = vunpack.c.l.b16 %v3962
    %v4384 = vunpack.c.l.b16 %v3963
    %v4385 = vunpack.c.h.b16 %v3963
    %v4386 = vunpack.c.l.b16 %v3964
    %v4387 = vunpack.c.l.b16 %v3965
    %v4388 = vunpack.c.h.b16 %v3965
    %v4389 = vunpack.c.l.b16 %v3966
    %v4390 = vunpack.c.l.b16 %v3967
    %v4391 = vunpack.c.h.b16 %v3967
    %v4392 = vunpack.c.l.b16 %v3968
    %v4393 = vunpack.c.l.b16 %v3969
    %v4394 = vunpack.c.h.b16 %v3969
    %v4395 = vunpack.c.l.b16 %v3970
    %v4396 = vunpack.c.l.b16 %v3971
    %v4397 = vunpack.c.h.b16 %v3971
    %v4398 = vunpack.c.l.b16 %v3972
    %v4399 = vunpack.c.l.b16 %v3973
    %v4400 = vunpack.c.h.b16 %v3973
    %v4401 = vunpack.c.l.b16 %v3974
    %v4402 = vunpack.c.l.b16 %v3975
    %v4403 = vunpack.c.h.b16 %v3975
    %v4404 = vunpack.c.l.b16 %v3976
    %v4405 = vunpack.c.l.b16 %v3977
    %v4406 = vunpack.c.h.b16 %v3977
    %v4407 = vunpack.c.l.b16 %v3978
    %v4408 = vunpack.c.l.b16 %v3979
    %v4409 = vunpack.c.h.b16 %v3979
    %v4410 = vunpack.c.l.b16 %v3980
    %v4411 = vunpack.c.l.b16 %v3981
    %v4412 = vunpack.c.h.b16 %v3981
    %v4413 = vunpack.c.l.b16 %v3982
    %v4414 = vunpack.c.l.b16 %v3983
    %v4415 = vunpack.c.h.b16 %v3983
    %v4416 = vunpack.c.l.b16 %v3984
    %v4417 = vunpack.c.l.b16 %v3985
    %v4418 = vunpack.c.h.b16 %v3985
    %v4419 = vunpack.c.l.b16 %v3986
    %v4420 = vunpack.c.l.b16 %v3987
    %v4421 = vunpack.c.h.b16 %v3987
    %v4422 = vunpack.c.l.b16 %v3988
    %v4423 = vunpack.c.l.b16 %v3989
    %v4424 = vunpack.c.h.b16 %v3989
    %v4425 = vunpack.c.l.b16 %v3990
    %v4426 = vunpack.c.l.b16 %v3991
    %v4427 = vunpack.c.h.b16 %v3991
    %v4428 = vunpack.c.l.b16 %v3992
    %v4429 = vunpack.c.l.b16 %v3993
    %v4430 = vunpack.c.h.b16 %v3993
    %v4431 = vunpack.c.l.b16 %v3994
    %v4432 = vunpack.c.l.b16 %v3995
    %v4433 = vunpack.c.h.b16 %v3995
    %v4434 = vunpack.c.l.b16 %v3996
    %v4435 = vunpack.c.l.b16 %v3997
    %v4436 = vunpack.c.h.b16 %v3997
    %v4437 = vunpack.c.l.b16 %v3998
    %v4438 = vunpack.c.l.b16 %v3999
    %v4439 = vunpack.c.h.b16 %v3999
    %v4440 = vunpack.c.l.b16 %v4000
    %v4441 = vunpack.c.l.b16 %v4001
    %v4442 = vunpack.c.h.b16 %v4001
    %v4443 = vunpack.c.l.b16 %v4002
    %v4444 = vunpack.c.l.b16 %v4003
    %v4445 = vunpack.c.h.b16 %v4003
    %v4446 = vunpack.c.l.b16 %v4004
    %v4447 = vunpack.c.l.b16 %v4005
    %v4448 = vunpack.c.h.b16 %v4005
    %v4449 = vunpack.c.l.b16 %v4006
    %v4450 = vunpack.c.l.b16 %v4007
    %v4451 = vunpack.c.h.b16 %v4007
    %v4452 = vunpack.c.l.b16 %v4008
    %v4453 = vunpack.c.l.b16 %v4009
    %v4454 = vunpack.c.h.b16 %v4009
    %v4455 = vunpack.c.l.b16 %v4010
    %v4456 = vunpack.c.l.b16 %v4011
    %v4457 = vunpack.c.h.b16 %v4011
    %v4458 = vunpack.c.l.b16 %v4012
    %v4459 = vunpack.c.l.b16 %v4013
    %v4460 = vunpack.c.h.b16 %v4013
    %v4461 = vunpack.c.l.b16 %v4014
    %v4462 = vunpack.c.l.b16 %v4015
    %v4463 = vunpack.c.h.b16 %v4015
    %v4464 = vunpack.c.l.b16 %v4016
    %v4465 = vunpack.c.l.b16 %v4017
    %v4466 = vunpack.c.h.b16 %v4017
    %v4467 = vunpack.c.l.b16 %v4018
    %v4468 = vunpack.c.l.b16 %v4019
    %v4469 = vunpack.c.h.b16 %v4019
    %v4470 = vunpack.c.l.b16 %v4020
    %v4471 = vunpack.c.l.b16 %v4021
    %v4472 = vunpack.c.h.b16 %v4021
    %v4473 = vunpack.c.l.b16 %v4022
    %v4474 = vunpack.c.l.b16 %v4023
    %v4475 = vunpack.c.h.b16 %v4023
    %v4476 = vunpack.c.l.b16 %v4024
    %v4477 = vunpack.c.l.b16 %v4025
    %v4478 = vunpack.c.h.b16 %v4025
    %v4479 = vunpack.c.l.b16 %v4026
    %v4480 = vunpack.c.l.b16 %v4027
    %v4481 = vunpack.c.h.b16 %v4027
    %v4482 = vunpack.c.l.b16 %v4028
    %v4483 = vunpack.c.l.b16 %v4029
    %v4484 = vunpack.c.h.b16 %v4029
    %v4485 = vunpack.c.l.b16 %v4030
    %v4486 = vunpack.c.l.b16 %v4031
    %v4487 = vunpack.c.h.b16 %v4031
    %v4488 = vunpack.c.l.b16 %v4032
    %v4489 = vunpack.c.l.b16 %v4033
    %v4490 = vunpack.c.h.b16 %v4033
    %v4491 = vunpack.c.l.b16 %v4034
    %v4492 = vunpack.c.l.b16 %v4035
    %v4493 = vunpack.c.h.b16 %v4035
    %v4494 = vunpack.c.l.b16 %v4036
    %v4495 = vunpack.c.l.b16 %v4037
    %v4496 = vunpack.c.h.b16 %v4037
    %v4497 = vunpack.c.l.b16 %v4038
    %v4498 = vunpack.c.l.b16 %v4039
    %v4499 = vunpack.c.h.b16 %v4039
    %v4500 = vunpack.c.l.b16 %v4040
    %v4501 = vunpack.c.l.b16 %v4041
    %v4502 = vunpack.c.h.b16 %v4041
    %v4503 = vunpack.c.l.b16 %v4042
    %v4504 = vunpack.c.l.b16 %v4043
    %v4505 = vunpack.c.h.b16 %v4043
    %v4506 = vunpack.c.l.b16 %v4044
    %v4507 = vunpack.c.l.b16 %v4045
    %v4508 = vunpack.c.h.b16 %v4045
    %v4509 = vunpack.c.l.b16 %v4046
    %v4510 = vunpack.c.l.b16 %v4047
    %v4511 = vunpack.c.h.b16 %v4047
    %v4512 = vunpack.c.l.b16 %v4048
    %v4513 = vunpack.c.l.b16 %v4049
    %v4514 = vunpack.c.h.b16 %v4049
    %v4515 = vunpack.c.l.b16 %v4050
    %v4516 = vunpack.c.l.b16 %v4051
    %v4517 = vunpack.c.h.b16 %v4051
    %v4518 = vunpack.c.l.b16 %v4052
    %v4519 = vunpack.c.l.b16 %v4053
    %v4520 = vunpack.c.h.b16 %v4053
    %v4521 = vunpack.c.l.b16 %v4054
    %v4522 = vunpack.c.l.b16 %v4055
    %v4523 = vunpack.c.h.b16 %v4055
    %v4524 = vunpack.c.l.b16 %v4056
    %v4525 = vunpack.c.l.b16 %v4057
    %v4526 = vunpack.c.h.b16 %v4057
    %v4527 = vunpack.c.l.b16 %v4058
    %v4528 = vunpack.c.l.b16 %v4059
    %v4529 = vunpack.c.h.b16 %v4059
    %v4530 = vunpack.c.l.b16 %v4060
    %v4531 = vunpack.c.l.b16 %v4061
    %v4532 = vunpack.c.h.b16 %v4061
    %v4533 = vunpack.c.l.b16 %v4062
    %v4534 = vunpack.c.l.b16 %v4063
    %v4535 = vunpack.c.h.b16 %v4063
    %v4536 = vunpack.c.l.b16 %v4064
    %v4537 = vunpack.c.l.b16 %v4065
    %v4538 = vunpack.c.h.b16 %v4065
    %v4539 = vunpack.c.l.b16 %v4066
    %v4540 = vunpack.c.l.b16 %v4067
    %v4541 = vunpack.c.h.b16 %v4067
    %v4542 = vunpack.c.l.b16 %v4068
    %v4543 = vunpack.c.l.b16 %v4069
    %v4544 = vunpack.c.h.b16 %v4069
    %v4545 = vunpack.c.l.b16 %v4070
    %v4546 = vunpack.c.l.b16 %v4071
    %v4547 = vunpack.c.h.b16 %v4071
    %v4548 = vunpack.c.l.b16 %v4072
    %v4549 = vunpack.c.l.b16 %v4073
    %v4550 = vunpack.c.h.b16 %v4073
    %v4551 = vunpack.c.l.b16 %v4074
    %v4552 = vunpack.c.l.b16 %v4075
    %v4553 = vunpack.c.h.b16 %v4075
    %v4554 = vunpack.c.l.b16 %v4076
    %v4555 = vunpack.c.l.b16 %v4077
    %v4556 = vunpack.c.h.b16 %v4077
    %v4557 = vunpack.c.l.b16 %v4078
    %v4558 = vunpack.c.l.b16 %v4079
    %v4559 = vunpack.c.h.b16 %v4079
    %v4560 = vunpack.c.l.b16 %v4080
    %v4561 = vunpack.c.l.b16 %v4081
    %v4562 = vunpack.c.h.b16 %v4081
    %v4563 = vunpack.c.l.b16 %v4082
    %v4564 = vunpack.c.l.b16 %v4083
    %v4565 = vunpack.c.h.b16 %v4083
    %v4566 = vunpack.c.l.b16 %v4084
    %v4567 = vunpack.c.l.b16 %v4085
    %v4568 = vunpack.c.h.b16 %v4085
    %v4569 = vunpack.c.l.b16 %v4086
    %v4570 = vunpack.c.l.b16 %v4087
    %v4571 = vunpack.c.h.b16 %v4087
    %v4572 = vunpack.c.l.b16 %v4088
    %v4573 = vunpack.c.l.b16 %v4089
    %v4574 = vunpack.c.h.b16 %v4089
    %v4575 = vunpack.c.l.b16 %v4090
    %v4576 = vunpack.c.l.b16 %v4091
    %v4577 = vunpack.c.h.b16 %v4091
    %v4578 = vunpack.c.l.b16 %v4092
    %v4579 = vunpack.c.l.b16 %v4093
    %v4580 = vunpack.c.h.b16 %v4093
    %v4581 = vunpack.c.l.b16 %v4094
    %v4582 = vunpack.c.l.b16 %v4095
    %v4583 = vunpack.c.h.b16 %v4095
    %v4584 = vunpack.c.l.b16 %v4096
    %v4585 = vunpack.c.l.b16 %v4097
    %v4586 = vunpack.c.h.b16 %v4097
    %v4587 = vunpack.c.l.b16 %v4098
    %v4588 = vunpack.c.l.b16 %v4099
    %v4589 = vunpack.c.h.b16 %v4099
    %v4590 = vunpack.c.l.b16 %v4100
    %v4591 = vunpack.c.l.b16 %v4101
    %v4592 = vunpack.c.h.b16 %v4101
    %v4593 = vunpack.c.l.b16 %v4102
    %v4594 = vunpack.c.l.b16 %v4103
    %v4595 = vunpack.c.h.b16 %v4103
    %v4596 = vunpack.c.l.b16 %v4104
    %v4597 = vunpack.c.l.b16 %v4105
    %v4598 = vunpack.c.h.b16 %v4105
    %v4599 = vunpack.c.l.b16 %v4106
    %v4600 = vunpack.c.l.b16 %v4107
    %v4601 = vunpack.c.h.b16 %v4107
    %v4602 = vunpack.c.l.b16 %v4108
    %v4603 = vunpack.c.l.b16 %v4109
    %v4604 = vunpack.c.h.b16 %v4109
    %v4605 = vunpack.c.l.b16 %v4110
    %v4606 = vunpack.c.l.b16 %v4111
    %v4607 = vunpack.c.h.b16 %v4111
    %v4608 = vunpack.c.l.b16 %v4112
    %v4609 = vunpack.c.l.b16 %v4113
    %v4610 = vunpack.c.h.b16 %v4113
    %v4611 = vunpack.c.l.b16 %v4114
    %v4612 = vpack.c.b16 %v4327, %v4324
    %v4613 = vpack.c.b16 %v4328, %v4325
    %v4614 = vpack.c.b16 %v4329, %v4326
    %v4615 = vpack.c.b16 %v4333, %v4330
    %v4616 = vpack.c.b16 %v4334, %v4331
    %v4617 = vpack.c.b16 %v4335, %v4332
    %v4618 = vpack.c.b16 %v4339, %v4336
    %v4619 = vpack.c.b16 %v4340, %v4337
    %v4620 = vpack.c.b16 %v4341, %v4338
    %v4621 = vpack.c.b16 %v4345, %v4342
    %v4622 = vpack.c.b16 %v4346, %v4343
    %v4623 = vpack.c.b16 %v4347, %v4344
    %v4624 = vpack.c.b16 %v4351, %v4348
    %v4625 = vpack.c.b16 %v4352, %v4349
    %v4626 = vpack.c.b16 %v4353, %v4350
    %v4627 = vpack.c.b16 %v4357, %v4354
    %v4628 = vpack.c.b16 %v4358, %v4355
    %v4629 = vpack.c.b16 %v4359, %v4356
    %v4630 = vpack.c.b16 %v4363, %v4360
    %v4631 = vpack.c.b16 %v4364, %v4361
    %v4632 = vpack.c.b16 %v4365, %v4362
    %v4633 = vpack.c.b16 %v4369, %v4366
    %v4634 = vpack.c.b16 %v4370, %v4367
    %v4635 = vpack.c.b16 %v4371, %v4368
    %v4636 = vpack.c.b16 %v4375, %v4372
    %v4637 = vpack.c.b16 %v4376, %v4373
    %v4638 = vpack.c.b16 %v4377, %v4374
    %v4639 = vpack.c.b16 %v4381, %v4378
    %v4640 = vpack.c.b16 %v4382, %v4379
    %v4641 = vpack.c.b16 %v4383, %v4380
    %v4642 = vpack.c.b16 %v4387, %v4384
    %v4643 = vpack.c.b16 %v4388, %v4385
    %v4644 = vpack.c.b16 %v4389, %v4386
    %v4645 = vpack.c.b16 %v4393, %v4390
    %v4646 = vpack.c.b16 %v4394, %v4391
    %v4647 = vpack.c.b16 %v4395, %v4392
    %v4648 = vpack.c.b16 %v4399, %v4396
    %v4649 = vpack.c.b16 %v4400, %v4397
    %v4650 = vpack.c.b16 %v4401, %v4398
    %v4651 = vpack.c.b16 %v4405, %v4402
    %v4652 = vpack.c.b16 %v4406, %v4403
    %v4653 = vpack.c.b16 %v4407, %v4404
    %v4654 = vpack.c.b16 %v4411, %v4408
    %v4655 = vpack.c.b16 %v4412, %v4409
    %v4656 = vpack.c.b16 %v4413, %v4410
    %v4657 = vpack.c.b16 %v4417, %v4414
    %v4658 = vpack.c.b16 %v4418, %v4415
    %v4659 = vpack.c.b16 %v4419, %v4416
    %v4660 = vpack.c.b16 %v4423, %v4420
    %v4661 = vpack.c.b16 %v4424, %v4421
    %v4662 = vpack.c.b16 %v4425, %v4422
    %v4663 = vpack.c.b16 %v4429, %v4426
    %v4664 = vpack.c.b16 %v4430, %v4427
    %v4665 = vpack.c.b16 %v4431, %v4428
    %v4666 = vpack.c.b16 %v4435, %v4432
    %v4667 = vpack.c.b16 %v4436, %v4433
    %v4668 = vpack.c.b16 %v4437, %v4434
    %v4669 = vpack.c.b16 %v4441, %v4438
    %v4670 = vpack.c.b16 %v4442, %v4439
    %v4671 = vpack.c.b16 %v4443, %v4440
    %v4672 = vpack.c.b16 %v4447, %v4444
    %v4673 = vpack.c.b16 %v4448, %v4445
    %v4674 = vpack.c.b16 %v4449, %v4446
    %v4675 = vpack.c.b16 %v4453, %v4450
    %v4676 = vpack.c.b16 %v4454, %v4451
    %v4677 = vpack.c.b16 %v4455, %v4452
    %v4678 = vpack.c.b16 %v4459, %v4456
    %v4679 = vpack.c.b16 %v4460, %v4457
    %v4680 = vpack.c.b16 %v4461, %v4458
    %v4681 = vpack.c.b16 %v4465, %v4462
    %v4682 = vpack.c.b16 %v4466, %v4463
    %v4683 = vpack.c.b16 %v4467, %v4464
    %v4684 = vpack.c.b16 %v4471, %v4468
    %v4685 = vpack.c.b16 %v4472, %v4469
    %v4686 = vpack.c.b16 %v4473, %v4470
    %v4687 = vpack.c.b16 %v4477, %v4474
    %v4688 = vpack.c.b16 %v4478, %v4475
    %v4689 = vpack.c.b16 %v4479, %v4476
    %v4690 = vpack.c.b16 %v4483, %v4480
    %v4691 = vpack.c.b16 %v4484, %v4481
    %v4692 = vpack.c.b16 %v4485, %v4482
    %v4693 = vpack.c.b16 %v4489, %v4486
    %v4694 = vpack.c.b16 %v4490, %v4487
    %v4695 = vpack.c.b16 %v4491, %v4488
    %v4696 = vpack.c.b16 %v4495, %v4492
    %v4697 = vpack.c.b16 %v4496, %v4493
    %v4698 = vpack.c.b16 %v4497, %v4494
    %v4699 = vpack.c.b16 %v4501, %v4498
    %v4700 = vpack.c.b16 %v4502, %v4499
    %v4701 = vpack.c.b16 %v4503, %v4500
    %v4702 = vpack.c.b16 %v4507, %v4504
    %v4703 = vpack.c.b16 %v4508, %v4505
    %v4704 = vpack.c.b16 %v4509, %v4506
    %v4705 = vpack.c.b16 %v4513, %v4510
    %v4706 = vpack.c.b16 %v4514, %v4511
    %v4707 = vpack.c.b16 %v4515, %v4512
    %v4708 = vpack.c.b16 %v4519, %v4516
    %v4709 = vpack.c.b16 %v4520, %v4517
    %v4710 = vpack.c.b16 %v4521, %v4518
    %v4711 = vpack.c.b16 %v4525, %v4522
    %v4712 = vpack.c.b16 %v4526, %v4523
    %v4713 = vpack.c.b16 %v4527, %v4524
    %v4714 = vpack.c.b16 %v4531, %v4528
    %v4715 = vpack.c.b16 %v4532, %v4529
    %v4716 = vpack.c.b16 %v4533, %v4530
    %v4717 = vpack.c.b16 %v4537, %v4534
    %v4718 = vpack.c.b16 %v4538, %v4535
    %v4719 = vpack.c.b16 %v4539, %v4536
    %v4720 = vpack.c.b16 %v4543, %v4540
    %v4721 = vpack.c.b16 %v4544, %v4541
    %v4722 = vpack.c.b16 %v4545, %v4542
    %v4723 = vpack.c.b16 %v4549, %v4546
    %v4724 = vpack.c.b16 %v4550, %v4547
    %v4725 = vpack.c.b16 %v4551, %v4548
    %v4726 = vpack.c.b16 %v4555, %v4552
    %v4727 = vpack.c.b16 %v4556, %v4553
    %v4728 = vpack.c.b16 %v4557, %v4554
    %v4729 = vpack.c.b16 %v4561, %v4558
    %v4730 = vpack.c.b16 %v4562, %v4559
    %v4731 = vpack.c.b16 %v4563, %v4560
    %v4732 = vpack.c.b16 %v4567, %v4564
    %v4733 = vpack.c.b16 %v4568, %v4565
    %v4734 = vpack.c.b16 %v4569, %v4566
    %v4735 = vpack.c.b16 %v4573, %v4570
    %v4736 = vpack.c.b16 %v4574, %v4571
    %v4737 = vpack.c.b16 %v4575, %v4572
    %v4738 = vpack.c.b16 %v4579, %v4576
    %v4739 = vpack.c.b16 %v4580, %v4577
    %v4740 = vpack.c.b16 %v4581, %v4578
    %v4741 = vpack.c.b16 %v4585, %v4582
    %v4742 = vpack.c.b16 %v4586, %v4583
    %v4743 = vpack.c.b16 %v4587, %v4584
    %v4744 = vpack.c.b16 %v4591, %v4588
    %v4745 = vpack.c.b16 %v4592, %v4589
    %v4746 = vpack.c.b16 %v4593, %v4590
    %v4747 = vpack.c.b16 %v4597, %v4594
    %v4748 = vpack.c.b16 %v4598, %v4595
    %v4749 = vpack.c.b16 %v4599, %v4596
    %v4750 = vpack.c.b16 %v4603, %v4600
    %v4751 = vpack.c.b16 %v4604, %v4601
    %v4752 = vpack.c.b16 %v4605, %v4602
    %v4753 = vpack.c.b16 %v4609, %v4606
    %v4754 = vpack.c.b16 %v4610, %v4607
    %v4755 = vpack.c.b16 %v4611, %v4608
    %4900 = vmatprep.subr.bf16.mxu0 %v4613
    %4901 = vmatpush1.bf16.msra.mxu0 %v4612
    %4902 = vmatprep.subr.bf16.mxu0 %v4616
    %4903 = vmatpush1.bf16.msra.mxu0 %v4615
    %4904 = vmatprep.subr.bf16.mxu0 %v4619
    %4905 = vmatpush1.bf16.msra.mxu0 %v4618
    %4906 = vmatprep.subr.bf16.mxu0 %v4622
    %4907 = vmatpush1.bf16.msra.mxu0 %v4621
    %4908 = vmatprep.subr.bf16.mxu0 %v4625
    %4909 = vmatpush1.bf16.msra.mxu0 %v4624
    %4910 = vmatprep.subr.bf16.mxu0 %v4628
    %4911 = vmatpush1.bf16.msra.mxu0 %v4627
    %4912 = vmatprep.subr.bf16.mxu0 %v4631
    %4913 = vmatpush1.bf16.msra.mxu0 %v4630
    %4914 = vmatprep.subr.bf16.mxu0 %v4634
    %4915 = vmatpush1.bf16.msra.mxu0 %v4633
    %4916 = vmatprep.subr.bf16.mxu0 %v4637
    %4917 = vmatpush1.bf16.msra.mxu0 %v4636
    %4918 = vmatprep.subr.bf16.mxu0 %v4640
    %4919 = vmatpush1.bf16.msra.mxu0 %v4639
    %4920 = vmatprep.subr.bf16.mxu0 %v4643
    %4921 = vmatpush1.bf16.msra.mxu0 %v4642
    %4922 = vmatprep.subr.bf16.mxu0 %v4646
    %4923 = vmatpush1.bf16.msra.mxu0 %v4645
    %4924 = vmatprep.subr.bf16.mxu0 %v4649
    %4925 = vmatpush1.bf16.msra.mxu0 %v4648
    %4926 = vmatprep.subr.bf16.mxu0 %v4652
    %4927 = vmatpush1.bf16.msra.mxu0 %v4651
    %4928 = vmatprep.subr.bf16.mxu0 %v4655
    %4929 = vmatpush1.bf16.msra.mxu0 %v4654
    %4930 = vmatprep.subr.bf16.mxu0 %v4658
    %4931 = vmatpush1.bf16.msra.mxu0 %v4657
    %4932 = vmatprep.mubr.bf16.mxu0 %v3918
    %4933 = vmatmul.mubr.bf16.gmra.mrb[0].mxu0 %v3917
    %v4934 = vpop.f32.mrb[0].mxu0
    %v4935 = vadd.f32 %v4120, %v4934
    %v4936 = vpop.f32.mrb[0].mxu0
    %v4937 = vadd.f32 %v4124, %v4936
    %v4938 = vpop.f32.mrb[0].mxu0
    %v4939 = vpop.f32.mrb[0].mxu0
    %4940 = vdwg.mxu0
    %4941 = vmatprep.subr.bf16.mxu0 %v4661
    %4942 = vmatpush1.bf16.msra.mxu0 %v4660
    %4943 = vmatprep.subr.bf16.mxu0 %v4664
    %4944 = vmatpush1.bf16.msra.mxu0 %v4663
    %4945 = vmatprep.subr.bf16.mxu0 %v4667
    %4946 = vmatpush1.bf16.msra.mxu0 %v4666
    %4947 = vmatprep.subr.bf16.mxu0 %v4670
    %4948 = vmatpush1.bf16.msra.mxu0 %v4669
    %4949 = vmatprep.subr.bf16.mxu0 %v4673
    %4950 = vmatpush1.bf16.msra.mxu0 %v4672
    %4951 = vmatprep.subr.bf16.mxu0 %v4676
    %4952 = vmatpush1.bf16.msra.mxu0 %v4675
    %4953 = vmatprep.subr.bf16.mxu0 %v4679
    %4954 = vmatpush1.bf16.msra.mxu0 %v4678
    %4955 = vmatprep.subr.bf16.mxu0 %v4682
    %4956 = vmatpush1.bf16.msra.mxu0 %v4681
    %4957 = vmatprep.subr.bf16.mxu0 %v4685
    %4958 = vmatpush1.bf16.msra.mxu0 %v4684
    %4959 = vmatprep.subr.bf16.mxu0 %v4688
    %4960 = vmatpush1.bf16.msra.mxu0 %v4687
    %4961 = vmatprep.subr.bf16.mxu0 %v4691
    %4962 = vmatpush1.bf16.msra.mxu0 %v4690
    %4963 = vmatprep.subr.bf16.mxu0 %v4694
    %4964 = vmatpush1.bf16.msra.mxu0 %v4693
    %4965 = vmatprep.subr.bf16.mxu0 %v4697
    %4966 = vmatpush1.bf16.msra.mxu0 %v4696
    %4967 = vmatprep.subr.bf16.mxu0 %v4700
    %4968 = vmatpush1.bf16.msra.mxu0 %v4699
    %4969 = vmatprep.subr.bf16.mxu0 %v4703
    %4970 = vmatpush1.bf16.msra.mxu0 %v4702
    %4971 = vmatprep.subr.bf16.mxu0 %v4706
    %4972 = vmatpush1.bf16.msra.mxu0 %v4705
    %4973 = vmatprep.mubr.bf16.mxu0 %v3920
    %4974 = vmatmul.mubr.bf16.gmra.mrb[0].mxu0 %v3919
    %v4975 = vpop.f32.mrb[0].mxu0
    %v4976 = vadd.f32 %v4935, %v4975
    %v4977 = vpop.f32.mrb[0].mxu0
    %v4978 = vadd.f32 %v4937, %v4977
    %v4979 = vpop.f32.mrb[0].mxu0
    %v4980 = vpop.f32.mrb[0].mxu0
    %4981 = vdwg.mxu0
    %4982 = vmatprep.subr.bf16.mxu0 %v4709
    %4983 = vmatpush1.bf16.msra.mxu0 %v4708
    %4984 = vmatprep.subr.bf16.mxu0 %v4712
    %4985 = vmatpush1.bf16.msra.mxu0 %v4711
    %4986 = vmatprep.subr.bf16.mxu0 %v4715
    %4987 = vmatpush1.bf16.msra.mxu0 %v4714
    %4988 = vmatprep.subr.bf16.mxu0 %v4718
    %4989 = vmatpush1.bf16.msra.mxu0 %v4717
    %4990 = vmatprep.subr.bf16.mxu0 %v4721
    %4991 = vmatpush1.bf16.msra.mxu0 %v4720
    %4992 = vmatprep.subr.bf16.mxu0 %v4724
    %4993 = vmatpush1.bf16.msra.mxu0 %v4723
    %4994 = vmatprep.subr.bf16.mxu0 %v4727
    %4995 = vmatpush1.bf16.msra.mxu0 %v4726
    %4996 = vmatprep.subr.bf16.mxu0 %v4730
    %4997 = vmatpush1.bf16.msra.mxu0 %v4729
    %4998 = vmatprep.subr.bf16.mxu0 %v4733
    %4999 = vmatpush1.bf16.msra.mxu0 %v4732
    %5000 = vmatprep.subr.bf16.mxu0 %v4736
    %5001 = vmatpush1.bf16.msra.mxu0 %v4735
    %5002 = vmatprep.subr.bf16.mxu0 %v4739
    %5003 = vmatpush1.bf16.msra.mxu0 %v4738
    %5004 = vmatprep.subr.bf16.mxu0 %v4742
    %5005 = vmatpush1.bf16.msra.mxu0 %v4741
    %5006 = vmatprep.subr.bf16.mxu0 %v4745
    %5007 = vmatpush1.bf16.msra.mxu0 %v4744
    %5008 = vmatprep.subr.bf16.mxu0 %v4748
    %5009 = vmatpush1.bf16.msra.mxu0 %v4747
    %5010 = vmatprep.subr.bf16.mxu0 %v4751
    %5011 = vmatpush1.bf16.msra.mxu0 %v4750
    %5012 = vmatprep.subr.bf16.mxu0 %v4754
    %5013 = vmatpush1.bf16.msra.mxu0 %v4753
    %5014 = vmatprep.mubr.bf16.mxu0 %v3922
    %5015 = vmatmul.mubr.bf16.gmra.mrb[0].mxu0 %v3921
    %v5016 = vpop.f32.mrb[0].mxu0
    %v5017 = vadd.f32 %v4976, %v5016
    %v5018 = vpop.f32.mrb[0].mxu0
    %v5019 = vadd.f32 %v4978, %v5018
    %v5020 = vpop.f32.mrb[0].mxu0
    %v5021 = vpop.f32.mrb[0].mxu0
    %5022 = vdwg.mxu0
    %5023 = vmatprep.subr.bf16.mxu0 0
    %5024 = vmatpush1.bf16.msra.mxu0 %v4614
    %5025 = vmatprep.subr.bf16.mxu0 0
    %5026 = vmatpush1.bf16.msra.mxu0 %v4617
    %5027 = vmatprep.subr.bf16.mxu0 0
    %5028 = vmatpush1.bf16.msra.mxu0 %v4620
    %5029 = vmatprep.subr.bf16.mxu0 0
    %5030 = vmatpush1.bf16.msra.mxu0 %v4623
    %5031 = vmatprep.subr.bf16.mxu0 0
    %5032 = vmatpush1.bf16.msra.mxu0 %v4626
    %5033 = vmatprep.subr.bf16.mxu0 0
    %5034 = vmatpush1.bf16.msra.mxu0 %v4629
    %5035 = vmatprep.subr.bf16.mxu0 0
    %5036 = vmatpush1.bf16.msra.mxu0 %v4632
    %5037 = vmatprep.subr.bf16.mxu0 0
    %5038 = vmatpush1.bf16.msra.mxu0 %v4635
    %5039 = vmatprep.subr.bf16.mxu0 0
    %5040 = vmatpush1.bf16.msra.mxu0 %v4638
    %5041 = vmatprep.subr.bf16.mxu0 0
    %5042 = vmatpush1.bf16.msra.mxu0 %v4641
    %5043 = vmatprep.subr.bf16.mxu0 0
    %5044 = vmatpush1.bf16.msra.mxu0 %v4644
    %5045 = vmatprep.subr.bf16.mxu0 0
    %5046 = vmatpush1.bf16.msra.mxu0 %v4647
    %5047 = vmatprep.subr.bf16.mxu0 0
    %5048 = vmatpush1.bf16.msra.mxu0 %v4650
    %5049 = vmatprep.subr.bf16.mxu0 0
    %5050 = vmatpush1.bf16.msra.mxu0 %v4653
    %5051 = vmatprep.subr.bf16.mxu0 0
    %5052 = vmatpush1.bf16.msra.mxu0 %v4656
    %5053 = vmatprep.subr.bf16.mxu0 0
    %5054 = vmatpush1.bf16.msra.mxu0 %v4659
    %5055 = vmatprep.mubr.bf16.mxu0 %v3918
    %5056 = vmatmul.mubr.bf16.gmra.mrb[0].mxu0 %v3917
    %v5057 = vpop.f32.mrb[0].mxu0
    %v5058 = vadd.f32 %v4128, %v5057
    %v5059 = vpop.f32.mrb[0].mxu0
    %v5060 = vpop.f32.mrb[0].mxu0
    %v5061 = vpop.f32.mrb[0].mxu0
    %5062 = vdwg.mxu0
    %5063 = vmatprep.subr.bf16.mxu0 0
    %5064 = vmatpush1.bf16.msra.mxu0 %v4662
    %5065 = vmatprep.subr.bf16.mxu0 0
    %5066 = vmatpush1.bf16.msra.mxu0 %v4665
    %5067 = vmatprep.subr.bf16.mxu0 0
    %5068 = vmatpush1.bf16.msra.mxu0 %v4668
    %5069 = vmatprep.subr.bf16.mxu0 0
    %5070 = vmatpush1.bf16.msra.mxu0 %v4671
    %5071 = vmatprep.subr.bf16.mxu0 0
    %5072 = vmatpush1.bf16.msra.mxu0 %v4674
    %5073 = vmatprep.subr.bf16.mxu0 0
    %5074 = vmatpush1.bf16.msra.mxu0 %v4677
    %5075 = vmatprep.subr.bf16.mxu0 0
    %5076 = vmatpush1.bf16.msra.mxu0 %v4680
    %5077 = vmatprep.subr.bf16.mxu0 0
    %5078 = vmatpush1.bf16.msra.mxu0 %v4683
    %5079 = vmatprep.subr.bf16.mxu0 0
    %5080 = vmatpush1.bf16.msra.mxu0 %v4686
    %5081 = vmatprep.subr.bf16.mxu0 0
    %5082 = vmatpush1.bf16.msra.mxu0 %v4689
    %5083 = vmatprep.subr.bf16.mxu0 0
    %5084 = vmatpush1.bf16.msra.mxu0 %v4692
    %5085 = vmatprep.subr.bf16.mxu0 0
    %5086 = vmatpush1.bf16.msra.mxu0 %v4695
    %5087 = vmatprep.subr.bf16.mxu0 0
    %5088 = vmatpush1.bf16.msra.mxu0 %v4698
    %5089 = vmatprep.subr.bf16.mxu0 0
    %5090 = vmatpush1.bf16.msra.mxu0 %v4701
    %5091 = vmatprep.subr.bf16.mxu0 0
    %5092 = vmatpush1.bf16.msra.mxu0 %v4704
    %5093 = vmatprep.subr.bf16.mxu0 0
    %5094 = vmatpush1.bf16.msra.mxu0 %v4707
    %5095 = vmatprep.mubr.bf16.mxu0 %v3920
    %5096 = vmatmul.mubr.bf16.gmra.mrb[0].mxu0 %v3919
    %v5097 = vpop.f32.mrb[0].mxu0
    %v5098 = vadd.f32 %v5058, %v5097
    %v5099 = vpop.f32.mrb[0].mxu0
    %v5100 = vpop.f32.mrb[0].mxu0
    %v5101 = vpop.f32.mrb[0].mxu0
    %5102 = vdwg.mxu0
    %5103 = vmatprep.subr.bf16.mxu0 0
    %5104 = vmatpush1.bf16.msra.mxu0 %v4710
    %5105 = vmatprep.subr.bf16.mxu0 0
    %5106 = vmatpush1.bf16.msra.mxu0 %v4713
    %5107 = vmatprep.subr.bf16.mxu0 0
    %5108 = vmatpush1.bf16.msra.mxu0 %v4716
    %5109 = vmatprep.subr.bf16.mxu0 0
    %5110 = vmatpush1.bf16.msra.mxu0 %v4719
    %5111 = vmatprep.subr.bf16.mxu0 0
    %5112 = vmatpush1.bf16.msra.mxu0 %v4722
    %5113 = vmatprep.subr.bf16.mxu0 0
    %5114 = vmatpush1.bf16.msra.mxu0 %v4725
    %5115 = vmatprep.subr.bf16.mxu0 0
    %5116 = vmatpush1.bf16.msra.mxu0 %v4728
    %5117 = vmatprep.subr.bf16.mxu0 0
    %5118 = vmatpush1.bf16.msra.mxu0 %v4731
    %5119 = vmatprep.subr.bf16.mxu0 0
    %5120 = vmatpush1.bf16.msra.mxu0 %v4734
    %5121 = vmatprep.subr.bf16.mxu0 0
    %5122 = vmatpush1.bf16.msra.mxu0 %v4737
    %5123 = vmatprep.subr.bf16.mxu0 0
    %5124 = vmatpush1.bf16.msra.mxu0 %v4740
    %5125 = vmatprep.subr.bf16.mxu0 0
    %5126 = vmatpush1.bf16.msra.mxu0 %v4743
    %5127 = vmatprep.subr.bf16.mxu0 0
    %5128 = vmatpush1.bf16.msra.mxu0 %v4746
    %5129 = vmatprep.subr.bf16.mxu0 0
    %5130 = vmatpush1.bf16.msra.mxu0 %v4749
    %5131 = vmatprep.subr.bf16.mxu0 0
    %5132 = vmatpush1.bf16.msra.mxu0 %v4752
    %5133 = vmatprep.subr.bf16.mxu0 0
    %5134 = vmatpush1.bf16.msra.mxu0 %v4755
    %5135 = vmatprep.mubr.bf16.mxu0 %v3922
    %5136 = vmatmul.mubr.bf16.gmra.mrb[0].mxu0 %v3921
    %v5137 = vpop.f32.mrb[0].mxu0
    %v5138 = vadd.f32 %v5098, %v5137
    %v5139 = vpop.f32.mrb[0].mxu0
    %v5140 = vpop.f32.mrb[0].mxu0
    %v5141 = vpop.f32.mrb[0].mxu0
    %5142 = vdwg.mxu0
    %v5271 = vunpack.c.l.b16 %v3664
    %v5272 = vunpack.c.h.b16 %v3664
    %v5273 = vunpack.c.l.b16 %v3665
    %v5274 = vunpack.c.l.b16 %v3666
    %v5275 = vunpack.c.h.b16 %v3666
    %v5276 = vunpack.c.l.b16 %v3667
    %v5277 = vunpack.c.l.b16 %v3668
    %v5278 = vunpack.c.h.b16 %v3668
    %v5279 = vunpack.c.l.b16 %v3669
    %v5280 = vunpack.c.l.b16 %v3670
    %v5281 = vunpack.c.h.b16 %v3670
    %v5282 = vunpack.c.l.b16 %v3671
    %v5283 = vunpack.c.l.b16 %v3672
    %v5284 = vunpack.c.h.b16 %v3672
    %v5285 = vunpack.c.l.b16 %v3673
    %v5286 = vunpack.c.l.b16 %v3674
    %v5287 = vunpack.c.h.b16 %v3674
    %v5288 = vunpack.c.l.b16 %v3675
    %v5289 = vunpack.c.l.b16 %v3676
    %v5290 = vunpack.c.h.b16 %v3676
    %v5291 = vunpack.c.l.b16 %v3677
    %v5292 = vunpack.c.l.b16 %v3678
    %v5293 = vunpack.c.h.b16 %v3678
    %v5294 = vunpack.c.l.b16 %v3679
    %v5295 = vunpack.c.l.b16 %v3680
    %v5296 = vunpack.c.h.b16 %v3680
    %v5297 = vunpack.c.l.b16 %v3681
    %v5298 = vunpack.c.l.b16 %v3682
    %v5299 = vunpack.c.h.b16 %v3682
    %v5300 = vunpack.c.l.b16 %v3683
    %v5301 = vunpack.c.l.b16 %v3684
    %v5302 = vunpack.c.h.b16 %v3684
    %v5303 = vunpack.c.l.b16 %v3685
    %v5304 = vunpack.c.l.b16 %v3686
    %v5305 = vunpack.c.h.b16 %v3686
    %v5306 = vunpack.c.l.b16 %v3687
    %v5307 = vunpack.c.l.b16 %v3688
    %v5308 = vunpack.c.h.b16 %v3688
    %v5309 = vunpack.c.l.b16 %v3689
    %v5310 = vunpack.c.l.b16 %v3690
    %v5311 = vunpack.c.h.b16 %v3690
    %v5312 = vunpack.c.l.b16 %v3691
    %v5313 = vunpack.c.l.b16 %v3692
    %v5314 = vunpack.c.h.b16 %v3692
    %v5315 = vunpack.c.l.b16 %v3693
    %v5316 = vunpack.c.l.b16 %v3694
    %v5317 = vunpack.c.h.b16 %v3694
    %v5318 = vunpack.c.l.b16 %v3695
    %v5319 = vunpack.c.l.b16 %v3696
    %v5320 = vunpack.c.h.b16 %v3696
    %v5321 = vunpack.c.l.b16 %v3697
    %v5322 = vunpack.c.l.b16 %v3698
    %v5323 = vunpack.c.h.b16 %v3698
    %v5324 = vunpack.c.l.b16 %v3699
    %v5325 = vunpack.c.l.b16 %v3700
    %v5326 = vunpack.c.h.b16 %v3700
    %v5327 = vunpack.c.l.b16 %v3701
    %v5328 = vunpack.c.l.b16 %v3702
    %v5329 = vunpack.c.h.b16 %v3702
    %v5330 = vunpack.c.l.b16 %v3703
    %v5331 = vunpack.c.l.b16 %v3704
    %v5332 = vunpack.c.h.b16 %v3704
    %v5333 = vunpack.c.l.b16 %v3705
    %v5334 = vunpack.c.l.b16 %v3706
    %v5335 = vunpack.c.h.b16 %v3706
    %v5336 = vunpack.c.l.b16 %v3707
    %v5337 = vunpack.c.l.b16 %v3708
    %v5338 = vunpack.c.h.b16 %v3708
    %v5339 = vunpack.c.l.b16 %v3709
    %v5340 = vunpack.c.l.b16 %v3710
    %v5341 = vunpack.c.h.b16 %v3710
    %v5342 = vunpack.c.l.b16 %v3711
    %v5343 = vunpack.c.l.b16 %v3712
    %v5344 = vunpack.c.h.b16 %v3712
    %v5345 = vunpack.c.l.b16 %v3713
    %v5346 = vunpack.c.l.b16 %v3714
    %v5347 = vunpack.c.h.b16 %v3714
    %v5348 = vunpack.c.l.b16 %v3715
    %v5349 = vunpack.c.l.b16 %v3716
    %v5350 = vunpack.c.h.b16 %v3716
    %v5351 = vunpack.c.l.b16 %v3717
    %v5352 = vunpack.c.l.b16 %v3718
    %v5353 = vunpack.c.h.b16 %v3718
    %v5354 = vunpack.c.l.b16 %v3719
    %v5355 = vunpack.c.l.b16 %v3720
    %v5356 = vunpack.c.h.b16 %v3720
    %v5357 = vunpack.c.l.b16 %v3721
    %v5358 = vunpack.c.l.b16 %v3722
    %v5359 = vunpack.c.h.b16 %v3722
    %v5360 = vunpack.c.l.b16 %v3723
    %v5361 = vunpack.c.l.b16 %v3724
    %v5362 = vunpack.c.h.b16 %v3724
    %v5363 = vunpack.c.l.b16 %v3725
    %v5364 = vunpack.c.l.b16 %v3726
    %v5365 = vunpack.c.h.b16 %v3726
    %v5366 = vunpack.c.l.b16 %v3727
    %v5367 = vunpack.c.l.b16 %v3728
    %v5368 = vunpack.c.h.b16 %v3728
    %v5369 = vunpack.c.l.b16 %v3729
    %v5370 = vunpack.c.l.b16 %v3730
    %v5371 = vunpack.c.h.b16 %v3730
    %v5372 = vunpack.c.l.b16 %v3731
    %v5373 = vunpack.c.l.b16 %v3732
    %v5374 = vunpack.c.h.b16 %v3732
    %v5375 = vunpack.c.l.b16 %v3733
    %v5376 = vunpack.c.l.b16 %v3734
    %v5377 = vunpack.c.h.b16 %v3734
    %v5378 = vunpack.c.l.b16 %v3735
    %v5379 = vunpack.c.l.b16 %v3736
    %v5380 = vunpack.c.h.b16 %v3736
    %v5381 = vunpack.c.l.b16 %v3737
    %v5382 = vunpack.c.l.b16 %v3738
    %v5383 = vunpack.c.h.b16 %v3738
    %v5384 = vunpack.c.l.b16 %v3739
    %v5385 = vunpack.c.l.b16 %v3740
    %v5386 = vunpack.c.h.b16 %v3740
    %v5387 = vunpack.c.l.b16 %v3741
    %v5388 = vunpack.c.l.b16 %v3742
    %v5389 = vunpack.c.h.b16 %v3742
    %v5390 = vunpack.c.l.b16 %v3743
    %v5391 = vunpack.c.l.b16 %v3744
    %v5392 = vunpack.c.h.b16 %v3744
    %v5393 = vunpack.c.l.b16 %v3745
    %v5394 = vunpack.c.l.b16 %v3746
    %v5395 = vunpack.c.h.b16 %v3746
    %v5396 = vunpack.c.l.b16 %v3747
    %v5397 = vunpack.c.l.b16 %v3748
    %v5398 = vunpack.c.h.b16 %v3748
    %v5399 = vunpack.c.l.b16 %v3749
    %v5400 = vunpack.c.l.b16 %v3750
    %v5401 = vunpack.c.h.b16 %v3750
    %v5402 = vunpack.c.l.b16 %v3751
    %v5403 = vunpack.c.l.b16 %v3752
    %v5404 = vunpack.c.h.b16 %v3752
    %v5405 = vunpack.c.l.b16 %v3753
    %v5406 = vunpack.c.l.b16 %v3754
    %v5407 = vunpack.c.h.b16 %v3754
    %v5408 = vunpack.c.l.b16 %v3755
    %v5409 = vunpack.c.l.b16 %v3756
    %v5410 = vunpack.c.h.b16 %v3756
    %v5411 = vunpack.c.l.b16 %v3757
    %v5412 = vunpack.c.l.b16 %v3758
    %v5413 = vunpack.c.h.b16 %v3758
    %v5414 = vunpack.c.l.b16 %v3759
    %v5415 = vunpack.c.l.b16 %v3760
    %v5416 = vunpack.c.h.b16 %v3760
    %v5417 = vunpack.c.l.b16 %v3761
    %v5418 = vunpack.c.l.b16 %v3762
    %v5419 = vunpack.c.h.b16 %v3762
    %v5420 = vunpack.c.l.b16 %v3763
    %v5421 = vunpack.c.l.b16 %v3764
    %v5422 = vunpack.c.h.b16 %v3764
    %v5423 = vunpack.c.l.b16 %v3765
    %v5424 = vunpack.c.l.b16 %v3766
    %v5425 = vunpack.c.h.b16 %v3766
    %v5426 = vunpack.c.l.b16 %v3767
    %v5427 = vunpack.c.l.b16 %v3768
    %v5428 = vunpack.c.h.b16 %v3768
    %v5429 = vunpack.c.l.b16 %v3769
    %v5430 = vunpack.c.l.b16 %v3770
    %v5431 = vunpack.c.h.b16 %v3770
    %v5432 = vunpack.c.l.b16 %v3771
    %v5433 = vunpack.c.l.b16 %v3772
    %v5434 = vunpack.c.h.b16 %v3772
    %v5435 = vunpack.c.l.b16 %v3773
    %v5436 = vunpack.c.l.b16 %v3774
    %v5437 = vunpack.c.h.b16 %v3774
    %v5438 = vunpack.c.l.b16 %v3775
    %v5439 = vunpack.c.l.b16 %v3776
    %v5440 = vunpack.c.h.b16 %v3776
    %v5441 = vunpack.c.l.b16 %v3777
    %v5442 = vunpack.c.l.b16 %v3778
    %v5443 = vunpack.c.h.b16 %v3778
    %v5444 = vunpack.c.l.b16 %v3779
    %v5445 = vunpack.c.l.b16 %v3780
    %v5446 = vunpack.c.h.b16 %v3780
    %v5447 = vunpack.c.l.b16 %v3781
    %v5448 = vunpack.c.l.b16 %v3782
    %v5449 = vunpack.c.h.b16 %v3782
    %v5450 = vunpack.c.l.b16 %v3783
    %v5451 = vunpack.c.l.b16 %v3784
    %v5452 = vunpack.c.h.b16 %v3784
    %v5453 = vunpack.c.l.b16 %v3785
    %v5454 = vunpack.c.l.b16 %v3786
    %v5455 = vunpack.c.h.b16 %v3786
    %v5456 = vunpack.c.l.b16 %v3787
    %v5457 = vunpack.c.l.b16 %v3788
    %v5458 = vunpack.c.h.b16 %v3788
    %v5459 = vunpack.c.l.b16 %v3789
    %v5460 = vunpack.c.l.b16 %v3790
    %v5461 = vunpack.c.h.b16 %v3790
    %v5462 = vunpack.c.l.b16 %v3791
    %v5463 = vpack.c.b16 %v5274, %v5271
    %v5464 = vpack.c.b16 %v5275, %v5272
    %v5465 = vpack.c.b16 %v5276, %v5273
    %v5466 = vpack.c.b16 %v5280, %v5277
    %v5467 = vpack.c.b16 %v5281, %v5278
    %v5468 = vpack.c.b16 %v5282, %v5279
    %v5469 = vpack.c.b16 %v5286, %v5283
    %v5470 = vpack.c.b16 %v5287, %v5284
    %v5471 = vpack.c.b16 %v5288, %v5285
    %v5472 = vpack.c.b16 %v5292, %v5289
    %v5473 = vpack.c.b16 %v5293, %v5290
    %v5474 = vpack.c.b16 %v5294, %v5291
    %v5475 = vpack.c.b16 %v5298, %v5295
    %v5476 = vpack.c.b16 %v5299, %v5296
    %v5477 = vpack.c.b16 %v5300, %v5297
    %v5478 = vpack.c.b16 %v5304, %v5301
    %v5479 = vpack.c.b16 %v5305, %v5302
    %v5480 = vpack.c.b16 %v5306, %v5303
    %v5481 = vpack.c.b16 %v5310, %v5307
    %v5482 = vpack.c.b16 %v5311, %v5308
    %v5483 = vpack.c.b16 %v5312, %v5309
    %v5484 = vpack.c.b16 %v5316, %v5313
    %v5485 = vpack.c.b16 %v5317, %v5314
    %v5486 = vpack.c.b16 %v5318, %v5315
    %v5487 = vpack.c.b16 %v5322, %v5319
    %v5488 = vpack.c.b16 %v5323, %v5320
    %v5489 = vpack.c.b16 %v5324, %v5321
    %v5490 = vpack.c.b16 %v5328, %v5325
    %v5491 = vpack.c.b16 %v5329, %v5326
    %v5492 = vpack.c.b16 %v5330, %v5327
    %v5493 = vpack.c.b16 %v5334, %v5331
    %v5494 = vpack.c.b16 %v5335, %v5332
    %v5495 = vpack.c.b16 %v5336, %v5333
    %v5496 = vpack.c.b16 %v5340, %v5337
    %v5497 = vpack.c.b16 %v5341, %v5338
    %v5498 = vpack.c.b16 %v5342, %v5339
    %v5499 = vpack.c.b16 %v5346, %v5343
    %v5500 = vpack.c.b16 %v5347, %v5344
    %v5501 = vpack.c.b16 %v5348, %v5345
    %v5502 = vpack.c.b16 %v5352, %v5349
    %v5503 = vpack.c.b16 %v5353, %v5350
    %v5504 = vpack.c.b16 %v5354, %v5351
    %v5505 = vpack.c.b16 %v5358, %v5355
    %v5506 = vpack.c.b16 %v5359, %v5356
    %v5507 = vpack.c.b16 %v5360, %v5357
    %v5508 = vpack.c.b16 %v5364, %v5361
    %v5509 = vpack.c.b16 %v5365, %v5362
    %v5510 = vpack.c.b16 %v5366, %v5363
    %v5511 = vpack.c.b16 %v5370, %v5367
    %v5512 = vpack.c.b16 %v5371, %v5368
    %v5513 = vpack.c.b16 %v5372, %v5369
    %v5514 = vpack.c.b16 %v5376, %v5373
    %v5515 = vpack.c.b16 %v5377, %v5374
    %v5516 = vpack.c.b16 %v5378, %v5375
    %v5517 = vpack.c.b16 %v5382, %v5379
    %v5518 = vpack.c.b16 %v5383, %v5380
    %v5519 = vpack.c.b16 %v5384, %v5381
    %v5520 = vpack.c.b16 %v5388, %v5385
    %v5521 = vpack.c.b16 %v5389, %v5386
    %v5522 = vpack.c.b16 %v5390, %v5387
    %v5523 = vpack.c.b16 %v5394, %v5391
    %v5524 = vpack.c.b16 %v5395, %v5392
    %v5525 = vpack.c.b16 %v5396, %v5393
    %v5526 = vpack.c.b16 %v5400, %v5397
    %v5527 = vpack.c.b16 %v5401, %v5398
    %v5528 = vpack.c.b16 %v5402, %v5399
    %v5529 = vpack.c.b16 %v5406, %v5403
    %v5530 = vpack.c.b16 %v5407, %v5404
    %v5531 = vpack.c.b16 %v5408, %v5405
    %v5532 = vpack.c.b16 %v5412, %v5409
    %v5533 = vpack.c.b16 %v5413, %v5410
    %v5534 = vpack.c.b16 %v5414, %v5411
    %v5535 = vpack.c.b16 %v5418, %v5415
    %v5536 = vpack.c.b16 %v5419, %v5416
    %v5537 = vpack.c.b16 %v5420, %v5417
    %v5538 = vpack.c.b16 %v5424, %v5421
    %v5539 = vpack.c.b16 %v5425, %v5422
    %v5540 = vpack.c.b16 %v5426, %v5423
    %v5541 = vpack.c.b16 %v5430, %v5427
    %v5542 = vpack.c.b16 %v5431, %v5428
    %v5543 = vpack.c.b16 %v5432, %v5429
    %v5544 = vpack.c.b16 %v5436, %v5433
    %v5545 = vpack.c.b16 %v5437, %v5434
    %v5546 = vpack.c.b16 %v5438, %v5435
    %v5547 = vpack.c.b16 %v5442, %v5439
    %v5548 = vpack.c.b16 %v5443, %v5440
    %v5549 = vpack.c.b16 %v5444, %v5441
    %v5550 = vpack.c.b16 %v5448, %v5445
    %v5551 = vpack.c.b16 %v5449, %v5446
    %v5552 = vpack.c.b16 %v5450, %v5447
    %v5553 = vpack.c.b16 %v5454, %v5451
    %v5554 = vpack.c.b16 %v5455, %v5452
    %v5555 = vpack.c.b16 %v5456, %v5453
    %v5556 = vpack.c.b16 %v5460, %v5457
    %v5557 = vpack.c.b16 %v5461, %v5458
    %v5558 = vpack.c.b16 %v5462, %v5459
    %5655 = vmatprep.subr.bf16.mxu0 %v5464
    %5656 = vmatpush1.bf16.msra.mxu0 %v5463
    %5657 = vmatprep.subr.bf16.mxu0 %v5467
    %5658 = vmatpush1.bf16.msra.mxu0 %v5466
    %5659 = vmatprep.subr.bf16.mxu0 %v5470
    %5660 = vmatpush1.bf16.msra.mxu0 %v5469
    %5661 = vmatprep.subr.bf16.mxu0 %v5473
    %5662 = vmatpush1.bf16.msra.mxu0 %v5472
    %5663 = vmatprep.subr.bf16.mxu0 %v5476
    %5664 = vmatpush1.bf16.msra.mxu0 %v5475
    %5665 = vmatprep.subr.bf16.mxu0 %v5479
    %5666 = vmatpush1.bf16.msra.mxu0 %v5478
    %5667 = vmatprep.subr.bf16.mxu0 %v5482
    %5668 = vmatpush1.bf16.msra.mxu0 %v5481
    %5669 = vmatprep.subr.bf16.mxu0 %v5485
    %5670 = vmatpush1.bf16.msra.mxu0 %v5484
    %5671 = vmatprep.subr.bf16.mxu0 %v5488
    %5672 = vmatpush1.bf16.msra.mxu0 %v5487
    %5673 = vmatprep.subr.bf16.mxu0 %v5491
    %5674 = vmatpush1.bf16.msra.mxu0 %v5490
    %5675 = vmatprep.subr.bf16.mxu0 %v5494
    %5676 = vmatpush1.bf16.msra.mxu0 %v5493
    %5677 = vmatprep.subr.bf16.mxu0 %v5497
    %5678 = vmatpush1.bf16.msra.mxu0 %v5496
    %5679 = vmatprep.subr.bf16.mxu0 %v5500
    %5680 = vmatpush1.bf16.msra.mxu0 %v5499
    %5681 = vmatprep.subr.bf16.mxu0 %v5503
    %5682 = vmatpush1.bf16.msra.mxu0 %v5502
    %5683 = vmatprep.subr.bf16.mxu0 %v5506
    %5684 = vmatpush1.bf16.msra.mxu0 %v5505
    %5685 = vmatprep.subr.bf16.mxu0 %v5509
    %5686 = vmatpush1.bf16.msra.mxu0 %v5508
    %5687 = vmatprep.mubr.bf16.mxu0 %v3661
    %5688 = vmatmul.mubr.bf16.gmra.mrb[0].mxu0 %v3660
    %v5689 = vpop.f32.mrb[0].mxu0
    %v5690 = vadd.f32 %v5017, %v5689
    %v5691 = vpop.f32.mrb[0].mxu0
    %v5692 = vadd.f32 %v5019, %v5691
    %v5693 = vpop.f32.mrb[0].mxu0
    %v5694 = vpop.f32.mrb[0].mxu0
    %5695 = vdwg.mxu0
    %5696 = vmatprep.subr.bf16.mxu0 %v5512
    %5697 = vmatpush1.bf16.msra.mxu0 %v5511
    %5698 = vmatprep.subr.bf16.mxu0 %v5515
    %5699 = vmatpush1.bf16.msra.mxu0 %v5514
    %5700 = vmatprep.subr.bf16.mxu0 %v5518
    %5701 = vmatpush1.bf16.msra.mxu0 %v5517
    %5702 = vmatprep.subr.bf16.mxu0 %v5521
    %5703 = vmatpush1.bf16.msra.mxu0 %v5520
    %5704 = vmatprep.subr.bf16.mxu0 %v5524
    %5705 = vmatpush1.bf16.msra.mxu0 %v5523
    %5706 = vmatprep.subr.bf16.mxu0 %v5527
    %5707 = vmatpush1.bf16.msra.mxu0 %v5526
    %5708 = vmatprep.subr.bf16.mxu0 %v5530
    %5709 = vmatpush1.bf16.msra.mxu0 %v5529
    %5710 = vmatprep.subr.bf16.mxu0 %v5533
    %5711 = vmatpush1.bf16.msra.mxu0 %v5532
    %5712 = vmatprep.subr.bf16.mxu0 %v5536
    %5713 = vmatpush1.bf16.msra.mxu0 %v5535
    %5714 = vmatprep.subr.bf16.mxu0 %v5539
    %5715 = vmatpush1.bf16.msra.mxu0 %v5538
    %5716 = vmatprep.subr.bf16.mxu0 %v5542
    %5717 = vmatpush1.bf16.msra.mxu0 %v5541
    %5718 = vmatprep.subr.bf16.mxu0 %v5545
    %5719 = vmatpush1.bf16.msra.mxu0 %v5544
    %5720 = vmatprep.subr.bf16.mxu0 %v5548
    %5721 = vmatpush1.bf16.msra.mxu0 %v5547
    %5722 = vmatprep.subr.bf16.mxu0 %v5551
    %5723 = vmatpush1.bf16.msra.mxu0 %v5550
    %5724 = vmatprep.subr.bf16.mxu0 %v5554
    %5725 = vmatpush1.bf16.msra.mxu0 %v5553
    %5726 = vmatprep.subr.bf16.mxu0 %v5557
    %5727 = vmatpush1.bf16.msra.mxu0 %v5556
    %5728 = vmatprep.mubr.bf16.mxu0 %v3663
    %5729 = vmatmul.mubr.bf16.gmra.mrb[0].mxu0 %v3662
    %v5730 = vpop.f32.mrb[0].mxu0
    %v5731 = vadd.f32 %v5690, %v5730
    %v5732 = vpop.f32.mrb[0].mxu0
    %v5733 = vadd.f32 %v5692, %v5732
    %v5734 = vpop.f32.mrb[0].mxu0
    %v5735 = vpop.f32.mrb[0].mxu0
    %5736 = vdwg.mxu0
    %5737 = vmatprep.subr.bf16.mxu0 0
    %5738 = vmatpush1.bf16.msra.mxu0 %v5465
    %5739 = vmatprep.subr.bf16.mxu0 0
    %5740 = vmatpush1.bf16.msra.mxu0 %v5468
    %5741 = vmatprep.subr.bf16.mxu0 0
    %5742 = vmatpush1.bf16.msra.mxu0 %v5471
    %5743 = vmatprep.subr.bf16.mxu0 0
    %5744 = vmatpush1.bf16.msra.mxu0 %v5474
    %5745 = vmatprep.subr.bf16.mxu0 0
    %5746 = vmatpush1.bf16.msra.mxu0 %v5477
    %5747 = vmatprep.subr.bf16.mxu0 0
    %5748 = vmatpush1.bf16.msra.mxu0 %v5480
    %5749 = vmatprep.subr.bf16.mxu0 0
    %5750 = vmatpush1.bf16.msra.mxu0 %v5483
    %5751 = vmatprep.subr.bf16.mxu0 0
    %5752 = vmatpush1.bf16.msra.mxu0 %v5486
    %5753 = vmatprep.subr.bf16.mxu0 0
    %5754 = vmatpush1.bf16.msra.mxu0 %v5489
    %5755 = vmatprep.subr.bf16.mxu0 0
    %5756 = vmatpush1.bf16.msra.mxu0 %v5492
    %5757 = vmatprep.subr.bf16.mxu0 0
    %5758 = vmatpush1.bf16.msra.mxu0 %v5495
    %5759 = vmatprep.subr.bf16.mxu0 0
    %5760 = vmatpush1.bf16.msra.mxu0 %v5498
    %5761 = vmatprep.subr.bf16.mxu0 0
    %5762 = vmatpush1.bf16.msra.mxu0 %v5501
    %5763 = vmatprep.subr.bf16.mxu0 0
    %5764 = vmatpush1.bf16.msra.mxu0 %v5504
    %5765 = vmatprep.subr.bf16.mxu0 0
    %5766 = vmatpush1.bf16.msra.mxu0 %v5507
    %5767 = vmatprep.subr.bf16.mxu0 0
    %5768 = vmatpush1.bf16.msra.mxu0 %v5510
    %5769 = vmatprep.mubr.bf16.mxu0 %v3661
    %5770 = vmatmul.mubr.bf16.gmra.mrb[0].mxu0 %v3660
    %v5771 = vpop.f32.mrb[0].mxu0
    %v5772 = vadd.f32 %v5138, %v5771
    %v5773 = vpop.f32.mrb[0].mxu0
    %v5774 = vpop.f32.mrb[0].mxu0
    %v5775 = vpop.f32.mrb[0].mxu0
    %5776 = vdwg.mxu0
    %5777 = vmatprep.subr.bf16.mxu0 0
    %5778 = vmatpush1.bf16.msra.mxu0 %v5513
    %5779 = vmatprep.subr.bf16.mxu0 0
    %5780 = vmatpush1.bf16.msra.mxu0 %v5516
    %5781 = vmatprep.subr.bf16.mxu0 0
    %5782 = vmatpush1.bf16.msra.mxu0 %v5519
    %5783 = vmatprep.subr.bf16.mxu0 0
    %5784 = vmatpush1.bf16.msra.mxu0 %v5522
    %5785 = vmatprep.subr.bf16.mxu0 0
    %5786 = vmatpush1.bf16.msra.mxu0 %v5525
    %5787 = vmatprep.subr.bf16.mxu0 0
    %5788 = vmatpush1.bf16.msra.mxu0 %v5528
    %5789 = vmatprep.subr.bf16.mxu0 0
    %5790 = vmatpush1.bf16.msra.mxu0 %v5531
    %5791 = vmatprep.subr.bf16.mxu0 0
    %5792 = vmatpush1.bf16.msra.mxu0 %v5534
    %5793 = vmatprep.subr.bf16.mxu0 0
    %5794 = vmatpush1.bf16.msra.mxu0 %v5537
    %5795 = vmatprep.subr.bf16.mxu0 0
    %5796 = vmatpush1.bf16.msra.mxu0 %v5540
    %5797 = vmatprep.subr.bf16.mxu0 0
    %5798 = vmatpush1.bf16.msra.mxu0 %v5543
    %5799 = vmatprep.subr.bf16.mxu0 0
    %5800 = vmatpush1.bf16.msra.mxu0 %v5546
    %5801 = vmatprep.subr.bf16.mxu0 0
    %5802 = vmatpush1.bf16.msra.mxu0 %v5549
    %5803 = vmatprep.subr.bf16.mxu0 0
    %5804 = vmatpush1.bf16.msra.mxu0 %v5552
    %5805 = vmatprep.subr.bf16.mxu0 0
    %5806 = vmatpush1.bf16.msra.mxu0 %v5555
    %5807 = vmatprep.subr.bf16.mxu0 0
    %5808 = vmatpush1.bf16.msra.mxu0 %v5558
    %5809 = vmatprep.mubr.bf16.mxu0 %v3663
    %5810 = vmatmul.mubr.bf16.gmra.mrb[0].mxu0 %v3662
    %v5811 = vpop.f32.mrb[0].mxu0
    %v5812 = vadd.f32 %v5772, %v5811
    %v5813 = vpop.f32.mrb[0].mxu0
    %v5814 = vpop.f32.mrb[0].mxu0
    %v5815 = vpop.f32.mrb[0].mxu0
    %5816 = vdwg.mxu0
    %v5819 = vcombine.low %v5731, %v5733
    %5821 = vst [vmem:[#allocation10] sm:$0xff] %v5819
    %5822 = vst [vmem:[#allocation10 + $0x8] sm:$0xf] %v5812
    %v5823 = vld [vmem:[%s12] sm:$0x7]
    %v5824 = vsel %vm3644, %v5731, 0.0
    %v5825 = vsel %vm3644, %v5733, 0.0
    %v5826 = vadd.f32 %v5824, %v5825
    %v5827 = vsel %vm3644, %v5812, 0.0
    %v5828 = vadd.f32 %v5826, %v5827
    %5829 = vadd.xlane.f32.xlu0 %v5828
    %v5830 = vpop.xlane.xlu0 %5829
    %v5831 = vmul.f32 %v5830, 0.0032051282
    %v5832 = vsub.f32 %v5731, %v5831
    %v5833 = vsub.f32 %v5733, %v5831
    %v5834 = vsub.f32 %v5812, %v5831
    %v5835 = vmul.f32 %v5832, %v5832
    %v5836 = vmul.f32 %v5833, %v5833
    %v5837 = vmul.f32 %v5834, %v5834
    %v5839 = vlaneseq
    %v5840 = vshrl.u32 %v5839, 7
    %v5841 = vsub.s32 0, %v5840
    %v5842 = vrot.slane %v5823, %v5841
    %v5843 = vlaneseq
    %v5844 = vshrl.u32 %v5843, 7
    %v5845 = vsub.s32 1, %v5844
    %v5846 = vrot.slane %v5823, %v5845
    %v5847 = vlaneseq
    %v5848 = vshrl.u32 %v5847, 7
    %v5849 = vsub.s32 2, %v5848
    %v5850 = vrot.slane %v5823, %v5849
    %v5854 = vmul.f32 %v5835, %v5842
    %v5855 = vmul.f32 %v5836, %v5846
    %v5856 = vmul.f32 %v5837, %v5850
    %v5857 = vsel %vm3644, %v5854, 0.0
    %v5858 = vsel %vm3644, %v5855, 0.0
    %v5859 = vadd.f32 %v5857, %v5858
    %v5860 = vsel %vm3644, %v5856, 0.0
    %v5861 = vadd.f32 %v5859, %v5860
    %5862 = vadd.xlane.f32.xlu0 %v5861
    %v5863 = vpop.xlane.xlu0 %5862
    %v5864 = vmul.f32 %v5863, 0.0032051282
    %v5865 = vadd.f32 %v5864, 1e-05
    %v5866 = vrsqrt.pop %v5865
    %v5867 = vmul.f32 %v5832, %v5866
    %v5868 = vmul.f32 %v5833, %v5866
    %v5869 = vmul.f32 %v5834, %v5866
    %v5870 = vld [vmem:[%s8] sm:$0x7]
    %v5872 = vlaneseq
    %v5873 = vshrl.u32 %v5872, 7
    %v5874 = vsub.s32 0, %v5873
    %v5875 = vrot.slane %v5870, %v5874
    %v5876 = vlaneseq
    %v5877 = vshrl.u32 %v5876, 7
    %v5878 = vsub.s32 1, %v5877
    %v5879 = vrot.slane %v5870, %v5878
    %v5880 = vlaneseq
    %v5881 = vshrl.u32 %v5880, 7
    %v5882 = vsub.s32 2, %v5881
    %v5883 = vrot.slane %v5870, %v5882
    %v5887 = vmul.f32 %v5867, %v5875
    %v5888 = vmul.f32 %v5868, %v5879
    %v5889 = vmul.f32 %v5869, %v5883
    %v5890 = vld [vmem:[%s9] sm:$0x7]
    %v5892 = vlaneseq
    %v5893 = vshrl.u32 %v5892, 7
    %v5894 = vsub.s32 0, %v5893
    %v5895 = vrot.slane %v5890, %v5894
    %v5896 = vlaneseq
    %v5897 = vshrl.u32 %v5896, 7
    %v5898 = vsub.s32 1, %v5897
    %v5899 = vrot.slane %v5890, %v5898
    %v5900 = vlaneseq
    %v5901 = vshrl.u32 %v5900, 7
    %v5902 = vsub.s32 2, %v5901
    %v5903 = vrot.slane %v5890, %v5902
    %v5907 = vadd.f32 %v5887, %v5895
    %v5908 = vadd.f32 %v5888, %v5899
    %v5909 = vadd.f32 %v5889, %v5903
    %v5910 = vpack.c.bf16 %v5907, %v5907
    %v5911 = vpack.c.bf16 %v5908, %v5908
    %v5912 = vpack.c.bf16 %v5909, %v5909
    %v5913 = vld [vmem:[#allocation8] sm:$0xff]
    %v5914 = vld [vmem:[#allocation8 + $0x8] sm:$0xff]
    %v5915 = vld [vmem:[#allocation8 + $0x10] sm:$0xff]
    %v5916 = vld [vmem:[#allocation8 + $0x18] sm:$0xff]
    %v5917 = vld [vmem:[#allocation8 + $0x20] sm:$0xff]
    %v5918 = vld [vmem:[#allocation8 + $0x28] sm:$0xff]
    %v5919 = vld [vmem:[#allocation8 + $0x30] sm:$0xff]
    %v5920 = vld [vmem:[#allocation8 + $0x38] sm:$0xff]
    %v5921 = vld [vmem:[#allocation8 + $0x40] sm:$0xff]
    %v5922 = vld [vmem:[#allocation8 + $0x48] sm:$0xff]
    %v5923 = vld [vmem:[#allocation8 + $0x50] sm:$0xff]
    %v5924 = vld [vmem:[#allocation8 + $0x58] sm:$0xff]
    %v5925 = vld [vmem:[#allocation8 + $0x60] sm:$0xff]
    %v5926 = vld [vmem:[#allocation8 + $0x68] sm:$0xff]
    %v5927 = vld [vmem:[#allocation8 + $0x70] sm:$0xff]
    %v5928 = vld [vmem:[#allocation8 + $0x78] sm:$0xff]
    %v5929 = vld [vmem:[#allocation8 + $0x80] sm:$0xff]
    %v5930 = vld [vmem:[#allocation8 + $0x88] sm:$0xff]
    %v5931 = vld [vmem:[#allocation8 + $0x90] sm:$0xff]
    %v5932 = vld [vmem:[#allocation8 + $0x98] sm:$0xff]
    %v5933 = vld [vmem:[#allocation8 + $0xa0] sm:$0xff]
    %v5934 = vld [vmem:[#allocation8 + $0xa8] sm:$0xff]
    %v5935 = vld [vmem:[#allocation8 + $0xb0] sm:$0xff]
    %v5936 = vld [vmem:[#allocation8 + $0xb8] sm:$0xff]
    %v5937 = vld [vmem:[#allocation8 + $0xc0] sm:$0xff]
    %v5938 = vld [vmem:[#allocation8 + $0xc8] sm:$0xff]
    %v5939 = vld [vmem:[#allocation8 + $0xd0] sm:$0xff]
    %v5940 = vld [vmem:[#allocation8 + $0xd8] sm:$0xff]
    %v5941 = vld [vmem:[#allocation8 + $0xe0] sm:$0xff]
    %v5942 = vld [vmem:[#allocation8 + $0xe8] sm:$0xff]
    %v5943 = vld [vmem:[#allocation8 + $0xf0] sm:$0xff]
    %v5944 = vld [vmem:[#allocation8 + $0xf8] sm:$0xff]
    %v5945 = vld [vmem:[#allocation8 + $0x100] sm:$0xff]
    %v5946 = vld [vmem:[#allocation8 + $0x108] sm:$0xff]
    %v5947 = vld [vmem:[#allocation8 + $0x110] sm:$0xff]
    %v5948 = vld [vmem:[#allocation8 + $0x118] sm:$0xff]
    %v5949 = vld [vmem:[#allocation8 + $0x120] sm:$0xff]
    %v5950 = vld [vmem:[#allocation8 + $0x128] sm:$0xff]
    %v5951 = vld [vmem:[#allocation8 + $0x130] sm:$0xff]
    %v5952 = vld [vmem:[#allocation8 + $0x138] sm:$0xff]
    %v5953 = vld [vmem:[#allocation8 + $0x140] sm:$0xff]
    %v5954 = vld [vmem:[#allocation8 + $0x148] sm:$0xff]
    %v5955 = vld [vmem:[#allocation8 + $0x150] sm:$0xff]
    %v5956 = vld [vmem:[#allocation8 + $0x158] sm:$0xff]
    %v5957 = vld [vmem:[#allocation8 + $0x160] sm:$0xff]
    %v5958 = vld [vmem:[#allocation8 + $0x168] sm:$0xff]
    %v5959 = vld [vmem:[#allocation8 + $0x170] sm:$0xff]
    %v5960 = vld [vmem:[#allocation8 + $0x178] sm:$0xff]
    %v5961 = vld [vmem:[%s11] sm:$0x3]
    %v5963 = vlaneseq
    %v5964 = vshrl.u32 %v5963, 7
    %v5965 = vsub.s32 0, %v5964
    %v5966 = vrot.slane %v5961, %v5965
    %v5967 = vlaneseq
    %v5968 = vshrl.u32 %v5967, 7
    %v5969 = vsub.s32 1, %v5968
    %v5970 = vrot.slane %v5961, %v5969
    %v6021 = vunpack.c.l.b16 %v5913
    %v6022 = vunpack.c.h.b16 %v5913
    %v6023 = vunpack.c.l.b16 %v5914
    %v6024 = vunpack.c.h.b16 %v5914
    %v6025 = vunpack.c.l.b16 %v5915
    %v6026 = vunpack.c.h.b16 %v5915
    %v6027 = vunpack.c.l.b16 %v5916
    %v6028 = vunpack.c.h.b16 %v5916
    %v6029 = vunpack.c.l.b16 %v5917
    %v6030 = vunpack.c.h.b16 %v5917
    %v6031 = vunpack.c.l.b16 %v5918
    %v6032 = vunpack.c.h.b16 %v5918
    %v6033 = vunpack.c.l.b16 %v5919
    %v6034 = vunpack.c.h.b16 %v5919
    %v6035 = vunpack.c.l.b16 %v5920
    %v6036 = vunpack.c.h.b16 %v5920
    %v6037 = vunpack.c.l.b16 %v5921
    %v6038 = vunpack.c.h.b16 %v5921
    %v6039 = vunpack.c.l.b16 %v5922
    %v6040 = vunpack.c.h.b16 %v5922
    %v6041 = vunpack.c.l.b16 %v5923
    %v6042 = vunpack.c.h.b16 %v5923
    %v6043 = vunpack.c.l.b16 %v5924
    %v6044 = vunpack.c.h.b16 %v5924
    %v6045 = vunpack.c.l.b16 %v5925
    %v6046 = vunpack.c.h.b16 %v5925
    %v6047 = vunpack.c.l.b16 %v5926
    %v6048 = vunpack.c.h.b16 %v5926
    %v6049 = vunpack.c.l.b16 %v5927
    %v6050 = vunpack.c.h.b16 %v5927
    %v6051 = vunpack.c.l.b16 %v5928
    %v6052 = vunpack.c.h.b16 %v5928
    %v6053 = vunpack.c.l.b16 %v5929
    %v6054 = vunpack.c.h.b16 %v5929
    %v6055 = vunpack.c.l.b16 %v5930
    %v6056 = vunpack.c.h.b16 %v5930
    %v6057 = vunpack.c.l.b16 %v5931
    %v6058 = vunpack.c.h.b16 %v5931
    %v6059 = vunpack.c.l.b16 %v5932
    %v6060 = vunpack.c.h.b16 %v5932
    %v6061 = vunpack.c.l.b16 %v5933
    %v6062 = vunpack.c.h.b16 %v5933
    %v6063 = vunpack.c.l.b16 %v5934
    %v6064 = vunpack.c.h.b16 %v5934
    %v6065 = vunpack.c.l.b16 %v5935
    %v6066 = vunpack.c.h.b16 %v5935
    %v6067 = vunpack.c.l.b16 %v5936
    %v6068 = vunpack.c.h.b16 %v5936
    %v6069 = vunpack.c.l.b16 %v5937
    %v6070 = vunpack.c.h.b16 %v5937
    %v6071 = vunpack.c.l.b16 %v5938
    %v6072 = vunpack.c.h.b16 %v5938
    %v6073 = vunpack.c.l.b16 %v5939
    %v6074 = vunpack.c.h.b16 %v5939
    %v6075 = vunpack.c.l.b16 %v5940
    %v6076 = vunpack.c.h.b16 %v5940
    %v6077 = vunpack.c.l.b16 %v5941
    %v6078 = vunpack.c.h.b16 %v5941
    %v6079 = vunpack.c.l.b16 %v5942
    %v6080 = vunpack.c.h.b16 %v5942
    %v6081 = vunpack.c.l.b16 %v5943
    %v6082 = vunpack.c.h.b16 %v5943
    %v6083 = vunpack.c.l.b16 %v5944
    %v6084 = vunpack.c.h.b16 %v5944
    %v6085 = vunpack.c.l.b16 %v5945
    %v6086 = vunpack.c.h.b16 %v5945
    %v6087 = vunpack.c.l.b16 %v5946
    %v6088 = vunpack.c.h.b16 %v5946
    %v6089 = vunpack.c.l.b16 %v5947
    %v6090 = vunpack.c.h.b16 %v5947
    %v6091 = vunpack.c.l.b16 %v5948
    %v6092 = vunpack.c.h.b16 %v5948
    %v6093 = vunpack.c.l.b16 %v5949
    %v6094 = vunpack.c.h.b16 %v5949
    %v6095 = vunpack.c.l.b16 %v5950
    %v6096 = vunpack.c.h.b16 %v5950
    %v6097 = vunpack.c.l.b16 %v5951
    %v6098 = vunpack.c.h.b16 %v5951
    %v6099 = vunpack.c.l.b16 %v5952
    %v6100 = vunpack.c.h.b16 %v5952
    %v6101 = vunpack.c.l.b16 %v5953
    %v6102 = vunpack.c.h.b16 %v5953
    %v6103 = vunpack.c.l.b16 %v5954
    %v6104 = vunpack.c.h.b16 %v5954
    %v6105 = vunpack.c.l.b16 %v5955
    %v6106 = vunpack.c.h.b16 %v5955
    %v6107 = vunpack.c.l.b16 %v5956
    %v6108 = vunpack.c.h.b16 %v5956
    %v6109 = vunpack.c.l.b16 %v5957
    %v6110 = vunpack.c.h.b16 %v5957
    %v6111 = vunpack.c.l.b16 %v5958
    %v6112 = vunpack.c.h.b16 %v5958
    %v6113 = vunpack.c.l.b16 %v5959
    %v6114 = vunpack.c.h.b16 %v5959
    %v6115 = vunpack.c.l.b16 %v5960
    %v6116 = vunpack.c.h.b16 %v5960
    %v6117 = vpack.c.b16 %v6023, %v6021
    %v6118 = vpack.c.b16 %v6024, %v6022
    %v6119 = vpack.c.b16 %v6027, %v6025
    %v6120 = vpack.c.b16 %v6028, %v6026
    %v6121 = vpack.c.b16 %v6031, %v6029
    %v6122 = vpack.c.b16 %v6032, %v6030
    %v6123 = vpack.c.b16 %v6035, %v6033
    %v6124 = vpack.c.b16 %v6036, %v6034
    %v6125 = vpack.c.b16 %v6039, %v6037
    %v6126 = vpack.c.b16 %v6040, %v6038
    %v6127 = vpack.c.b16 %v6043, %v6041
    %v6128 = vpack.c.b16 %v6044, %v6042
    %v6129 = vpack.c.b16 %v6047, %v6045
    %v6130 = vpack.c.b16 %v6048, %v6046
    %v6131 = vpack.c.b16 %v6051, %v6049
    %v6132 = vpack.c.b16 %v6052, %v6050
    %v6133 = vpack.c.b16 %v6055, %v6053
    %v6134 = vpack.c.b16 %v6056, %v6054
    %v6135 = vpack.c.b16 %v6059, %v6057
    %v6136 = vpack.c.b16 %v6060, %v6058
    %v6137 = vpack.c.b16 %v6063, %v6061
    %v6138 = vpack.c.b16 %v6064, %v6062
    %v6139 = vpack.c.b16 %v6067, %v6065
    %v6140 = vpack.c.b16 %v6068, %v6066
    %v6141 = vpack.c.b16 %v6071, %v6069
    %v6142 = vpack.c.b16 %v6072, %v6070
    %v6143 = vpack.c.b16 %v6075, %v6073
    %v6144 = vpack.c.b16 %v6076, %v6074
    %v6145 = vpack.c.b16 %v6079, %v6077
    %v6146 = vpack.c.b16 %v6080, %v6078
    %v6147 = vpack.c.b16 %v6083, %v6081
    %v6148 = vpack.c.b16 %v6084, %v6082
    %v6149 = vpack.c.b16 %v6087, %v6085
    %v6150 = vpack.c.b16 %v6088, %v6086
    %v6151 = vpack.c.b16 %v6091, %v6089
    %v6152 = vpack.c.b16 %v6092, %v6090
    %v6153 = vpack.c.b16 %v6095, %v6093
    %v6154 = vpack.c.b16 %v6096, %v6094
    %v6155 = vpack.c.b16 %v6099, %v6097
    %v6156 = vpack.c.b16 %v6100, %v6098
    %v6157 = vpack.c.b16 %v6103, %v6101
    %v6158 = vpack.c.b16 %v6104, %v6102
    %v6159 = vpack.c.b16 %v6107, %v6105
    %v6160 = vpack.c.b16 %v6108, %v6106
    %v6161 = vpack.c.b16 %v6111, %v6109
    %v6162 = vpack.c.b16 %v6112, %v6110
    %v6163 = vpack.c.b16 %v6115, %v6113
    %v6164 = vpack.c.b16 %v6116, %v6114
    %6213 = vmatprep.subr.bf16.mxu0 %v6118
    %6214 = vmatpush1.bf16.msra.mxu0 %v6117
    %6215 = vmatprep.subr.bf16.mxu0 %v6120
    %6216 = vmatpush1.bf16.msra.mxu0 %v6119
    %6217 = vmatprep.subr.bf16.mxu0 %v6122
    %6218 = vmatpush1.bf16.msra.mxu0 %v6121
    %6219 = vmatprep.subr.bf16.mxu0 %v6124
    %6220 = vmatpush1.bf16.msra.mxu0 %v6123
    %6221 = vmatprep.subr.bf16.mxu0 %v6126
    %6222 = vmatpush1.bf16.msra.mxu0 %v6125
    %6223 = vmatprep.subr.bf16.mxu0 %v6128
    %6224 = vmatpush1.bf16.msra.mxu0 %v6127
    %6225 = vmatprep.subr.bf16.mxu0 %v6130
    %6226 = vmatpush1.bf16.msra.mxu0 %v6129
    %6227 = vmatprep.subr.bf16.mxu0 %v6132
    %6228 = vmatpush1.bf16.msra.mxu0 %v6131
    %6229 = vmatprep.subr.bf16.mxu0 %v6134
    %6230 = vmatpush1.bf16.msra.mxu0 %v6133
    %6231 = vmatprep.subr.bf16.mxu0 %v6136
    %6232 = vmatpush1.bf16.msra.mxu0 %v6135
    %6233 = vmatprep.subr.bf16.mxu0 %v6138
    %6234 = vmatpush1.bf16.msra.mxu0 %v6137
    %6235 = vmatprep.subr.bf16.mxu0 %v6140
    %6236 = vmatpush1.bf16.msra.mxu0 %v6139
    %6237 = vmatprep.subr.bf16.mxu0 %v6142
    %6238 = vmatpush1.bf16.msra.mxu0 %v6141
    %6239 = vmatprep.subr.bf16.mxu0 %v6144
    %6240 = vmatpush1.bf16.msra.mxu0 %v6143
    %6241 = vmatprep.subr.bf16.mxu0 %v6146
    %6242 = vmatpush1.bf16.msra.mxu0 %v6145
    %6243 = vmatprep.subr.bf16.mxu0 %v6148
    %6244 = vmatpush1.bf16.msra.mxu0 %v6147
    %6245 = vmatprep.mubr.bf16.mxu0 %v5911
    %6246 = vmatmul.mubr.bf16.gmra.mrb[0].mxu0 %v5910
    %v6247 = vpop.f32.mrb[0].mxu0
    %v6248 = vadd.f32 %v5966, %v6247
    %v6249 = vpop.f32.mrb[0].mxu0
    %v6250 = vadd.f32 %v5970, %v6249
    %v6251 = vpop.f32.mrb[0].mxu0
    %v6252 = vpop.f32.mrb[0].mxu0
    %6253 = vdwg.mxu0
    %6254 = vmatprep.subr.bf16.mxu0 %v6150
    %6255 = vmatpush1.bf16.msra.mxu0 %v6149
    %6256 = vmatprep.subr.bf16.mxu0 %v6152
    %6257 = vmatpush1.bf16.msra.mxu0 %v6151
    %6258 = vmatprep.subr.bf16.mxu0 %v6154
    %6259 = vmatpush1.bf16.msra.mxu0 %v6153
    %6260 = vmatprep.subr.bf16.mxu0 %v6156
    %6261 = vmatpush1.bf16.msra.mxu0 %v6155
    %6262 = vmatprep.subr.bf16.mxu0 %v6158
    %6263 = vmatpush1.bf16.msra.mxu0 %v6157
    %6264 = vmatprep.subr.bf16.mxu0 %v6160
    %6265 = vmatpush1.bf16.msra.mxu0 %v6159
    %6266 = vmatprep.subr.bf16.mxu0 %v6162
    %6267 = vmatpush1.bf16.msra.mxu0 %v6161
    %6268 = vmatprep.subr.bf16.mxu0 %v6164
    %6269 = vmatpush1.bf16.msra.mxu0 %v6163
    %6270 = vmatprep.subr.bf16.mxu0 0
    %6271 = vmatpush1.bf16.msra.mxu0 0
    %6272 = vmatprep.subr.bf16.mxu0 0
    %6273 = vmatpush1.bf16.msra.mxu0 0
    %6274 = vmatprep.subr.bf16.mxu0 0
    %6275 = vmatpush1.bf16.msra.mxu0 0
    %6276 = vmatprep.subr.bf16.mxu0 0
    %6277 = vmatpush1.bf16.msra.mxu0 0
    %6278 = vmatprep.subr.bf16.mxu0 0
    %6279 = vmatpush1.bf16.msra.mxu0 0
    %6280 = vmatprep.subr.bf16.mxu0 0
    %6281 = vmatpush1.bf16.msra.mxu0 0
    %6282 = vmatprep.subr.bf16.mxu0 0
    %6283 = vmatpush1.bf16.msra.mxu0 0
    %6284 = vmatprep.subr.bf16.mxu0 0
    %6285 = vmatpush1.bf16.msra.mxu0 0
    %6286 = vmatprep.mubr.bf16.mxu0 0
    %6287 = vmatmul.mubr.bf16.gmra.mrb[0].mxu0 %v5912
    %v6288 = vpop.f32.mrb[0].mxu0
    %v6289 = vadd.f32 %v6248, %v6288
    %v6290 = vpop.f32.mrb[0].mxu0
    %v6291 = vadd.f32 %v6250, %v6290
    %v6292 = vpop.f32.mrb[0].mxu0
    %v6293 = vpop.f32.mrb[0].mxu0
    %6294 = vdwg.mxu0
    %v6297 = vcombine.low %v6289, %v6291
    %6299 = vst [vmem:[#allocation11] sm:$0xff] %v6297
    // Predicated region
    $region70: #{css_cbm_forward.1} parent=1 // pred_check
      _
    $region71: #{css_cbm_forward.1} parent=1 // pred_check_branch
      %6301 = sbr.rel (0) target = $region73
    $region72: #{css_cbm_forward.1} parent=1 // pred_region
      %s6303 = ssub.s32 192, 192
      %6304 = vsyncadd [#allocation4], %s6303
      %s6306 = sshll.u32 [#allocation10], 4
      %s6307 = int_to_ptr.vmem [resolvable:$true] %s6306
      %6309 = dma.vmem_to_hbm [thread:$0]  %s6307, 192, %s13, [#allocation4]
    $region73: #{css_cbm_forward.1} parent=1 // pred_fallthru
      _
    // Predicated region
    $region74: #{css_cbm_forward.1} parent=1 // pred_check
      _
    $region75: #{css_cbm_forward.1} parent=1 // pred_check_branch
      %6311 = sbr.rel (0) target = $region77
    $region76: #{css_cbm_forward.1} parent=1 // pred_region
      %s6313 = ssub.s32 128, 128
      %6314 = vsyncadd [#allocation12], %s6313
      %s6316 = sshll.u32 [#allocation11], 4
      %s6317 = int_to_ptr.vmem [resolvable:$true] %s6316
      %6319 = dma.vmem_to_hbm [thread:$0]  %s6317, 128, %s14, [#allocation12]
    $region77: #{css_cbm_forward.1} parent=1 // pred_fallthru
      _
    // Predicated region
    $region78: #{css_cbm_forward.1} parent=1 // pred_check
      _
    $region79: #{css_cbm_forward.1} parent=1 // pred_check_branch
      %6321 = sbr.rel (0) target = $region81
    $region80: #{css_cbm_forward.1} parent=1 // pred_region
      %6322 = dma.done [#allocation4], 192
    $region81: #{css_cbm_forward.1} parent=1 // pred_fallthru
      _
    // Predicated region
    $region82: #{css_cbm_forward.1} parent=1 // pred_check
      _
    $region83: #{css_cbm_forward.1} parent=1 // pred_check_branch
      %6324 = sbr.rel (0) target = $region85
    $region84: #{css_cbm_forward.1} parent=1 // pred_region
      %6325 = dma.done [#allocation12], 128
    $region85: #{css_cbm_forward.1} parent=1 // pred_fallthru
      _
    %6326 = vsyncpa [#allocation3], 1
    %6327 = vsyncpa [#allocation6], 1
    %6328 = vsyncpa [#allocation9], 1
    %6329 = vsyncpa [#allocation4], 1
    %6330 = vsyncpa [#allocation12], 1

</llo_original>
